<compile_context>
chip_gen: v7x
topology: tpu7x:2x2x1
jax: 0.10.0
libtpu: 0.0.40
codegen_flags: <defaults>
</compile_context>

<pallas_src>
import math
import jax
import jax.numpy as jnp
from jax.experimental import pallas as pl
from jax.experimental.pallas import tpu as pltpu

# ------- small config (same structure as the PyTorch Config, scaled down) -------
D_MODEL  = 32
N_HEADS  = 4
D_HEAD   = 8
D_MLP    = 128
N_LAYERS = 2
D_VOCAB  = 128
N_CTX    = 16
LN_EPS   = 1e-5
INIT_STD = 0.02
IGNORE   = -100000.0   # same constant the PyTorch module uses for masking


# ------------------------------ in-kernel helpers ------------------------------
def _layernorm(x, w, b):
    mean = jnp.mean(x, axis=-1, keepdims=True)
    var = jnp.mean((x - mean) ** 2, axis=-1, keepdims=True)   # unbiased=False
    inv = jax.lax.rsqrt(var + LN_EPS)                          # EUP rsqrt, no divide
    return (x - mean) * inv * w + b


def _gelu_new(x):
    return 0.5 * x * (1.0 + jnp.tanh(
        math.sqrt(2.0 / math.pi) * (x + 0.044715 * x ** 3)))


def _softmax_last(x):
    m = jnp.max(x, axis=-1, keepdims=True)
    e = jnp.exp(x - m)
    denom = jnp.sum(e, axis=-1, keepdims=True)
    return e * pl.reciprocal(denom, approx=True)               # EUP reciprocal


# ------------------------------ fused Pallas kernel -----------------------------
def fused_forward_kernel(resid_ref,
                         ln1w_ref, ln1b_ref,
                         wq_ref, bq_ref, wk_ref, bk_ref, wv_ref, bv_ref,
                         wo_ref, bo_ref,
                         ln2w_ref, ln2b_ref,
                         win_ref, bin_ref, wout_ref, bout_ref,
                         lnfw_ref, lnfb_ref, wu_ref, bu_ref,
                         logits_ref):
    x = resid_ref[...]                         # (B, S, D) f32, stays on-chip end-to-end
    B, S, D = x.shape
    HD = N_HEADS * D_HEAD
    scale = 1.0 / math.sqrt(D_HEAD)

    # causal mask (strictly above the diagonal), built once for all layers
    row = jax.lax.broadcasted_iota(jnp.int32, (S, S), 0)
    col = jax.lax.broadcasted_iota(jnp.int32, (S, S), 1)
    causal = col > row

    for l in range(N_LAYERS):                  # static in-kernel layer loop (tiny model)
        # ---------------- attention ----------------
        xn1 = _layernorm(x, ln1w_ref[l], ln1b_ref[l])
        x2 = xn1.reshape(B * S, D)

        q = jnp.dot(x2, wq_ref[l], preferred_element_type=jnp.float32) + bq_ref[l]
        k = jnp.dot(x2, wk_ref[l], preferred_element_type=jnp.float32) + bk_ref[l]
        v = jnp.dot(x2, wv_ref[l], preferred_element_type=jnp.float32) + bv_ref[l]

        def split_heads(t):                    # (B*S, H*Dh) -> (H*B, S, Dh)
            t3 = t.reshape(B, S, HD)
            return jnp.concatenate(
                [t3[:, :, h * D_HEAD:(h + 1) * D_HEAD] for h in range(N_HEADS)],
                axis=0)

        qh, kh, vh = split_heads(q), split_heads(k), split_heads(v)

        # scores / softmax / weighted sum batched over all heads at once
        s = jnp.einsum('bqd,bkd->bqk', qh, kh,
                       preferred_element_type=jnp.float32) * scale     # (H*B, S, S)
        s = jnp.where(causal[None, :, :], IGNORE, s)
        p = _softmax_last(s)
        zh = jnp.einsum('bqk,bkd->bqd', p, vh,
                        preferred_element_type=jnp.float32)            # (H*B, S, Dh)

        # merge heads back to (B*S, H*Dh) and do ONE output-projection matmul
        z_cat = jnp.concatenate(
            [zh[h * B:(h + 1) * B].reshape(B * S, D_HEAD) for h in range(N_HEADS)],
            axis=-1)
        attn = jnp.dot(z_cat, wo_ref[l],
                       preferred_element_type=jnp.float32) + bo_ref[l]
        resid_mid = x + attn.reshape(B, S, D)

        # ---------------- MLP ----------------
        xn2 = _layernorm(resid_mid, ln2w_ref[l], ln2b_ref[l])
        pre = jnp.dot(xn2.reshape(B * S, D), win_ref[l],
                      preferred_element_type=jnp.float32) + bin_ref[l]
        post = _gelu_new(pre)
        mlp = jnp.dot(post, wout_ref[l],
                      preferred_element_type=jnp.float32) + bout_ref[l]
        x = resid_mid + mlp.reshape(B, S, D)

    # ---------------- final LN + unembed ----------------
    xnf = _layernorm(x, lnfw_ref[...], lnfb_ref[...])
    logits = jnp.dot(xnf.reshape(B * S, D), wu_ref[...],
                     preferred_element_type=jnp.float32) + bu_ref[...]
    logits_ref[...] = logits.reshape(B, S, D_VOCAB)    # lane-dense (128) HBM output


# ------------------------------ wrappers ----------------------------------------
def prepare_params(params):
    """One-time weight prep: flatten attention weights and stack all layers."""
    blocks = params['blocks']

    def flat_qkv(w):   # (H, D, Dh) -> (D, H*Dh)
        return jnp.transpose(w, (1, 0, 2)).reshape(D_MODEL, N_HEADS * D_HEAD)

    def stack(fn):
        return jnp.stack([fn(b) for b in blocks], axis=0)

    return (
        stack(lambda b: b['ln1_w'].reshape(1, D_MODEL)),
        stack(lambda b: b['ln1_b'].reshape(1, D_MODEL)),
        stack(lambda b: flat_qkv(b['W_Q'])),
        stack(lambda b: b['b_Q'].reshape(1, N_HEADS * D_HEAD)),
        stack(lambda b: flat_qkv(b['W_K'])),
        stack(lambda b: b['b_K'].reshape(1, N_HEADS * D_HEAD)),
        stack(lambda b: flat_qkv(b['W_V'])),
        stack(lambda b: b['b_V'].reshape(1, N_HEADS * D_HEAD)),
        stack(lambda b: b['W_O'].reshape(N_HEADS * D_HEAD, D_MODEL)),
        stack(lambda b: b['b_O'].reshape(1, D_MODEL)),
        stack(lambda b: b['ln2_w'].reshape(1, D_MODEL)),
        stack(lambda b: b['ln2_b'].reshape(1, D_MODEL)),
        stack(lambda b: b['W_in']),
        stack(lambda b: b['b_in'].reshape(1, D_MLP)),
        stack(lambda b: b['W_out']),
        stack(lambda b: b['b_out'].reshape(1, D_MODEL)),
        params['ln_f_w'].reshape(1, D_MODEL),
        params['ln_f_b'].reshape(1, D_MODEL),
        params['W_U'],
        params['b_U'].reshape(1, D_VOCAB),
    )


@jax.jit
def demo_transformer_forward(tokens, w_e, w_pos, flat):
    B, S = tokens.shape
    # glue: embedding gather + positional embedding (plain JAX)
    residual = (w_e[tokens] + w_pos[:S][None, :, :]).astype(jnp.float32)

    n_inputs = 1 + len(flat)
    return pl.pallas_call(
        fused_forward_kernel,
        out_shape=jax.ShapeDtypeStruct((B, S, D_VOCAB), jnp.float32),
        in_specs=[pl.BlockSpec(memory_space=pltpu.MemorySpace.VMEM)] * n_inputs,
        out_specs=pl.BlockSpec(memory_space=pltpu.MemorySpace.VMEM),
    )(residual, *flat)


# ------------------------------ params & reference ------------------------------
def init_params(key):
    keys = iter(jax.random.split(key, 64))

    def nrm(shape):
        return INIT_STD * jax.random.normal(next(keys), shape, jnp.float32)

    params = {
        'W_E': nrm((D_VOCAB, D_MODEL)),
        'W_pos': nrm((N_CTX, D_MODEL)),
        'ln_f_w': jnp.ones((D_MODEL,), jnp.float32),
        'ln_f_b': jnp.zeros((D_MODEL,), jnp.float32),
        'W_U': nrm((D_MODEL, D_VOCAB)),
        'b_U': jnp.zeros((D_VOCAB,), jnp.float32),
        'blocks': [],
    }
    for _ in range(N_LAYERS):
        params['blocks'].append({
            'ln1_w': jnp.ones((D_MODEL,), jnp.float32),
            'ln1_b': jnp.zeros((D_MODEL,), jnp.float32),
            'W_Q': nrm((N_HEADS, D_MODEL, D_HEAD)),
            'W_K': nrm((N_HEADS, D_MODEL, D_HEAD)),
            'W_V': nrm((N_HEADS, D_MODEL, D_HEAD)),
            'W_O': nrm((N_HEADS, D_HEAD, D_MODEL)),
            'b_Q': jnp.zeros((N_HEADS, D_HEAD), jnp.float32),
            'b_K': jnp.zeros((N_HEADS, D_HEAD), jnp.float32),
            'b_V': jnp.zeros((N_HEADS, D_HEAD), jnp.float32),
            'b_O': jnp.zeros((D_MODEL,), jnp.float32),
            'ln2_w': jnp.ones((D_MODEL,), jnp.float32),
            'ln2_b': jnp.zeros((D_MODEL,), jnp.float32),
            'W_in': nrm((D_MODEL, D_MLP)),
            'b_in': jnp.zeros((D_MLP,), jnp.float32),
            'W_out': nrm((D_MLP, D_MODEL)),
            'b_out': jnp.zeros((D_MODEL,), jnp.float32),
        })
    return params


def reference_forward(tokens, params):
    """Pure-JAX mirror of the PyTorch DemoTransformer forward."""
    B, S = tokens.shape

    def ln(x, w, b):
        mean = x.mean(-1, keepdims=True)
        var = ((x - mean) ** 2).mean(-1, keepdims=True)
        return (x - mean) / jnp.sqrt(var + LN_EPS) * w + b

    resid = params['W_E'][tokens] + params['W_pos'][:S][None, :, :]
    mask = jnp.triu(jnp.ones((S, S), bool), k=1)
    for blk in params['blocks']:
        xn = ln(resid, blk['ln1_w'], blk['ln1_b'])
        q = jnp.einsum('bpd,hde->bphe', xn, blk['W_Q']) + blk['b_Q']
        k = jnp.einsum('bpd,hde->bphe', xn, blk['W_K']) + blk['b_K']
        v = jnp.einsum('bpd,hde->bphe', xn, blk['W_V']) + blk['b_V']
        scores = jnp.einsum('bqhe,bkhe->bhqk', q, k) / math.sqrt(D_HEAD)
        scores = jnp.where(mask, IGNORE, scores)
        pattern = jax.nn.softmax(scores, axis=-1)
        z = jnp.einsum('bkhe,bhqk->bqhe', v, pattern)
        attn_out = jnp.einsum('bqhe,hed->bqd', z, blk['W_O']) + blk['b_O']
        resid_mid = resid + attn_out
        xn2 = ln(resid_mid, blk['ln2_w'], blk['ln2_b'])
        pre = xn2 @ blk['W_in'] + blk['b_in']
        post = 0.5 * pre * (1.0 + jnp.tanh(
            math.sqrt(2.0 / math.pi) * (pre + 0.044715 * pre ** 3)))
        resid = resid_mid + post @ blk['W_out'] + blk['b_out']
    xnf = ln(resid, params['ln_f_w'], params['ln_f_b'])
    return xnf @ params['W_U'] + params['b_U']


# ------------------------------ main ---------------------------------------------
if __name__ == "__main__":
    key = jax.random.PRNGKey(0)
    pkey, tkey = jax.random.split(key)
    params = init_params(pkey)
    flat = prepare_params(params)          # hoisted: weight flatten/stack happens once

    batch, seq = 2, 8
    tokens = jax.random.randint(tkey, (batch, seq), 0, D_VOCAB, dtype=jnp.int32)

    logits = demo_transformer_forward(tokens, params['W_E'], params['W_pos'], flat)
    jax.block_until_ready(logits)

    assert logits.shape == (batch, seq, D_VOCAB)
    ref = reference_forward(tokens, params)
    assert bool(jnp.allclose(logits, ref, atol=5e-3, rtol=5e-3))

    print("KERNEL_OK")
</pallas_src>

<mosaic_0001>
module attributes {stable_mosaic.version = 11 : i64} {
  func.func @fused_forward_kernel(%arg0: memref<2x8x32xf32, #tpu.memory_space<vmem>>, %arg1: memref<2x1x32xf32, #tpu.memory_space<vmem>>, %arg2: memref<2x1x32xf32, #tpu.memory_space<vmem>>, %arg3: memref<2x32x32xf32, #tpu.memory_space<vmem>>, %arg4: memref<2x1x32xf32, #tpu.memory_space<vmem>>, %arg5: memref<2x32x32xf32, #tpu.memory_space<vmem>>, %arg6: memref<2x1x32xf32, #tpu.memory_space<vmem>>, %arg7: memref<2x32x32xf32, #tpu.memory_space<vmem>>, %arg8: memref<2x1x32xf32, #tpu.memory_space<vmem>>, %arg9: memref<2x32x32xf32, #tpu.memory_space<vmem>>, %arg10: memref<2x1x32xf32, #tpu.memory_space<vmem>>, %arg11: memref<2x1x32xf32, #tpu.memory_space<vmem>>, %arg12: memref<2x1x32xf32, #tpu.memory_space<vmem>>, %arg13: memref<2x32x128xf32, #tpu.memory_space<vmem>>, %arg14: memref<2x1x128xf32, #tpu.memory_space<vmem>>, %arg15: memref<2x128x32xf32, #tpu.memory_space<vmem>>, %arg16: memref<2x1x32xf32, #tpu.memory_space<vmem>>, %arg17: memref<1x32xf32, #tpu.memory_space<vmem>>, %arg18: memref<1x32xf32, #tpu.memory_space<vmem>>, %arg19: memref<32x128xf32, #tpu.memory_space<vmem>>, %arg20: memref<1x128xf32, #tpu.memory_space<vmem>>, %arg21: memref<2x8x128xf32, #tpu.memory_space<vmem>>) attributes {dimension_semantics = [], scalar_prefetch = 0 : i64, scratch_operands = 0 : i64, tpu.core_type = #tpu.core_type<tc>} {
    %c0 = arith.constant 0 : index
    %c0_0 = arith.constant 0 : index
    %c0_1 = arith.constant 0 : index
    %0 = vector.load %arg0[%c0, %c0_0, %c0_1] : memref<2x8x32xf32, #tpu.memory_space<vmem>>, vector<2x8x32xf32>
    %1 = tpu.iota {dimensions = array<i32: 0>} : vector<8x8xi32>
    %2 = tpu.iota {dimensions = array<i32: 1>} : vector<8x8xi32>
    %3 = arith.cmpi sgt, %2, %1 : vector<8x8xi32>
    %c0_2 = arith.constant 0 : index
    %c0_3 = arith.constant 0 : index
    %c0_4 = arith.constant 0 : index
    %4 = vector.load %arg1[%c0_2, %c0_3, %c0_4] : memref<2x1x32xf32, #tpu.memory_space<vmem>>, vector<1x1x32xf32>
    %5 = vector.shape_cast %4 : vector<1x1x32xf32> to vector<1x32xf32>
    %c0_5 = arith.constant 0 : index
    %c0_6 = arith.constant 0 : index
    %c0_7 = arith.constant 0 : index
    %6 = vector.load %arg2[%c0_5, %c0_6, %c0_7] : memref<2x1x32xf32, #tpu.memory_space<vmem>>, vector<1x1x32xf32>
    %7 = vector.shape_cast %6 : vector<1x1x32xf32> to vector<1x32xf32>
    %cst = arith.constant dense<0.000000e+00> : vector<2x8xf32>
    %8 = vector.multi_reduction <add>, %0, %cst [2] : vector<2x8x32xf32> to vector<2x8xf32>
    %9 = vector.shape_cast %8 : vector<2x8xf32> to vector<2x8x1xf32>
    %cst_8 = arith.constant 3.200000e+01 : f32
    %10 = vector.broadcast %cst_8 : f32 to vector<2x8x1xf32>
    %11 = arith.divf %9, %10 : vector<2x8x1xf32>
    %12 = vector.broadcast %11 : vector<2x8x1xf32> to vector<2x8x32xf32>
    %13 = arith.subf %0, %12 : vector<2x8x32xf32>
    %14 = arith.mulf %13, %13 : vector<2x8x32xf32>
    %cst_9 = arith.constant dense<0.000000e+00> : vector<2x8xf32>
    %15 = vector.multi_reduction <add>, %14, %cst_9 [2] : vector<2x8x32xf32> to vector<2x8xf32>
    %16 = vector.shape_cast %15 : vector<2x8xf32> to vector<2x8x1xf32>
    %cst_10 = arith.constant 3.200000e+01 : f32
    %17 = vector.broadcast %cst_10 : f32 to vector<2x8x1xf32>
    %18 = arith.divf %16, %17 : vector<2x8x1xf32>
    %cst_11 = arith.constant 9.99999974E-6 : f32
    %19 = vector.broadcast %cst_11 : f32 to vector<2x8x1xf32>
    %20 = arith.addf %18, %19 : vector<2x8x1xf32>
    %21 = math.rsqrt %20 : vector<2x8x1xf32>
    %22 = vector.broadcast %11 : vector<2x8x1xf32> to vector<2x8x32xf32>
    %23 = arith.subf %0, %22 : vector<2x8x32xf32>
    %24 = vector.broadcast %21 : vector<2x8x1xf32> to vector<2x8x32xf32>
    %25 = arith.mulf %23, %24 : vector<2x8x32xf32>
    %26 = vector.shape_cast %5 : vector<1x32xf32> to vector<1x1x32xf32>
    %27 = vector.broadcast %26 : vector<1x1x32xf32> to vector<2x8x32xf32>
    %28 = arith.mulf %25, %27 : vector<2x8x32xf32>
    %29 = vector.shape_cast %7 : vector<1x32xf32> to vector<1x1x32xf32>
    %30 = vector.broadcast %29 : vector<1x1x32xf32> to vector<2x8x32xf32>
    %31 = arith.addf %28, %30 : vector<2x8x32xf32>
    %32 = vector.shape_cast %31 : vector<2x8x32xf32> to vector<16x32xf32>
    %c0_12 = arith.constant 0 : index
    %c0_13 = arith.constant 0 : index
    %c0_14 = arith.constant 0 : index
    %33 = vector.load %arg3[%c0_12, %c0_13, %c0_14] : memref<2x32x32xf32, #tpu.memory_space<vmem>>, vector<1x32x32xf32>
    %34 = vector.shape_cast %33 : vector<1x32x32xf32> to vector<32x32xf32>
    %cst_15 = arith.constant dense<0.000000e+00> : vector<16x32xf32>
    %35 = tpu.matmul %32, %34, %cst_15 {dimension_numbers = #tpu.dot_dimension_numbers<[1], [0], [0], [1], [0, 0, 1, 1], [], []>} : vector<16x32xf32>, vector<32x32xf32>, vector<16x32xf32> -> vector<16x32xf32>
    %c0_16 = arith.constant 0 : index
    %c0_17 = arith.constant 0 : index
    %c0_18 = arith.constant 0 : index
    %36 = vector.load %arg4[%c0_16, %c0_17, %c0_18] : memref<2x1x32xf32, #tpu.memory_space<vmem>>, vector<1x1x32xf32>
    %37 = vector.shape_cast %36 : vector<1x1x32xf32> to vector<1x32xf32>
    %38 = vector.broadcast %37 : vector<1x32xf32> to vector<16x32xf32>
    %39 = arith.addf %35, %38 : vector<16x32xf32>
    %c0_19 = arith.constant 0 : index
    %c0_20 = arith.constant 0 : index
    %c0_21 = arith.constant 0 : index
    %40 = vector.load %arg5[%c0_19, %c0_20, %c0_21] : memref<2x32x32xf32, #tpu.memory_space<vmem>>, vector<1x32x32xf32>
    %41 = vector.shape_cast %40 : vector<1x32x32xf32> to vector<32x32xf32>
    %cst_22 = arith.constant dense<0.000000e+00> : vector<16x32xf32>
    %42 = tpu.matmul %32, %41, %cst_22 {dimension_numbers = #tpu.dot_dimension_numbers<[1], [0], [0], [1], [0, 0, 1, 1], [], []>} : vector<16x32xf32>, vector<32x32xf32>, vector<16x32xf32> -> vector<16x32xf32>
    %c0_23 = arith.constant 0 : index
    %c0_24 = arith.constant 0 : index
    %c0_25 = arith.constant 0 : index
    %43 = vector.load %arg6[%c0_23, %c0_24, %c0_25] : memref<2x1x32xf32, #tpu.memory_space<vmem>>, vector<1x1x32xf32>
    %44 = vector.shape_cast %43 : vector<1x1x32xf32> to vector<1x32xf32>
    %45 = vector.broadcast %44 : vector<1x32xf32> to vector<16x32xf32>
    %46 = arith.addf %42, %45 : vector<16x32xf32>
    %c0_26 = arith.constant 0 : index
    %c0_27 = arith.constant 0 : index
    %c0_28 = arith.constant 0 : index
    %47 = vector.load %arg7[%c0_26, %c0_27, %c0_28] : memref<2x32x32xf32, #tpu.memory_space<vmem>>, vector<1x32x32xf32>
    %48 = vector.shape_cast %47 : vector<1x32x32xf32> to vector<32x32xf32>
    %cst_29 = arith.constant dense<0.000000e+00> : vector<16x32xf32>
    %49 = tpu.matmul %32, %48, %cst_29 {dimension_numbers = #tpu.dot_dimension_numbers<[1], [0], [0], [1], [0, 0, 1, 1], [], []>} : vector<16x32xf32>, vector<32x32xf32>, vector<16x32xf32> -> vector<16x32xf32>
    %c0_30 = arith.constant 0 : index
    %c0_31 = arith.constant 0 : index
    %c0_32 = arith.constant 0 : index
    %50 = vector.load %arg8[%c0_30, %c0_31, %c0_32] : memref<2x1x32xf32, #tpu.memory_space<vmem>>, vector<1x1x32xf32>
    %51 = vector.shape_cast %50 : vector<1x1x32xf32> to vector<1x32xf32>
    %52 = vector.broadcast %51 : vector<1x32xf32> to vector<16x32xf32>
    %53 = arith.addf %49, %52 : vector<16x32xf32>
    %54 = vector.shape_cast %39 : vector<16x32xf32> to vector<2x8x32xf32>
    %55 = vector.extract_strided_slice %54 {offsets = [0, 0, 0], sizes = [2, 8, 8], strides = [1, 1, 1]} : vector<2x8x32xf32> to vector<2x8x8xf32>
    %56 = vector.extract_strided_slice %54 {offsets = [0, 0, 8], sizes = [2, 8, 8], strides = [1, 1, 1]} : vector<2x8x32xf32> to vector<2x8x8xf32>
    %57 = vector.extract_strided_slice %54 {offsets = [0, 0, 16], sizes = [2, 8, 8], strides = [1, 1, 1]} : vector<2x8x32xf32> to vector<2x8x8xf32>
    %58 = vector.extract_strided_slice %54 {offsets = [0, 0, 24], sizes = [2, 8, 8], strides = [1, 1, 1]} : vector<2x8x32xf32> to vector<2x8x8xf32>
    %59 = tpu.concatenate %55, %56, %57, %58 in 0 : vector<2x8x8xf32>, vector<2x8x8xf32>, vector<2x8x8xf32>, vector<2x8x8xf32> -> vector<8x8x8xf32>
    %60 = vector.shape_cast %46 : vector<16x32xf32> to vector<2x8x32xf32>
    %61 = vector.extract_strided_slice %60 {offsets = [0, 0, 0], sizes = [2, 8, 8], strides = [1, 1, 1]} : vector<2x8x32xf32> to vector<2x8x8xf32>
    %62 = vector.extract_strided_slice %60 {offsets = [0, 0, 8], sizes = [2, 8, 8], strides = [1, 1, 1]} : vector<2x8x32xf32> to vector<2x8x8xf32>
    %63 = vector.extract_strided_slice %60 {offsets = [0, 0, 16], sizes = [2, 8, 8], strides = [1, 1, 1]} : vector<2x8x32xf32> to vector<2x8x8xf32>
    %64 = vector.extract_strided_slice %60 {offsets = [0, 0, 24], sizes = [2, 8, 8], strides = [1, 1, 1]} : vector<2x8x32xf32> to vector<2x8x8xf32>
    %65 = tpu.concatenate %61, %62, %63, %64 in 0 : vector<2x8x8xf32>, vector<2x8x8xf32>, vector<2x8x8xf32>, vector<2x8x8xf32> -> vector<8x8x8xf32>
    %66 = vector.shape_cast %53 : vector<16x32xf32> to vector<2x8x32xf32>
    %67 = vector.extract_strided_slice %66 {offsets = [0, 0, 0], sizes = [2, 8, 8], strides = [1, 1, 1]} : vector<2x8x32xf32> to vector<2x8x8xf32>
    %68 = vector.extract_strided_slice %66 {offsets = [0, 0, 8], sizes = [2, 8, 8], strides = [1, 1, 1]} : vector<2x8x32xf32> to vector<2x8x8xf32>
    %69 = vector.extract_strided_slice %66 {offsets = [0, 0, 16], sizes = [2, 8, 8], strides = [1, 1, 1]} : vector<2x8x32xf32> to vector<2x8x8xf32>
    %70 = vector.extract_strided_slice %66 {offsets = [0, 0, 24], sizes = [2, 8, 8], strides = [1, 1, 1]} : vector<2x8x32xf32> to vector<2x8x8xf32>
    %71 = tpu.concatenate %67, %68, %69, %70 in 0 : vector<2x8x8xf32>, vector<2x8x8xf32>, vector<2x8x8xf32>, vector<2x8x8xf32> -> vector<8x8x8xf32>
    "tpu.trace_start"() <{level = 10 : i32, message = "bqd,bkd->bqk"}> : () -> ()
    %cst_33 = arith.constant dense<0.000000e+00> : vector<8x8x8xf32>
    %72 = tpu.matmul %59, %65, %cst_33 {dimension_numbers = #tpu.dot_dimension_numbers<[2], [2], [1], [1], [0, 0, 0, 1, 1, 1], [0], [0]>} : vector<8x8x8xf32>, vector<8x8x8xf32>, vector<8x8x8xf32> -> vector<8x8x8xf32>
    "tpu.trace_stop"() : () -> ()
    %cst_34 = arith.constant 0.353553385 : f32
    %73 = vector.broadcast %cst_34 : f32 to vector<8x8x8xf32>
    %74 = arith.mulf %72, %73 : vector<8x8x8xf32>
    %75 = vector.shape_cast %3 : vector<8x8xi1> to vector<1x8x8xi1>
    %cst_35 = arith.constant -1.000000e+05 : f32
    %76 = vector.shape_cast %75 : vector<1x8x8xi1> to vector<1x8x8xi1>
    %77 = vector.broadcast %76 : vector<1x8x8xi1> to vector<8x8x8xi1>
    %78 = vector.broadcast %cst_35 : f32 to vector<8x8x8xf32>
    %79 = arith.select %77, %78, %74 : vector<8x8x8xi1>, vector<8x8x8xf32>
    %cst_36 = arith.constant dense<0xFF800000> : vector<8x8xf32>
    %80 = vector.multi_reduction <maximumf>, %79, %cst_36 [2] : vector<8x8x8xf32> to vector<8x8xf32>
    %81 = vector.shape_cast %80 : vector<8x8xf32> to vector<8x8x1xf32>
    %82 = vector.broadcast %81 : vector<8x8x1xf32> to vector<8x8x8xf32>
    %83 = arith.subf %79, %82 : vector<8x8x8xf32>
    %84 = math.exp %83 : vector<8x8x8xf32>
    %cst_37 = arith.constant dense<0.000000e+00> : vector<8x8xf32>
    %85 = vector.multi_reduction <add>, %84, %cst_37 [2] : vector<8x8x8xf32> to vector<8x8xf32>
    %86 = vector.shape_cast %85 : vector<8x8xf32> to vector<8x8x1xf32>
    %87 = tpu.reciprocal %86 {approx = true} : vector<8x8x1xf32> -> vector<8x8x1xf32>
    %88 = vector.broadcast %87 : vector<8x8x1xf32> to vector<8x8x8xf32>
    %89 = arith.mulf %84, %88 : vector<8x8x8xf32>
    "tpu.trace_start"() <{level = 10 : i32, message = "bqk,bkd->bqd"}> : () -> ()
    %cst_38 = arith.constant dense<0.000000e+00> : vector<8x8x8xf32>
    %90 = tpu.matmul %89, %71, %cst_38 {dimension_numbers = #tpu.dot_dimension_numbers<[2], [1], [1], [2], [0, 0, 0, 1, 1, 2], [0], [0]>} : vector<8x8x8xf32>, vector<8x8x8xf32>, vector<8x8x8xf32> -> vector<8x8x8xf32>
    "tpu.trace_stop"() : () -> ()
    %91 = vector.extract_strided_slice %90 {offsets = [0, 0, 0], sizes = [2, 8, 8], strides = [1, 1, 1]} : vector<8x8x8xf32> to vector<2x8x8xf32>
    %92 = vector.shape_cast %91 : vector<2x8x8xf32> to vector<16x8xf32>
    %93 = vector.extract_strided_slice %90 {offsets = [2, 0, 0], sizes = [2, 8, 8], strides = [1, 1, 1]} : vector<8x8x8xf32> to vector<2x8x8xf32>
    %94 = vector.shape_cast %93 : vector<2x8x8xf32> to vector<16x8xf32>
    %95 = vector.extract_strided_slice %90 {offsets = [4, 0, 0], sizes = [2, 8, 8], strides = [1, 1, 1]} : vector<8x8x8xf32> to vector<2x8x8xf32>
    %96 = vector.shape_cast %95 : vector<2x8x8xf32> to vector<16x8xf32>
    %97 = vector.extract_strided_slice %90 {offsets = [6, 0, 0], sizes = [2, 8, 8], strides = [1, 1, 1]} : vector<8x8x8xf32> to vector<2x8x8xf32>
    %98 = vector.shape_cast %97 : vector<2x8x8xf32> to vector<16x8xf32>
    %99 = tpu.concatenate %92, %94, %96, %98 in 1 : vector<16x8xf32>, vector<16x8xf32>, vector<16x8xf32>, vector<16x8xf32> -> vector<16x32xf32>
    %c0_39 = arith.constant 0 : index
    %c0_40 = arith.constant 0 : index
    %c0_41 = arith.constant 0 : index
    %100 = vector.load %arg9[%c0_39, %c0_40, %c0_41] : memref<2x32x32xf32, #tpu.memory_space<vmem>>, vector<1x32x32xf32>
    %101 = vector.shape_cast %100 : vector<1x32x32xf32> to vector<32x32xf32>
    %cst_42 = arith.constant dense<0.000000e+00> : vector<16x32xf32>
    %102 = tpu.matmul %99, %101, %cst_42 {dimension_numbers = #tpu.dot_dimension_numbers<[1], [0], [0], [1], [0, 0, 1, 1], [], []>} : vector<16x32xf32>, vector<32x32xf32>, vector<16x32xf32> -> vector<16x32xf32>
    %c0_43 = arith.constant 0 : index
    %c0_44 = arith.constant 0 : index
    %c0_45 = arith.constant 0 : index
    %103 = vector.load %arg10[%c0_43, %c0_44, %c0_45] : memref<2x1x32xf32, #tpu.memory_space<vmem>>, vector<1x1x32xf32>
    %104 = vector.shape_cast %103 : vector<1x1x32xf32> to vector<1x32xf32>
    %105 = vector.broadcast %104 : vector<1x32xf32> to vector<16x32xf32>
    %106 = arith.addf %102, %105 : vector<16x32xf32>
    %107 = vector.shape_cast %106 : vector<16x32xf32> to vector<2x8x32xf32>
    %108 = arith.addf %0, %107 : vector<2x8x32xf32>
    %c0_46 = arith.constant 0 : index
    %c0_47 = arith.constant 0 : index
    %c0_48 = arith.constant 0 : index
    %109 = vector.load %arg11[%c0_46, %c0_47, %c0_48] : memref<2x1x32xf32, #tpu.memory_space<vmem>>, vector<1x1x32xf32>
    %110 = vector.shape_cast %109 : vector<1x1x32xf32> to vector<1x32xf32>
    %c0_49 = arith.constant 0 : index
    %c0_50 = arith.constant 0 : index
    %c0_51 = arith.constant 0 : index
    %111 = vector.load %arg12[%c0_49, %c0_50, %c0_51] : memref<2x1x32xf32, #tpu.memory_space<vmem>>, vector<1x1x32xf32>
    %112 = vector.shape_cast %111 : vector<1x1x32xf32> to vector<1x32xf32>
    %cst_52 = arith.constant dense<0.000000e+00> : vector<2x8xf32>
    %113 = vector.multi_reduction <add>, %108, %cst_52 [2] : vector<2x8x32xf32> to vector<2x8xf32>
    %114 = vector.shape_cast %113 : vector<2x8xf32> to vector<2x8x1xf32>
    %cst_53 = arith.constant 3.200000e+01 : f32
    %115 = vector.broadcast %cst_53 : f32 to vector<2x8x1xf32>
    %116 = arith.divf %114, %115 : vector<2x8x1xf32>
    %117 = vector.broadcast %116 : vector<2x8x1xf32> to vector<2x8x32xf32>
    %118 = arith.subf %108, %117 : vector<2x8x32xf32>
    %119 = arith.mulf %118, %118 : vector<2x8x32xf32>
    %cst_54 = arith.constant dense<0.000000e+00> : vector<2x8xf32>
    %120 = vector.multi_reduction <add>, %119, %cst_54 [2] : vector<2x8x32xf32> to vector<2x8xf32>
    %121 = vector.shape_cast %120 : vector<2x8xf32> to vector<2x8x1xf32>
    %cst_55 = arith.constant 3.200000e+01 : f32
    %122 = vector.broadcast %cst_55 : f32 to vector<2x8x1xf32>
    %123 = arith.divf %121, %122 : vector<2x8x1xf32>
    %cst_56 = arith.constant 9.99999974E-6 : f32
    %124 = vector.broadcast %cst_56 : f32 to vector<2x8x1xf32>
    %125 = arith.addf %123, %124 : vector<2x8x1xf32>
    %126 = math.rsqrt %125 : vector<2x8x1xf32>
    %127 = vector.broadcast %116 : vector<2x8x1xf32> to vector<2x8x32xf32>
    %128 = arith.subf %108, %127 : vector<2x8x32xf32>
    %129 = vector.broadcast %126 : vector<2x8x1xf32> to vector<2x8x32xf32>
    %130 = arith.mulf %128, %129 : vector<2x8x32xf32>
    %131 = vector.shape_cast %110 : vector<1x32xf32> to vector<1x1x32xf32>
    %132 = vector.broadcast %131 : vector<1x1x32xf32> to vector<2x8x32xf32>
    %133 = arith.mulf %130, %132 : vector<2x8x32xf32>
    %134 = vector.shape_cast %112 : vector<1x32xf32> to vector<1x1x32xf32>
    %135 = vector.broadcast %134 : vector<1x1x32xf32> to vector<2x8x32xf32>
    %136 = arith.addf %133, %135 : vector<2x8x32xf32>
    %137 = vector.shape_cast %136 : vector<2x8x32xf32> to vector<16x32xf32>
    %c0_57 = arith.constant 0 : index
    %c0_58 = arith.constant 0 : index
    %c0_59 = arith.constant 0 : index
    %138 = vector.load %arg13[%c0_57, %c0_58, %c0_59] : memref<2x32x128xf32, #tpu.memory_space<vmem>>, vector<1x32x128xf32>
    %139 = vector.shape_cast %138 : vector<1x32x128xf32> to vector<32x128xf32>
    %cst_60 = arith.constant dense<0.000000e+00> : vector<16x128xf32>
    %140 = tpu.matmul %137, %139, %cst_60 {dimension_numbers = #tpu.dot_dimension_numbers<[1], [0], [0], [1], [0, 0, 1, 1], [], []>} : vector<16x32xf32>, vector<32x128xf32>, vector<16x128xf32> -> vector<16x128xf32>
    %c0_61 = arith.constant 0 : index
    %c0_62 = arith.constant 0 : index
    %c0_63 = arith.constant 0 : index
    %141 = vector.load %arg14[%c0_61, %c0_62, %c0_63] : memref<2x1x128xf32, #tpu.memory_space<vmem>>, vector<1x1x128xf32>
    %142 = vector.shape_cast %141 : vector<1x1x128xf32> to vector<1x128xf32>
    %143 = vector.broadcast %142 : vector<1x128xf32> to vector<16x128xf32>
    %144 = arith.addf %140, %143 : vector<16x128xf32>
    %cst_64 = arith.constant 5.000000e-01 : f32
    %145 = vector.broadcast %cst_64 : f32 to vector<16x128xf32>
    %146 = arith.mulf %145, %144 : vector<16x128xf32>
    %147 = arith.mulf %144, %144 : vector<16x128xf32>
    %148 = arith.mulf %144, %147 : vector<16x128xf32>
    %cst_65 = arith.constant 4.471500e-02 : f32
    %149 = vector.broadcast %cst_65 : f32 to vector<16x128xf32>
    %150 = arith.mulf %149, %148 : vector<16x128xf32>
    %151 = arith.addf %144, %150 : vector<16x128xf32>
    %cst_66 = arith.constant 0.797884583 : f32
    %152 = vector.broadcast %cst_66 : f32 to vector<16x128xf32>
    %153 = arith.mulf %152, %151 : vector<16x128xf32>
    %154 = math.tanh %153 : vector<16x128xf32>
    %cst_67 = arith.constant 1.000000e+00 : f32
    %155 = vector.broadcast %cst_67 : f32 to vector<16x128xf32>
    %156 = arith.addf %155, %154 : vector<16x128xf32>
    %157 = arith.mulf %146, %156 : vector<16x128xf32>
    %c0_68 = arith.constant 0 : index
    %c0_69 = arith.constant 0 : index
    %c0_70 = arith.constant 0 : index
    %158 = vector.load %arg15[%c0_68, %c0_69, %c0_70] : memref<2x128x32xf32, #tpu.memory_space<vmem>>, vector<1x128x32xf32>
    %159 = vector.shape_cast %158 : vector<1x128x32xf32> to vector<128x32xf32>
    %cst_71 = arith.constant dense<0.000000e+00> : vector<16x32xf32>
    %160 = tpu.matmul %157, %159, %cst_71 {dimension_numbers = #tpu.dot_dimension_numbers<[1], [0], [0], [1], [0, 0, 1, 1], [], []>} : vector<16x128xf32>, vector<128x32xf32>, vector<16x32xf32> -> vector<16x32xf32>
    %c0_72 = arith.constant 0 : index
    %c0_73 = arith.constant 0 : index
    %c0_74 = arith.constant 0 : index
    %161 = vector.load %arg16[%c0_72, %c0_73, %c0_74] : memref<2x1x32xf32, #tpu.memory_space<vmem>>, vector<1x1x32xf32>
    %162 = vector.shape_cast %161 : vector<1x1x32xf32> to vector<1x32xf32>
    %163 = vector.broadcast %162 : vector<1x32xf32> to vector<16x32xf32>
    %164 = arith.addf %160, %163 : vector<16x32xf32>
    %165 = vector.shape_cast %164 : vector<16x32xf32> to vector<2x8x32xf32>
    %166 = arith.addf %108, %165 : vector<2x8x32xf32>
    %c1 = arith.constant 1 : index
    %c0_75 = arith.constant 0 : index
    %c0_76 = arith.constant 0 : index
    %167 = vector.load %arg1[%c1, %c0_75, %c0_76] : memref<2x1x32xf32, #tpu.memory_space<vmem>>, vector<1x1x32xf32>
    %168 = vector.shape_cast %167 : vector<1x1x32xf32> to vector<1x32xf32>
    %c1_77 = arith.constant 1 : index
    %c0_78 = arith.constant 0 : index
    %c0_79 = arith.constant 0 : index
    %169 = vector.load %arg2[%c1_77, %c0_78, %c0_79] : memref<2x1x32xf32, #tpu.memory_space<vmem>>, vector<1x1x32xf32>
    %170 = vector.shape_cast %169 : vector<1x1x32xf32> to vector<1x32xf32>
    %cst_80 = arith.constant dense<0.000000e+00> : vector<2x8xf32>
    %171 = vector.multi_reduction <add>, %166, %cst_80 [2] : vector<2x8x32xf32> to vector<2x8xf32>
    %172 = vector.shape_cast %171 : vector<2x8xf32> to vector<2x8x1xf32>
    %cst_81 = arith.constant 3.200000e+01 : f32
    %173 = vector.broadcast %cst_81 : f32 to vector<2x8x1xf32>
    %174 = arith.divf %172, %173 : vector<2x8x1xf32>
    %175 = vector.broadcast %174 : vector<2x8x1xf32> to vector<2x8x32xf32>
    %176 = arith.subf %166, %175 : vector<2x8x32xf32>
    %177 = arith.mulf %176, %176 : vector<2x8x32xf32>
    %cst_82 = arith.constant dense<0.000000e+00> : vector<2x8xf32>
    %178 = vector.multi_reduction <add>, %177, %cst_82 [2] : vector<2x8x32xf32> to vector<2x8xf32>
    %179 = vector.shape_cast %178 : vector<2x8xf32> to vector<2x8x1xf32>
    %cst_83 = arith.constant 3.200000e+01 : f32
    %180 = vector.broadcast %cst_83 : f32 to vector<2x8x1xf32>
    %181 = arith.divf %179, %180 : vector<2x8x1xf32>
    %cst_84 = arith.constant 9.99999974E-6 : f32
    %182 = vector.broadcast %cst_84 : f32 to vector<2x8x1xf32>
    %183 = arith.addf %181, %182 : vector<2x8x1xf32>
    %184 = math.rsqrt %183 : vector<2x8x1xf32>
    %185 = vector.broadcast %174 : vector<2x8x1xf32> to vector<2x8x32xf32>
    %186 = arith.subf %166, %185 : vector<2x8x32xf32>
    %187 = vector.broadcast %184 : vector<2x8x1xf32> to vector<2x8x32xf32>
    %188 = arith.mulf %186, %187 : vector<2x8x32xf32>
    %189 = vector.shape_cast %168 : vector<1x32xf32> to vector<1x1x32xf32>
    %190 = vector.broadcast %189 : vector<1x1x32xf32> to vector<2x8x32xf32>
    %191 = arith.mulf %188, %190 : vector<2x8x32xf32>
    %192 = vector.shape_cast %170 : vector<1x32xf32> to vector<1x1x32xf32>
    %193 = vector.broadcast %192 : vector<1x1x32xf32> to vector<2x8x32xf32>
    %194 = arith.addf %191, %193 : vector<2x8x32xf32>
    %195 = vector.shape_cast %194 : vector<2x8x32xf32> to vector<16x32xf32>
    %c1_85 = arith.constant 1 : index
    %c0_86 = arith.constant 0 : index
    %c0_87 = arith.constant 0 : index
    %196 = vector.load %arg3[%c1_85, %c0_86, %c0_87] : memref<2x32x32xf32, #tpu.memory_space<vmem>>, vector<1x32x32xf32>
    %197 = vector.shape_cast %196 : vector<1x32x32xf32> to vector<32x32xf32>
    %cst_88 = arith.constant dense<0.000000e+00> : vector<16x32xf32>
    %198 = tpu.matmul %195, %197, %cst_88 {dimension_numbers = #tpu.dot_dimension_numbers<[1], [0], [0], [1], [0, 0, 1, 1], [], []>} : vector<16x32xf32>, vector<32x32xf32>, vector<16x32xf32> -> vector<16x32xf32>
    %c1_89 = arith.constant 1 : index
    %c0_90 = arith.constant 0 : index
    %c0_91 = arith.constant 0 : index
    %199 = vector.load %arg4[%c1_89, %c0_90, %c0_91] : memref<2x1x32xf32, #tpu.memory_space<vmem>>, vector<1x1x32xf32>
    %200 = vector.shape_cast %199 : vector<1x1x32xf32> to vector<1x32xf32>
    %201 = vector.broadcast %200 : vector<1x32xf32> to vector<16x32xf32>
    %202 = arith.addf %198, %201 : vector<16x32xf32>
    %c1_92 = arith.constant 1 : index
    %c0_93 = arith.constant 0 : index
    %c0_94 = arith.constant 0 : index
    %203 = vector.load %arg5[%c1_92, %c0_93, %c0_94] : memref<2x32x32xf32, #tpu.memory_space<vmem>>, vector<1x32x32xf32>
    %204 = vector.shape_cast %203 : vector<1x32x32xf32> to vector<32x32xf32>
    %cst_95 = arith.constant dense<0.000000e+00> : vector<16x32xf32>
    %205 = tpu.matmul %195, %204, %cst_95 {dimension_numbers = #tpu.dot_dimension_numbers<[1], [0], [0], [1], [0, 0, 1, 1], [], []>} : vector<16x32xf32>, vector<32x32xf32>, vector<16x32xf32> -> vector<16x32xf32>
    %c1_96 = arith.constant 1 : index
    %c0_97 = arith.constant 0 : index
    %c0_98 = arith.constant 0 : index
    %206 = vector.load %arg6[%c1_96, %c0_97, %c0_98] : memref<2x1x32xf32, #tpu.memory_space<vmem>>, vector<1x1x32xf32>
    %207 = vector.shape_cast %206 : vector<1x1x32xf32> to vector<1x32xf32>
    %208 = vector.broadcast %207 : vector<1x32xf32> to vector<16x32xf32>
    %209 = arith.addf %205, %208 : vector<16x32xf32>
    %c1_99 = arith.constant 1 : index
    %c0_100 = arith.constant 0 : index
    %c0_101 = arith.constant 0 : index
    %210 = vector.load %arg7[%c1_99, %c0_100, %c0_101] : memref<2x32x32xf32, #tpu.memory_space<vmem>>, vector<1x32x32xf32>
    %211 = vector.shape_cast %210 : vector<1x32x32xf32> to vector<32x32xf32>
    %cst_102 = arith.constant dense<0.000000e+00> : vector<16x32xf32>
    %212 = tpu.matmul %195, %211, %cst_102 {dimension_numbers = #tpu.dot_dimension_numbers<[1], [0], [0], [1], [0, 0, 1, 1], [], []>} : vector<16x32xf32>, vector<32x32xf32>, vector<16x32xf32> -> vector<16x32xf32>
    %c1_103 = arith.constant 1 : index
    %c0_104 = arith.constant 0 : index
    %c0_105 = arith.constant 0 : index
    %213 = vector.load %arg8[%c1_103, %c0_104, %c0_105] : memref<2x1x32xf32, #tpu.memory_space<vmem>>, vector<1x1x32xf32>
    %214 = vector.shape_cast %213 : vector<1x1x32xf32> to vector<1x32xf32>
    %215 = vector.broadcast %214 : vector<1x32xf32> to vector<16x32xf32>
    %216 = arith.addf %212, %215 : vector<16x32xf32>
    %217 = vector.shape_cast %202 : vector<16x32xf32> to vector<2x8x32xf32>
    %218 = vector.extract_strided_slice %217 {offsets = [0, 0, 0], sizes = [2, 8, 8], strides = [1, 1, 1]} : vector<2x8x32xf32> to vector<2x8x8xf32>
    %219 = vector.extract_strided_slice %217 {offsets = [0, 0, 8], sizes = [2, 8, 8], strides = [1, 1, 1]} : vector<2x8x32xf32> to vector<2x8x8xf32>
    %220 = vector.extract_strided_slice %217 {offsets = [0, 0, 16], sizes = [2, 8, 8], strides = [1, 1, 1]} : vector<2x8x32xf32> to vector<2x8x8xf32>
    %221 = vector.extract_strided_slice %217 {offsets = [0, 0, 24], sizes = [2, 8, 8], strides = [1, 1, 1]} : vector<2x8x32xf32> to vector<2x8x8xf32>
    %222 = tpu.concatenate %218, %219, %220, %221 in 0 : vector<2x8x8xf32>, vector<2x8x8xf32>, vector<2x8x8xf32>, vector<2x8x8xf32> -> vector<8x8x8xf32>
    %223 = vector.shape_cast %209 : vector<16x32xf32> to vector<2x8x32xf32>
    %224 = vector.extract_strided_slice %223 {offsets = [0, 0, 0], sizes = [2, 8, 8], strides = [1, 1, 1]} : vector<2x8x32xf32> to vector<2x8x8xf32>
    %225 = vector.extract_strided_slice %223 {offsets = [0, 0, 8], sizes = [2, 8, 8], strides = [1, 1, 1]} : vector<2x8x32xf32> to vector<2x8x8xf32>
    %226 = vector.extract_strided_slice %223 {offsets = [0, 0, 16], sizes = [2, 8, 8], strides = [1, 1, 1]} : vector<2x8x32xf32> to vector<2x8x8xf32>
    %227 = vector.extract_strided_slice %223 {offsets = [0, 0, 24], sizes = [2, 8, 8], strides = [1, 1, 1]} : vector<2x8x32xf32> to vector<2x8x8xf32>
    %228 = tpu.concatenate %224, %225, %226, %227 in 0 : vector<2x8x8xf32>, vector<2x8x8xf32>, vector<2x8x8xf32>, vector<2x8x8xf32> -> vector<8x8x8xf32>
    %229 = vector.shape_cast %216 : vector<16x32xf32> to vector<2x8x32xf32>
    %230 = vector.extract_strided_slice %229 {offsets = [0, 0, 0], sizes = [2, 8, 8], strides = [1, 1, 1]} : vector<2x8x32xf32> to vector<2x8x8xf32>
    %231 = vector.extract_strided_slice %229 {offsets = [0, 0, 8], sizes = [2, 8, 8], strides = [1, 1, 1]} : vector<2x8x32xf32> to vector<2x8x8xf32>
    %232 = vector.extract_strided_slice %229 {offsets = [0, 0, 16], sizes = [2, 8, 8], strides = [1, 1, 1]} : vector<2x8x32xf32> to vector<2x8x8xf32>
    %233 = vector.extract_strided_slice %229 {offsets = [0, 0, 24], sizes = [2, 8, 8], strides = [1, 1, 1]} : vector<2x8x32xf32> to vector<2x8x8xf32>
    %234 = tpu.concatenate %230, %231, %232, %233 in 0 : vector<2x8x8xf32>, vector<2x8x8xf32>, vector<2x8x8xf32>, vector<2x8x8xf32> -> vector<8x8x8xf32>
    "tpu.trace_start"() <{level = 10 : i32, message = "bqd,bkd->bqk"}> : () -> ()
    %cst_106 = arith.constant dense<0.000000e+00> : vector<8x8x8xf32>
    %235 = tpu.matmul %222, %228, %cst_106 {dimension_numbers = #tpu.dot_dimension_numbers<[2], [2], [1], [1], [0, 0, 0, 1, 1, 1], [0], [0]>} : vector<8x8x8xf32>, vector<8x8x8xf32>, vector<8x8x8xf32> -> vector<8x8x8xf32>
    "tpu.trace_stop"() : () -> ()
    %cst_107 = arith.constant 0.353553385 : f32
    %236 = vector.broadcast %cst_107 : f32 to vector<8x8x8xf32>
    %237 = arith.mulf %235, %236 : vector<8x8x8xf32>
    %238 = vector.shape_cast %3 : vector<8x8xi1> to vector<1x8x8xi1>
    %cst_108 = arith.constant -1.000000e+05 : f32
    %239 = vector.shape_cast %238 : vector<1x8x8xi1> to vector<1x8x8xi1>
    %240 = vector.broadcast %239 : vector<1x8x8xi1> to vector<8x8x8xi1>
    %241 = vector.broadcast %cst_108 : f32 to vector<8x8x8xf32>
    %242 = arith.select %240, %241, %237 : vector<8x8x8xi1>, vector<8x8x8xf32>
    %cst_109 = arith.constant dense<0xFF800000> : vector<8x8xf32>
    %243 = vector.multi_reduction <maximumf>, %242, %cst_109 [2] : vector<8x8x8xf32> to vector<8x8xf32>
    %244 = vector.shape_cast %243 : vector<8x8xf32> to vector<8x8x1xf32>
    %245 = vector.broadcast %244 : vector<8x8x1xf32> to vector<8x8x8xf32>
    %246 = arith.subf %242, %245 : vector<8x8x8xf32>
    %247 = math.exp %246 : vector<8x8x8xf32>
    %cst_110 = arith.constant dense<0.000000e+00> : vector<8x8xf32>
    %248 = vector.multi_reduction <add>, %247, %cst_110 [2] : vector<8x8x8xf32> to vector<8x8xf32>
    %249 = vector.shape_cast %248 : vector<8x8xf32> to vector<8x8x1xf32>
    %250 = tpu.reciprocal %249 {approx = true} : vector<8x8x1xf32> -> vector<8x8x1xf32>
    %251 = vector.broadcast %250 : vector<8x8x1xf32> to vector<8x8x8xf32>
    %252 = arith.mulf %247, %251 : vector<8x8x8xf32>
    "tpu.trace_start"() <{level = 10 : i32, message = "bqk,bkd->bqd"}> : () -> ()
    %cst_111 = arith.constant dense<0.000000e+00> : vector<8x8x8xf32>
    %253 = tpu.matmul %252, %234, %cst_111 {dimension_numbers = #tpu.dot_dimension_numbers<[2], [1], [1], [2], [0, 0, 0, 1, 1, 2], [0], [0]>} : vector<8x8x8xf32>, vector<8x8x8xf32>, vector<8x8x8xf32> -> vector<8x8x8xf32>
    "tpu.trace_stop"() : () -> ()
    %254 = vector.extract_strided_slice %253 {offsets = [0, 0, 0], sizes = [2, 8, 8], strides = [1, 1, 1]} : vector<8x8x8xf32> to vector<2x8x8xf32>
    %255 = vector.shape_cast %254 : vector<2x8x8xf32> to vector<16x8xf32>
    %256 = vector.extract_strided_slice %253 {offsets = [2, 0, 0], sizes = [2, 8, 8], strides = [1, 1, 1]} : vector<8x8x8xf32> to vector<2x8x8xf32>
    %257 = vector.shape_cast %256 : vector<2x8x8xf32> to vector<16x8xf32>
    %258 = vector.extract_strided_slice %253 {offsets = [4, 0, 0], sizes = [2, 8, 8], strides = [1, 1, 1]} : vector<8x8x8xf32> to vector<2x8x8xf32>
    %259 = vector.shape_cast %258 : vector<2x8x8xf32> to vector<16x8xf32>
    %260 = vector.extract_strided_slice %253 {offsets = [6, 0, 0], sizes = [2, 8, 8], strides = [1, 1, 1]} : vector<8x8x8xf32> to vector<2x8x8xf32>
    %261 = vector.shape_cast %260 : vector<2x8x8xf32> to vector<16x8xf32>
    %262 = tpu.concatenate %255, %257, %259, %261 in 1 : vector<16x8xf32>, vector<16x8xf32>, vector<16x8xf32>, vector<16x8xf32> -> vector<16x32xf32>
    %c1_112 = arith.constant 1 : index
    %c0_113 = arith.constant 0 : index
    %c0_114 = arith.constant 0 : index
    %263 = vector.load %arg9[%c1_112, %c0_113, %c0_114] : memref<2x32x32xf32, #tpu.memory_space<vmem>>, vector<1x32x32xf32>
    %264 = vector.shape_cast %263 : vector<1x32x32xf32> to vector<32x32xf32>
    %cst_115 = arith.constant dense<0.000000e+00> : vector<16x32xf32>
    %265 = tpu.matmul %262, %264, %cst_115 {dimension_numbers = #tpu.dot_dimension_numbers<[1], [0], [0], [1], [0, 0, 1, 1], [], []>} : vector<16x32xf32>, vector<32x32xf32>, vector<16x32xf32> -> vector<16x32xf32>
    %c1_116 = arith.constant 1 : index
    %c0_117 = arith.constant 0 : index
    %c0_118 = arith.constant 0 : index
    %266 = vector.load %arg10[%c1_116, %c0_117, %c0_118] : memref<2x1x32xf32, #tpu.memory_space<vmem>>, vector<1x1x32xf32>
    %267 = vector.shape_cast %266 : vector<1x1x32xf32> to vector<1x32xf32>
    %268 = vector.broadcast %267 : vector<1x32xf32> to vector<16x32xf32>
    %269 = arith.addf %265, %268 : vector<16x32xf32>
    %270 = vector.shape_cast %269 : vector<16x32xf32> to vector<2x8x32xf32>
    %271 = arith.addf %166, %270 : vector<2x8x32xf32>
    %c1_119 = arith.constant 1 : index
    %c0_120 = arith.constant 0 : index
    %c0_121 = arith.constant 0 : index
    %272 = vector.load %arg11[%c1_119, %c0_120, %c0_121] : memref<2x1x32xf32, #tpu.memory_space<vmem>>, vector<1x1x32xf32>
    %273 = vector.shape_cast %272 : vector<1x1x32xf32> to vector<1x32xf32>
    %c1_122 = arith.constant 1 : index
    %c0_123 = arith.constant 0 : index
    %c0_124 = arith.constant 0 : index
    %274 = vector.load %arg12[%c1_122, %c0_123, %c0_124] : memref<2x1x32xf32, #tpu.memory_space<vmem>>, vector<1x1x32xf32>
    %275 = vector.shape_cast %274 : vector<1x1x32xf32> to vector<1x32xf32>
    %cst_125 = arith.constant dense<0.000000e+00> : vector<2x8xf32>
    %276 = vector.multi_reduction <add>, %271, %cst_125 [2] : vector<2x8x32xf32> to vector<2x8xf32>
    %277 = vector.shape_cast %276 : vector<2x8xf32> to vector<2x8x1xf32>
    %cst_126 = arith.constant 3.200000e+01 : f32
    %278 = vector.broadcast %cst_126 : f32 to vector<2x8x1xf32>
    %279 = arith.divf %277, %278 : vector<2x8x1xf32>
    %280 = vector.broadcast %279 : vector<2x8x1xf32> to vector<2x8x32xf32>
    %281 = arith.subf %271, %280 : vector<2x8x32xf32>
    %282 = arith.mulf %281, %281 : vector<2x8x32xf32>
    %cst_127 = arith.constant dense<0.000000e+00> : vector<2x8xf32>
    %283 = vector.multi_reduction <add>, %282, %cst_127 [2] : vector<2x8x32xf32> to vector<2x8xf32>
    %284 = vector.shape_cast %283 : vector<2x8xf32> to vector<2x8x1xf32>
    %cst_128 = arith.constant 3.200000e+01 : f32
    %285 = vector.broadcast %cst_128 : f32 to vector<2x8x1xf32>
    %286 = arith.divf %284, %285 : vector<2x8x1xf32>
    %cst_129 = arith.constant 9.99999974E-6 : f32
    %287 = vector.broadcast %cst_129 : f32 to vector<2x8x1xf32>
    %288 = arith.addf %286, %287 : vector<2x8x1xf32>
    %289 = math.rsqrt %288 : vector<2x8x1xf32>
    %290 = vector.broadcast %279 : vector<2x8x1xf32> to vector<2x8x32xf32>
    %291 = arith.subf %271, %290 : vector<2x8x32xf32>
    %292 = vector.broadcast %289 : vector<2x8x1xf32> to vector<2x8x32xf32>
    %293 = arith.mulf %291, %292 : vector<2x8x32xf32>
    %294 = vector.shape_cast %273 : vector<1x32xf32> to vector<1x1x32xf32>
    %295 = vector.broadcast %294 : vector<1x1x32xf32> to vector<2x8x32xf32>
    %296 = arith.mulf %293, %295 : vector<2x8x32xf32>
    %297 = vector.shape_cast %275 : vector<1x32xf32> to vector<1x1x32xf32>
    %298 = vector.broadcast %297 : vector<1x1x32xf32> to vector<2x8x32xf32>
    %299 = arith.addf %296, %298 : vector<2x8x32xf32>
    %300 = vector.shape_cast %299 : vector<2x8x32xf32> to vector<16x32xf32>
    %c1_130 = arith.constant 1 : index
    %c0_131 = arith.constant 0 : index
    %c0_132 = arith.constant 0 : index
    %301 = vector.load %arg13[%c1_130, %c0_131, %c0_132] : memref<2x32x128xf32, #tpu.memory_space<vmem>>, vector<1x32x128xf32>
    %302 = vector.shape_cast %301 : vector<1x32x128xf32> to vector<32x128xf32>
    %cst_133 = arith.constant dense<0.000000e+00> : vector<16x128xf32>
    %303 = tpu.matmul %300, %302, %cst_133 {dimension_numbers = #tpu.dot_dimension_numbers<[1], [0], [0], [1], [0, 0, 1, 1], [], []>} : vector<16x32xf32>, vector<32x128xf32>, vector<16x128xf32> -> vector<16x128xf32>
    %c1_134 = arith.constant 1 : index
    %c0_135 = arith.constant 0 : index
    %c0_136 = arith.constant 0 : index
    %304 = vector.load %arg14[%c1_134, %c0_135, %c0_136] : memref<2x1x128xf32, #tpu.memory_space<vmem>>, vector<1x1x128xf32>
    %305 = vector.shape_cast %304 : vector<1x1x128xf32> to vector<1x128xf32>
    %306 = vector.broadcast %305 : vector<1x128xf32> to vector<16x128xf32>
    %307 = arith.addf %303, %306 : vector<16x128xf32>
    %cst_137 = arith.constant 5.000000e-01 : f32
    %308 = vector.broadcast %cst_137 : f32 to vector<16x128xf32>
    %309 = arith.mulf %308, %307 : vector<16x128xf32>
    %310 = arith.mulf %307, %307 : vector<16x128xf32>
    %311 = arith.mulf %307, %310 : vector<16x128xf32>
    %cst_138 = arith.constant 4.471500e-02 : f32
    %312 = vector.broadcast %cst_138 : f32 to vector<16x128xf32>
    %313 = arith.mulf %312, %311 : vector<16x128xf32>
    %314 = arith.addf %307, %313 : vector<16x128xf32>
    %cst_139 = arith.constant 0.797884583 : f32
    %315 = vector.broadcast %cst_139 : f32 to vector<16x128xf32>
    %316 = arith.mulf %315, %314 : vector<16x128xf32>
    %317 = math.tanh %316 : vector<16x128xf32>
    %cst_140 = arith.constant 1.000000e+00 : f32
    %318 = vector.broadcast %cst_140 : f32 to vector<16x128xf32>
    %319 = arith.addf %318, %317 : vector<16x128xf32>
    %320 = arith.mulf %309, %319 : vector<16x128xf32>
    %c1_141 = arith.constant 1 : index
    %c0_142 = arith.constant 0 : index
    %c0_143 = arith.constant 0 : index
    %321 = vector.load %arg15[%c1_141, %c0_142, %c0_143] : memref<2x128x32xf32, #tpu.memory_space<vmem>>, vector<1x128x32xf32>
    %322 = vector.shape_cast %321 : vector<1x128x32xf32> to vector<128x32xf32>
    %cst_144 = arith.constant dense<0.000000e+00> : vector<16x32xf32>
    %323 = tpu.matmul %320, %322, %cst_144 {dimension_numbers = #tpu.dot_dimension_numbers<[1], [0], [0], [1], [0, 0, 1, 1], [], []>} : vector<16x128xf32>, vector<128x32xf32>, vector<16x32xf32> -> vector<16x32xf32>
    %c1_145 = arith.constant 1 : index
    %c0_146 = arith.constant 0 : index
    %c0_147 = arith.constant 0 : index
    %324 = vector.load %arg16[%c1_145, %c0_146, %c0_147] : memref<2x1x32xf32, #tpu.memory_space<vmem>>, vector<1x1x32xf32>
    %325 = vector.shape_cast %324 : vector<1x1x32xf32> to vector<1x32xf32>
    %326 = vector.broadcast %325 : vector<1x32xf32> to vector<16x32xf32>
    %327 = arith.addf %323, %326 : vector<16x32xf32>
    %328 = vector.shape_cast %327 : vector<16x32xf32> to vector<2x8x32xf32>
    %329 = arith.addf %271, %328 : vector<2x8x32xf32>
    %c0_148 = arith.constant 0 : index
    %c0_149 = arith.constant 0 : index
    %330 = vector.load %arg17[%c0_148, %c0_149] : memref<1x32xf32, #tpu.memory_space<vmem>>, vector<1x32xf32>
    %c0_150 = arith.constant 0 : index
    %c0_151 = arith.constant 0 : index
    %331 = vector.load %arg18[%c0_150, %c0_151] : memref<1x32xf32, #tpu.memory_space<vmem>>, vector<1x32xf32>
    %cst_152 = arith.constant dense<0.000000e+00> : vector<2x8xf32>
    %332 = vector.multi_reduction <add>, %329, %cst_152 [2] : vector<2x8x32xf32> to vector<2x8xf32>
    %333 = vector.shape_cast %332 : vector<2x8xf32> to vector<2x8x1xf32>
    %cst_153 = arith.constant 3.200000e+01 : f32
    %334 = vector.broadcast %cst_153 : f32 to vector<2x8x1xf32>
    %335 = arith.divf %333, %334 : vector<2x8x1xf32>
    %336 = vector.broadcast %335 : vector<2x8x1xf32> to vector<2x8x32xf32>
    %337 = arith.subf %329, %336 : vector<2x8x32xf32>
    %338 = arith.mulf %337, %337 : vector<2x8x32xf32>
    %cst_154 = arith.constant dense<0.000000e+00> : vector<2x8xf32>
    %339 = vector.multi_reduction <add>, %338, %cst_154 [2] : vector<2x8x32xf32> to vector<2x8xf32>
    %340 = vector.shape_cast %339 : vector<2x8xf32> to vector<2x8x1xf32>
    %cst_155 = arith.constant 3.200000e+01 : f32
    %341 = vector.broadcast %cst_155 : f32 to vector<2x8x1xf32>
    %342 = arith.divf %340, %341 : vector<2x8x1xf32>
    %cst_156 = arith.constant 9.99999974E-6 : f32
    %343 = vector.broadcast %cst_156 : f32 to vector<2x8x1xf32>
    %344 = arith.addf %342, %343 : vector<2x8x1xf32>
    %345 = math.rsqrt %344 : vector<2x8x1xf32>
    %346 = vector.broadcast %335 : vector<2x8x1xf32> to vector<2x8x32xf32>
    %347 = arith.subf %329, %346 : vector<2x8x32xf32>
    %348 = vector.broadcast %345 : vector<2x8x1xf32> to vector<2x8x32xf32>
    %349 = arith.mulf %347, %348 : vector<2x8x32xf32>
    %350 = vector.shape_cast %330 : vector<1x32xf32> to vector<1x1x32xf32>
    %351 = vector.broadcast %350 : vector<1x1x32xf32> to vector<2x8x32xf32>
    %352 = arith.mulf %349, %351 : vector<2x8x32xf32>
    %353 = vector.shape_cast %331 : vector<1x32xf32> to vector<1x1x32xf32>
    %354 = vector.broadcast %353 : vector<1x1x32xf32> to vector<2x8x32xf32>
    %355 = arith.addf %352, %354 : vector<2x8x32xf32>
    %356 = vector.shape_cast %355 : vector<2x8x32xf32> to vector<16x32xf32>
    %c0_157 = arith.constant 0 : index
    %c0_158 = arith.constant 0 : index
    %357 = vector.load %arg19[%c0_157, %c0_158] : memref<32x128xf32, #tpu.memory_space<vmem>>, vector<32x128xf32>
    %cst_159 = arith.constant dense<0.000000e+00> : vector<16x128xf32>
    %358 = tpu.matmul %356, %357, %cst_159 {dimension_numbers = #tpu.dot_dimension_numbers<[1], [0], [0], [1], [0, 0, 1, 1], [], []>} : vector<16x32xf32>, vector<32x128xf32>, vector<16x128xf32> -> vector<16x128xf32>
    %c0_160 = arith.constant 0 : index
    %c0_161 = arith.constant 0 : index
    %359 = vector.load %arg20[%c0_160, %c0_161] : memref<1x128xf32, #tpu.memory_space<vmem>>, vector<1x128xf32>
    %360 = vector.broadcast %359 : vector<1x128xf32> to vector<16x128xf32>
    %361 = arith.addf %358, %360 : vector<16x128xf32>
    %362 = vector.shape_cast %361 : vector<16x128xf32> to vector<2x8x128xf32>
    %c0_162 = arith.constant 0 : index
    %c0_163 = arith.constant 0 : index
    %c0_164 = arith.constant 0 : index
    %363 = vector.load %arg21[%c0_162, %c0_163, %c0_164] : memref<2x8x128xf32, #tpu.memory_space<vmem>>, vector<2x8x128xf32>
    tpu.vector_store %arg21[%c0_162, %c0_163, %c0_164], %362 {strides = array<i32>} : memref<2x8x128xf32, #tpu.memory_space<vmem>>, vector<2x8x128xf32>,
    return
  }
}

</mosaic_0001>

<llo_original>
// kernel: demo_transformer_forward.1
$region0: #{demo_transformer_forward.1}
  #allocation0 [shape = 'u32[]', space=smem, size = 0x4, offset = 0x4, fixed_abs, tag = 'smem constant byte address 0x4 - core index']
  #allocation1 [shape = 'u32[144,128]{1,0:T(1,128)}', space=vmem, size = 0x12000, scoped, tag = 'internal scratch']
  %s0 = inlined_call_operand.vmem [shape: f32[2,8,32], index: 0, kind: input, shape index: {}]
  %s1 = inlined_call_operand.vmem [shape: f32[2,1,32], index: 1, kind: input, shape index: {}]
  %s2 = inlined_call_operand.vmem [shape: f32[2,1,32], index: 2, kind: input, shape index: {}]
  %s3 = inlined_call_operand.vmem [shape: f32[2,32,32], index: 3, kind: input, shape index: {}]
  %s4 = inlined_call_operand.vmem [shape: f32[2,1,32], index: 4, kind: input, shape index: {}]
  %s5 = inlined_call_operand.vmem [shape: f32[2,32,32], index: 5, kind: input, shape index: {}]
  %s6 = inlined_call_operand.vmem [shape: f32[2,1,32], index: 6, kind: input, shape index: {}]
  %s7 = inlined_call_operand.vmem [shape: f32[2,32,32], index: 7, kind: input, shape index: {}]
  %s8 = inlined_call_operand.vmem [shape: f32[2,1,32], index: 8, kind: input, shape index: {}]
  %s9 = inlined_call_operand.vmem [shape: f32[2,32,32], index: 9, kind: input, shape index: {}]
  %s10 = inlined_call_operand.vmem [shape: f32[2,1,32], index: 10, kind: input, shape index: {}]
  %s11 = inlined_call_operand.vmem [shape: f32[2,1,32], index: 11, kind: input, shape index: {}]
  %s12 = inlined_call_operand.vmem [shape: f32[2,1,32], index: 12, kind: input, shape index: {}]
  %s13 = inlined_call_operand.vmem [shape: f32[2,32,128], index: 13, kind: input, shape index: {}]
  %s14 = inlined_call_operand.vmem [shape: f32[2,1,128], index: 14, kind: input, shape index: {}]
  %s15 = inlined_call_operand.vmem [shape: f32[2,128,32], index: 15, kind: input, shape index: {}]
  %s16 = inlined_call_operand.vmem [shape: f32[2,1,32], index: 16, kind: input, shape index: {}]
  %s17 = inlined_call_operand.vmem [shape: f32[1,32], index: 17, kind: input, shape index: {}]
  %s18 = inlined_call_operand.vmem [shape: f32[1,32], index: 18, kind: input, shape index: {}]
  %s19 = inlined_call_operand.vmem [shape: f32[32,128], index: 19, kind: input, shape index: {}]
  %s20 = inlined_call_operand.vmem [shape: f32[1,128], index: 20, kind: input, shape index: {}]
  %s21 = inlined_call_operand.hbm [shape: f32[2,8,128], index: 21, kind: output, shape index: {}]
  %s22 = sld [smem:[#allocation0]]
  $region94: #{demo_transformer_forward.1} parent=0
    _
  %s24 = ssub.s32 1, %s22
  %s25 = scalar_select 0, %s24, %s22
  $region1: #{demo_transformer_forward.1} parent=0
    #allocation2 [shape = 'u8[8192]{0}', space=vmem, size = 0x2000, scoped, tag = 'output window, operand 0, single buffered']
    #allocation3 [shape = 's32[1]{0}', space=sflag, size = 0x4, scoped, tag = 'scoped memory for demo_transformer_forward.1']
    %26 = vsyncpa [#allocation3], 0
    // Predicated region
    $region2: #{demo_transformer_forward.1} parent=1 // pred_check
      _
    $region3: #{demo_transformer_forward.1} parent=1 // pred_check_branch
      %28 = sbr.rel (0) target = $region5
    $region4: #{demo_transformer_forward.1} parent=1 // pred_region
      _
    $region5: #{demo_transformer_forward.1} parent=1 // pred_fallthru
      _
    // Predicated region
    $region6: #{demo_transformer_forward.1} parent=1 // pred_check
      _
    $region7: #{demo_transformer_forward.1} parent=1 // pred_check_branch
      %30 = sbr.rel (0) target = $region9
    $region8: #{demo_transformer_forward.1} parent=1 // pred_region
      _
    $region9: #{demo_transformer_forward.1} parent=1 // pred_fallthru
      _
    // Predicated region
    $region10: #{demo_transformer_forward.1} parent=1 // pred_check
      _
    $region11: #{demo_transformer_forward.1} parent=1 // pred_check_branch
      %32 = sbr.rel (0) target = $region13
    $region12: #{demo_transformer_forward.1} parent=1 // pred_region
      _
    $region13: #{demo_transformer_forward.1} parent=1 // pred_fallthru
      _
    // Predicated region
    $region14: #{demo_transformer_forward.1} parent=1 // pred_check
      _
    $region15: #{demo_transformer_forward.1} parent=1 // pred_check_branch
      %34 = sbr.rel (0) target = $region17
    $region16: #{demo_transformer_forward.1} parent=1 // pred_region
      _
    $region17: #{demo_transformer_forward.1} parent=1 // pred_fallthru
      _
    // Predicated region
    $region18: #{demo_transformer_forward.1} parent=1 // pred_check
      _
    $region19: #{demo_transformer_forward.1} parent=1 // pred_check_branch
      %36 = sbr.rel (0) target = $region21
    $region20: #{demo_transformer_forward.1} parent=1 // pred_region
      _
    $region21: #{demo_transformer_forward.1} parent=1 // pred_fallthru
      _
    // Predicated region
    $region22: #{demo_transformer_forward.1} parent=1 // pred_check
      _
    $region23: #{demo_transformer_forward.1} parent=1 // pred_check_branch
      %38 = sbr.rel (0) target = $region25
    $region24: #{demo_transformer_forward.1} parent=1 // pred_region
      _
    $region25: #{demo_transformer_forward.1} parent=1 // pred_fallthru
      _
    // Predicated region
    $region26: #{demo_transformer_forward.1} parent=1 // pred_check
      _
    $region27: #{demo_transformer_forward.1} parent=1 // pred_check_branch
      %40 = sbr.rel (0) target = $region29
    $region28: #{demo_transformer_forward.1} parent=1 // pred_region
      _
    $region29: #{demo_transformer_forward.1} parent=1 // pred_fallthru
      _
    // Predicated region
    $region30: #{demo_transformer_forward.1} parent=1 // pred_check
      _
    $region31: #{demo_transformer_forward.1} parent=1 // pred_check_branch
      %42 = sbr.rel (0) target = $region33
    $region32: #{demo_transformer_forward.1} parent=1 // pred_region
      _
    $region33: #{demo_transformer_forward.1} parent=1 // pred_fallthru
      _
    // Predicated region
    $region34: #{demo_transformer_forward.1} parent=1 // pred_check
      _
    $region35: #{demo_transformer_forward.1} parent=1 // pred_check_branch
      %44 = sbr.rel (0) target = $region37
    $region36: #{demo_transformer_forward.1} parent=1 // pred_region
      _
    $region37: #{demo_transformer_forward.1} parent=1 // pred_fallthru
      _
    // Predicated region
    $region38: #{demo_transformer_forward.1} parent=1 // pred_check
      _
    $region39: #{demo_transformer_forward.1} parent=1 // pred_check_branch
      %46 = sbr.rel (0) target = $region41
    $region40: #{demo_transformer_forward.1} parent=1 // pred_region
      _
    $region41: #{demo_transformer_forward.1} parent=1 // pred_fallthru
      _
    // Predicated region
    $region42: #{demo_transformer_forward.1} parent=1 // pred_check
      _
    $region43: #{demo_transformer_forward.1} parent=1 // pred_check_branch
      %48 = sbr.rel (0) target = $region45
    $region44: #{demo_transformer_forward.1} parent=1 // pred_region
      _
    $region45: #{demo_transformer_forward.1} parent=1 // pred_fallthru
      _
    // Predicated region
    $region46: #{demo_transformer_forward.1} parent=1 // pred_check
      _
    $region47: #{demo_transformer_forward.1} parent=1 // pred_check_branch
      %50 = sbr.rel (0) target = $region49
    $region48: #{demo_transformer_forward.1} parent=1 // pred_region
      _
    $region49: #{demo_transformer_forward.1} parent=1 // pred_fallthru
      _
    // Predicated region
    $region50: #{demo_transformer_forward.1} parent=1 // pred_check
      _
    $region51: #{demo_transformer_forward.1} parent=1 // pred_check_branch
      %52 = sbr.rel (0) target = $region53
    $region52: #{demo_transformer_forward.1} parent=1 // pred_region
      _
    $region53: #{demo_transformer_forward.1} parent=1 // pred_fallthru
      _
    // Predicated region
    $region54: #{demo_transformer_forward.1} parent=1 // pred_check
      _
    $region55: #{demo_transformer_forward.1} parent=1 // pred_check_branch
      %54 = sbr.rel (0) target = $region57
    $region56: #{demo_transformer_forward.1} parent=1 // pred_region
      _
    $region57: #{demo_transformer_forward.1} parent=1 // pred_fallthru
      _
    // Predicated region
    $region58: #{demo_transformer_forward.1} parent=1 // pred_check
      _
    $region59: #{demo_transformer_forward.1} parent=1 // pred_check_branch
      %56 = sbr.rel (0) target = $region61
    $region60: #{demo_transformer_forward.1} parent=1 // pred_region
      _
    $region61: #{demo_transformer_forward.1} parent=1 // pred_fallthru
      _
    // Predicated region
    $region62: #{demo_transformer_forward.1} parent=1 // pred_check
      _
    $region63: #{demo_transformer_forward.1} parent=1 // pred_check_branch
      %58 = sbr.rel (0) target = $region65
    $region64: #{demo_transformer_forward.1} parent=1 // pred_region
      _
    $region65: #{demo_transformer_forward.1} parent=1 // pred_fallthru
      _
    // Predicated region
    $region66: #{demo_transformer_forward.1} parent=1 // pred_check
      _
    $region67: #{demo_transformer_forward.1} parent=1 // pred_check_branch
      %60 = sbr.rel (0) target = $region69
    $region68: #{demo_transformer_forward.1} parent=1 // pred_region
      _
    $region69: #{demo_transformer_forward.1} parent=1 // pred_fallthru
      _
    // Predicated region
    $region70: #{demo_transformer_forward.1} parent=1 // pred_check
      _
    $region71: #{demo_transformer_forward.1} parent=1 // pred_check_branch
      %62 = sbr.rel (0) target = $region73
    $region72: #{demo_transformer_forward.1} parent=1 // pred_region
      _
    $region73: #{demo_transformer_forward.1} parent=1 // pred_fallthru
      _
    // Predicated region
    $region74: #{demo_transformer_forward.1} parent=1 // pred_check
      _
    $region75: #{demo_transformer_forward.1} parent=1 // pred_check_branch
      %64 = sbr.rel (0) target = $region77
    $region76: #{demo_transformer_forward.1} parent=1 // pred_region
      _
    $region77: #{demo_transformer_forward.1} parent=1 // pred_fallthru
      _
    // Predicated region
    $region78: #{demo_transformer_forward.1} parent=1 // pred_check
      _
    $region79: #{demo_transformer_forward.1} parent=1 // pred_check_branch
      %66 = sbr.rel (0) target = $region81
    $region80: #{demo_transformer_forward.1} parent=1 // pred_region
      _
    $region81: #{demo_transformer_forward.1} parent=1 // pred_fallthru
      _
    // Predicated region
    $region82: #{demo_transformer_forward.1} parent=1 // pred_check
      _
    $region83: #{demo_transformer_forward.1} parent=1 // pred_check_branch
      %68 = sbr.rel (0) target = $region85
    $region84: #{demo_transformer_forward.1} parent=1 // pred_region
      _
    $region85: #{demo_transformer_forward.1} parent=1 // pred_fallthru
      _
    %v69 = vld [vmem:[%s0] sm:$0xff]
    %v70 = vld [vmem:[%s0 + $0x8] sm:$0xff]
    %v71 = vlaneseq
    %v72 = vshrl.u32 %v71, 7
    %v73 = vlaneseq
    %v74 = vand.u32 %v73, 127
    %vm75 = vcmp.gt.s32.totalorder %v74, %v72
    %v76 = vld [vmem:[%s1] sm:$0x1]
    %v77 = vld [vmem:[%s2] sm:$0x1]
    %vm78 = vcmask 261120
    %v79 = vsel %vm78, %v69, 0.0
    %80 = vadd.xlane.f32.xlu0 %v79
    %v81 = vpop.xlane.xlu0 %80
    %v82 = vsel %vm78, %v70, 0.0
    %83 = vadd.xlane.f32.xlu0 %v82
    %v84 = vpop.xlane.xlu0 %83
    %v85 = vrcp.pop 32.0
    %v86 = vmul.f32 %v81, %v85
    %v87 = vmul.f32 %v84, %v85
    %v88 = vsub.f32 %v69, %v86
    %v89 = vsub.f32 %v70, %v87
    %v90 = vmul.f32 %v88, %v88
    %v91 = vmul.f32 %v89, %v89
    %v92 = vsel %vm78, %v90, 0.0
    %93 = vadd.xlane.f32.xlu0 %v92
    %v94 = vpop.xlane.xlu0 %93
    %v95 = vsel %vm78, %v91, 0.0
    %96 = vadd.xlane.f32.xlu0 %v95
    %v97 = vpop.xlane.xlu0 %96
    %v98 = vmul.f32 %v94, %v85
    %v99 = vmul.f32 %v97, %v85
    %v100 = vadd.f32 %v98, 1e-05
    %v101 = vadd.f32 %v99, 1e-05
    %v102 = vrsqrt.pop %v100
    %v103 = vrsqrt.pop %v101
    %v104 = vmul.f32 %v88, %v102
    %v105 = vmul.f32 %v89, %v103
    %v107 = vlaneseq
    %v108 = vshrl.u32 %v107, 7
    %v109 = vsub.s32 0, %v108
    %v110 = vrot.slane %v76, %v109
    %v112 = vmul.f32 %v104, %v110
    %v113 = vmul.f32 %v105, %v110
    %v115 = vlaneseq
    %v116 = vshrl.u32 %v115, 7
    %v117 = vsub.s32 0, %v116
    %v118 = vrot.slane %v77, %v117
    %v120 = vadd.f32 %v112, %v118
    %v121 = vadd.f32 %v113, %v118
    %v122 = vld [vmem:[%s3] sm:$0xff]
    %v123 = vld [vmem:[%s3 + $0x8] sm:$0xff]
    %v124 = vld [vmem:[%s3 + $0x10] sm:$0xff]
    %v125 = vld [vmem:[%s3 + $0x18] sm:$0xff]
    %v126 = vld [vmem:[%s4] sm:$0x1]
    %v128 = vlaneseq
    %v129 = vshrl.u32 %v128, 7
    %v130 = vsub.s32 0, %v129
    %v131 = vrot.slane %v126, %v130
    %v134 = vsel %vm78, %v120, 0
    %v137 = vsel %vm78, %v121, 0
    %139 = vmatprep.subr.mxu0 0.0
    %140 = vmatpush1.msra.mxu0 %v122
    %141 = vmatprep.subr.mxu0 0.0
    %142 = vmatpush1.msra.mxu0 %v123
    %143 = vmatprep.subr.mxu0 0.0
    %144 = vmatpush1.msra.mxu0 %v124
    %145 = vmatprep.subr.mxu0 0.0
    %146 = vmatpush1.msra.mxu0 %v125
    %147 = vmatprep.subr.mxu0 0.0
    %148 = vmatpush1.msra.mxu0 0.0
    %149 = vmatprep.subr.mxu0 0.0
    %150 = vmatpush1.msra.mxu0 0.0
    %151 = vmatprep.subr.mxu0 0.0
    %152 = vmatpush1.msra.mxu0 0.0
    %153 = vmatprep.subr.mxu0 0.0
    %154 = vmatpush1.msra.mxu0 0.0
    %155 = vmatprep.subr.mxu0 0.0
    %156 = vmatpush1.msra.mxu0 0.0
    %157 = vmatprep.subr.mxu0 0.0
    %158 = vmatpush1.msra.mxu0 0.0
    %159 = vmatprep.subr.mxu0 0.0
    %160 = vmatpush1.msra.mxu0 0.0
    %161 = vmatprep.subr.mxu0 0.0
    %162 = vmatpush1.msra.mxu0 0.0
    %163 = vmatprep.subr.mxu0 0.0
    %164 = vmatpush1.msra.mxu0 0.0
    %165 = vmatprep.subr.mxu0 0.0
    %166 = vmatpush1.msra.mxu0 0.0
    %167 = vmatprep.subr.mxu0 0.0
    %168 = vmatpush1.msra.mxu0 0.0
    %169 = vmatprep.subr.mxu0 0.0
    %170 = vmatpush1.msra.mxu0 0.0
    %171 = vmatprep.subr.mxu0 0.0
    %172 = vmatpush1.msra.mxu0 0.0
    %173 = vmatprep.subr.mxu0 0.0
    %174 = vmatpush1.msra.mxu0 0.0
    %175 = vmatprep.subr.mxu0 0.0
    %176 = vmatpush1.msra.mxu0 0.0
    %177 = vmatprep.subr.mxu0 0.0
    %178 = vmatpush1.msra.mxu0 0.0
    %179 = vmatprep.subr.mxu0 0.0
    %180 = vmatpush1.msra.mxu0 0.0
    %181 = vmatprep.subr.mxu0 0.0
    %182 = vmatpush1.msra.mxu0 0.0
    %183 = vmatprep.subr.mxu0 0.0
    %184 = vmatpush1.msra.mxu0 0.0
    %185 = vmatprep.subr.mxu0 0.0
    %186 = vmatpush1.msra.mxu0 0.0
    %187 = vmatprep.subr.mxu0 0.0
    %188 = vmatpush1.msra.mxu0 0.0
    %189 = vmatprep.subr.mxu0 0.0
    %190 = vmatpush1.msra.mxu0 0.0
    %191 = vmatprep.subr.mxu0 0.0
    %192 = vmatpush1.msra.mxu0 0.0
    %193 = vmatprep.subr.mxu0 0.0
    %194 = vmatpush1.msra.mxu0 0.0
    %195 = vmatprep.subr.mxu0 0.0
    %196 = vmatpush1.msra.mxu0 0.0
    %197 = vmatprep.subr.mxu0 0.0
    %198 = vmatpush1.msra.mxu0 0.0
    %199 = vmatprep.subr.mxu0 0.0
    %200 = vmatpush1.msra.mxu0 0.0
    %201 = vmatprep.subr.mxu0 0.0
    %202 = vmatpush1.msra.mxu0 0.0
    %203 = vmatprep.mubr.f32.mxu0 0.0
    %204 = vmatmul.mubr.f32.gmra.mrb[0].mxu0 %v134
    %v205 = vpop.f32.mrb[0].mxu0
    %v206 = vadd.f32 %v131, %v205
    %v207 = vpop.f32.mrb[0].mxu0
    %208 = vmatprep.mubr.f32.mxu0 0.0
    %209 = vmatmul.mubr.f32.gmra.mrb[0].mxu0 %v137
    %v210 = vpop.f32.mrb[0].mxu0
    %v211 = vadd.f32 %v131, %v210
    %v212 = vpop.f32.mrb[0].mxu0
    %213 = vdwg.mxu0
    %v214 = vld [vmem:[%s5] sm:$0xff]
    %v215 = vld [vmem:[%s5 + $0x8] sm:$0xff]
    %v216 = vld [vmem:[%s5 + $0x10] sm:$0xff]
    %v217 = vld [vmem:[%s5 + $0x18] sm:$0xff]
    %v218 = vld [vmem:[%s6] sm:$0x1]
    %v220 = vlaneseq
    %v221 = vshrl.u32 %v220, 7
    %v222 = vsub.s32 0, %v221
    %v223 = vrot.slane %v218, %v222
    %225 = vmatprep.subr.mxu0 0.0
    %226 = vmatpush1.msra.mxu0 %v214
    %227 = vmatprep.subr.mxu0 0.0
    %228 = vmatpush1.msra.mxu0 %v215
    %229 = vmatprep.subr.mxu0 0.0
    %230 = vmatpush1.msra.mxu0 %v216
    %231 = vmatprep.subr.mxu0 0.0
    %232 = vmatpush1.msra.mxu0 %v217
    %233 = vmatprep.subr.mxu0 0.0
    %234 = vmatpush1.msra.mxu0 0.0
    %235 = vmatprep.subr.mxu0 0.0
    %236 = vmatpush1.msra.mxu0 0.0
    %237 = vmatprep.subr.mxu0 0.0
    %238 = vmatpush1.msra.mxu0 0.0
    %239 = vmatprep.subr.mxu0 0.0
    %240 = vmatpush1.msra.mxu0 0.0
    %241 = vmatprep.subr.mxu0 0.0
    %242 = vmatpush1.msra.mxu0 0.0
    %243 = vmatprep.subr.mxu0 0.0
    %244 = vmatpush1.msra.mxu0 0.0
    %245 = vmatprep.subr.mxu0 0.0
    %246 = vmatpush1.msra.mxu0 0.0
    %247 = vmatprep.subr.mxu0 0.0
    %248 = vmatpush1.msra.mxu0 0.0
    %249 = vmatprep.subr.mxu0 0.0
    %250 = vmatpush1.msra.mxu0 0.0
    %251 = vmatprep.subr.mxu0 0.0
    %252 = vmatpush1.msra.mxu0 0.0
    %253 = vmatprep.subr.mxu0 0.0
    %254 = vmatpush1.msra.mxu0 0.0
    %255 = vmatprep.subr.mxu0 0.0
    %256 = vmatpush1.msra.mxu0 0.0
    %257 = vmatprep.subr.mxu0 0.0
    %258 = vmatpush1.msra.mxu0 0.0
    %259 = vmatprep.subr.mxu0 0.0
    %260 = vmatpush1.msra.mxu0 0.0
    %261 = vmatprep.subr.mxu0 0.0
    %262 = vmatpush1.msra.mxu0 0.0
    %263 = vmatprep.subr.mxu0 0.0
    %264 = vmatpush1.msra.mxu0 0.0
    %265 = vmatprep.subr.mxu0 0.0
    %266 = vmatpush1.msra.mxu0 0.0
    %267 = vmatprep.subr.mxu0 0.0
    %268 = vmatpush1.msra.mxu0 0.0
    %269 = vmatprep.subr.mxu0 0.0
    %270 = vmatpush1.msra.mxu0 0.0
    %271 = vmatprep.subr.mxu0 0.0
    %272 = vmatpush1.msra.mxu0 0.0
    %273 = vmatprep.subr.mxu0 0.0
    %274 = vmatpush1.msra.mxu0 0.0
    %275 = vmatprep.subr.mxu0 0.0
    %276 = vmatpush1.msra.mxu0 0.0
    %277 = vmatprep.subr.mxu0 0.0
    %278 = vmatpush1.msra.mxu0 0.0
    %279 = vmatprep.subr.mxu0 0.0
    %280 = vmatpush1.msra.mxu0 0.0
    %281 = vmatprep.subr.mxu0 0.0
    %282 = vmatpush1.msra.mxu0 0.0
    %283 = vmatprep.subr.mxu0 0.0
    %284 = vmatpush1.msra.mxu0 0.0
    %285 = vmatprep.subr.mxu0 0.0
    %286 = vmatpush1.msra.mxu0 0.0
    %287 = vmatprep.subr.mxu0 0.0
    %288 = vmatpush1.msra.mxu0 0.0
    %289 = vmatprep.mubr.f32.mxu0 0.0
    %290 = vmatmul.mubr.f32.gmra.mrb[0].mxu0 %v134
    %v291 = vpop.f32.mrb[0].mxu0
    %v292 = vadd.f32 %v223, %v291
    %v293 = vpop.f32.mrb[0].mxu0
    %294 = vmatprep.mubr.f32.mxu0 0.0
    %295 = vmatmul.mubr.f32.gmra.mrb[0].mxu0 %v137
    %v296 = vpop.f32.mrb[0].mxu0
    %v297 = vadd.f32 %v223, %v296
    %v298 = vpop.f32.mrb[0].mxu0
    %299 = vdwg.mxu0
    %v300 = vld [vmem:[%s7] sm:$0xff]
    %v301 = vld [vmem:[%s7 + $0x8] sm:$0xff]
    %v302 = vld [vmem:[%s7 + $0x10] sm:$0xff]
    %v303 = vld [vmem:[%s7 + $0x18] sm:$0xff]
    %v304 = vld [vmem:[%s8] sm:$0x1]
    %v306 = vlaneseq
    %v307 = vshrl.u32 %v306, 7
    %v308 = vsub.s32 0, %v307
    %v309 = vrot.slane %v304, %v308
    %311 = vmatprep.subr.mxu0 0.0
    %312 = vmatpush1.msra.mxu0 %v300
    %313 = vmatprep.subr.mxu0 0.0
    %314 = vmatpush1.msra.mxu0 %v301
    %315 = vmatprep.subr.mxu0 0.0
    %316 = vmatpush1.msra.mxu0 %v302
    %317 = vmatprep.subr.mxu0 0.0
    %318 = vmatpush1.msra.mxu0 %v303
    %319 = vmatprep.subr.mxu0 0.0
    %320 = vmatpush1.msra.mxu0 0.0
    %321 = vmatprep.subr.mxu0 0.0
    %322 = vmatpush1.msra.mxu0 0.0
    %323 = vmatprep.subr.mxu0 0.0
    %324 = vmatpush1.msra.mxu0 0.0
    %325 = vmatprep.subr.mxu0 0.0
    %326 = vmatpush1.msra.mxu0 0.0
    %327 = vmatprep.subr.mxu0 0.0
    %328 = vmatpush1.msra.mxu0 0.0
    %329 = vmatprep.subr.mxu0 0.0
    %330 = vmatpush1.msra.mxu0 0.0
    %331 = vmatprep.subr.mxu0 0.0
    %332 = vmatpush1.msra.mxu0 0.0
    %333 = vmatprep.subr.mxu0 0.0
    %334 = vmatpush1.msra.mxu0 0.0
    %335 = vmatprep.subr.mxu0 0.0
    %336 = vmatpush1.msra.mxu0 0.0
    %337 = vmatprep.subr.mxu0 0.0
    %338 = vmatpush1.msra.mxu0 0.0
    %339 = vmatprep.subr.mxu0 0.0
    %340 = vmatpush1.msra.mxu0 0.0
    %341 = vmatprep.subr.mxu0 0.0
    %342 = vmatpush1.msra.mxu0 0.0
    %343 = vmatprep.subr.mxu0 0.0
    %344 = vmatpush1.msra.mxu0 0.0
    %345 = vmatprep.subr.mxu0 0.0
    %346 = vmatpush1.msra.mxu0 0.0
    %347 = vmatprep.subr.mxu0 0.0
    %348 = vmatpush1.msra.mxu0 0.0
    %349 = vmatprep.subr.mxu0 0.0
    %350 = vmatpush1.msra.mxu0 0.0
    %351 = vmatprep.subr.mxu0 0.0
    %352 = vmatpush1.msra.mxu0 0.0
    %353 = vmatprep.subr.mxu0 0.0
    %354 = vmatpush1.msra.mxu0 0.0
    %355 = vmatprep.subr.mxu0 0.0
    %356 = vmatpush1.msra.mxu0 0.0
    %357 = vmatprep.subr.mxu0 0.0
    %358 = vmatpush1.msra.mxu0 0.0
    %359 = vmatprep.subr.mxu0 0.0
    %360 = vmatpush1.msra.mxu0 0.0
    %361 = vmatprep.subr.mxu0 0.0
    %362 = vmatpush1.msra.mxu0 0.0
    %363 = vmatprep.subr.mxu0 0.0
    %364 = vmatpush1.msra.mxu0 0.0
    %365 = vmatprep.subr.mxu0 0.0
    %366 = vmatpush1.msra.mxu0 0.0
    %367 = vmatprep.subr.mxu0 0.0
    %368 = vmatpush1.msra.mxu0 0.0
    %369 = vmatprep.subr.mxu0 0.0
    %370 = vmatpush1.msra.mxu0 0.0
    %371 = vmatprep.subr.mxu0 0.0
    %372 = vmatpush1.msra.mxu0 0.0
    %373 = vmatprep.subr.mxu0 0.0
    %374 = vmatpush1.msra.mxu0 0.0
    %375 = vmatprep.mubr.f32.mxu0 0.0
    %376 = vmatmul.mubr.f32.gmra.mrb[0].mxu0 %v134
    %v377 = vpop.f32.mrb[0].mxu0
    %v378 = vadd.f32 %v309, %v377
    %v379 = vpop.f32.mrb[0].mxu0
    %380 = vmatprep.mubr.f32.mxu0 0.0
    %381 = vmatmul.mubr.f32.gmra.mrb[0].mxu0 %v137
    %v382 = vpop.f32.mrb[0].mxu0
    %v383 = vadd.f32 %v309, %v382
    %v384 = vpop.f32.mrb[0].mxu0
    %385 = vdwg.mxu0
    %388 = vrot.lane.b32.xlu0 %v206, 120
    %v389 = vpop.permute.xlu0 %388
    %390 = vrot.lane.b32.xlu0 %v211, 120
    %v391 = vpop.permute.xlu0 %390
    %392 = vrot.lane.b32.xlu0 %v206, 112
    %v393 = vpop.permute.xlu0 %392
    %394 = vrot.lane.b32.xlu0 %v211, 112
    %v395 = vpop.permute.xlu0 %394
    %396 = vrot.lane.b32.xlu0 %v206, 104
    %v397 = vpop.permute.xlu0 %396
    %398 = vrot.lane.b32.xlu0 %v211, 104
    %v399 = vpop.permute.xlu0 %398
    %402 = vrot.lane.b32.xlu0 %v292, 120
    %v403 = vpop.permute.xlu0 %402
    %404 = vrot.lane.b32.xlu0 %v297, 120
    %v405 = vpop.permute.xlu0 %404
    %406 = vrot.lane.b32.xlu0 %v292, 112
    %v407 = vpop.permute.xlu0 %406
    %408 = vrot.lane.b32.xlu0 %v297, 112
    %v409 = vpop.permute.xlu0 %408
    %410 = vrot.lane.b32.xlu0 %v292, 104
    %v411 = vpop.permute.xlu0 %410
    %412 = vrot.lane.b32.xlu0 %v297, 104
    %v413 = vpop.permute.xlu0 %412
    %416 = vrot.lane.b32.xlu0 %v378, 120
    %v417 = vpop.permute.xlu0 %416
    %418 = vrot.lane.b32.xlu0 %v383, 120
    %v419 = vpop.permute.xlu0 %418
    %422 = vrot.lane.b32.xlu0 %v378, 112
    %v423 = vpop.permute.xlu0 %422
    %424 = vrot.lane.b32.xlu0 %v383, 112
    %v425 = vpop.permute.xlu0 %424
    %428 = vrot.lane.b32.xlu0 %v378, 104
    %v429 = vpop.permute.xlu0 %428
    %430 = vrot.lane.b32.xlu0 %v383, 104
    %v431 = vpop.permute.xlu0 %430
    %vm434 = vcmask 64512
    %v435 = vsel %vm434, %v206, 0
    %v437 = vsel %vm434, %v292, 0
    %439 = vmatprep.subr.mxu0 0.0
    %440 = vmatpush1.xpose.msra.mxu0 %v437
    %441 = vmatprep.subr.mxu0 0.0
    %442 = vmatpush1.xpose.msra.mxu0 0.0
    %443 = vmatprep.subr.mxu0 0.0
    %444 = vmatpush1.xpose.msra.mxu0 0.0
    %445 = vmatprep.subr.mxu0 0.0
    %446 = vmatpush1.xpose.msra.mxu0 0.0
    %447 = vmatprep.subr.mxu0 0.0
    %448 = vmatpush1.xpose.msra.mxu0 0.0
    %449 = vmatprep.subr.mxu0 0.0
    %450 = vmatpush1.xpose.msra.mxu0 0.0
    %451 = vmatprep.subr.mxu0 0.0
    %452 = vmatpush1.xpose.msra.mxu0 0.0
    %453 = vmatprep.subr.mxu0 0.0
    %454 = vmatpush1.xpose.msra.mxu0 0.0
    %455 = vmatprep.subr.mxu0 0.0
    %456 = vmatpush1.xpose.msra.mxu0 0.0
    %457 = vmatprep.subr.mxu0 0.0
    %458 = vmatpush1.xpose.msra.mxu0 0.0
    %459 = vmatprep.subr.mxu0 0.0
    %460 = vmatpush1.xpose.msra.mxu0 0.0
    %461 = vmatprep.subr.mxu0 0.0
    %462 = vmatpush1.xpose.msra.mxu0 0.0
    %463 = vmatprep.subr.mxu0 0.0
    %464 = vmatpush1.xpose.msra.mxu0 0.0
    %465 = vmatprep.subr.mxu0 0.0
    %466 = vmatpush1.xpose.msra.mxu0 0.0
    %467 = vmatprep.subr.mxu0 0.0
    %468 = vmatpush1.xpose.msra.mxu0 0.0
    %469 = vmatprep.subr.mxu0 0.0
    %470 = vmatpush1.xpose.msra.mxu0 0.0
    %471 = vmatprep.subr.mxu0 0.0
    %472 = vmatpush1.xpose.msra.mxu0 0.0
    %473 = vmatprep.subr.mxu0 0.0
    %474 = vmatpush1.xpose.msra.mxu0 0.0
    %475 = vmatprep.subr.mxu0 0.0
    %476 = vmatpush1.xpose.msra.mxu0 0.0
    %477 = vmatprep.subr.mxu0 0.0
    %478 = vmatpush1.xpose.msra.mxu0 0.0
    %479 = vmatprep.subr.mxu0 0.0
    %480 = vmatpush1.xpose.msra.mxu0 0.0
    %481 = vmatprep.subr.mxu0 0.0
    %482 = vmatpush1.xpose.msra.mxu0 0.0
    %483 = vmatprep.subr.mxu0 0.0
    %484 = vmatpush1.xpose.msra.mxu0 0.0
    %485 = vmatprep.subr.mxu0 0.0
    %486 = vmatpush1.xpose.msra.mxu0 0.0
    %487 = vmatprep.subr.mxu0 0.0
    %488 = vmatpush1.xpose.msra.mxu0 0.0
    %489 = vmatprep.subr.mxu0 0.0
    %490 = vmatpush1.xpose.msra.mxu0 0.0
    %491 = vmatprep.subr.mxu0 0.0
    %492 = vmatpush1.xpose.msra.mxu0 0.0
    %493 = vmatprep.subr.mxu0 0.0
    %494 = vmatpush1.xpose.msra.mxu0 0.0
    %495 = vmatprep.subr.mxu0 0.0
    %496 = vmatpush1.xpose.msra.mxu0 0.0
    %497 = vmatprep.subr.mxu0 0.0
    %498 = vmatpush1.xpose.msra.mxu0 0.0
    %499 = vmatprep.subr.mxu0 0.0
    %500 = vmatpush1.xpose.msra.mxu0 0.0
    %501 = vmatprep.subr.mxu0 0.0
    %502 = vmatpush1.xpose.msra.mxu0 0.0
    %503 = vmatprep.mubr.f32.mxu0 0.0
    %504 = vmatmul.mubr.f32.gmra.mrb[0].mxu0 %v435
    %v505 = vpop.f32.mrb[0].mxu0
    %v506 = vadd.f32 0.0, %v505
    %v507 = vpop.f32.mrb[0].mxu0
    %508 = vdwg.mxu0
    %v509 = vsel %vm434, %v211, 0
    %v511 = vsel %vm434, %v297, 0
    %513 = vmatprep.subr.mxu0 0.0
    %514 = vmatpush1.xpose.msra.mxu0 %v511
    %515 = vmatprep.subr.mxu0 0.0
    %516 = vmatpush1.xpose.msra.mxu0 0.0
    %517 = vmatprep.subr.mxu0 0.0
    %518 = vmatpush1.xpose.msra.mxu0 0.0
    %519 = vmatprep.subr.mxu0 0.0
    %520 = vmatpush1.xpose.msra.mxu0 0.0
    %521 = vmatprep.subr.mxu0 0.0
    %522 = vmatpush1.xpose.msra.mxu0 0.0
    %523 = vmatprep.subr.mxu0 0.0
    %524 = vmatpush1.xpose.msra.mxu0 0.0
    %525 = vmatprep.subr.mxu0 0.0
    %526 = vmatpush1.xpose.msra.mxu0 0.0
    %527 = vmatprep.subr.mxu0 0.0
    %528 = vmatpush1.xpose.msra.mxu0 0.0
    %529 = vmatprep.subr.mxu0 0.0
    %530 = vmatpush1.xpose.msra.mxu0 0.0
    %531 = vmatprep.subr.mxu0 0.0
    %532 = vmatpush1.xpose.msra.mxu0 0.0
    %533 = vmatprep.subr.mxu0 0.0
    %534 = vmatpush1.xpose.msra.mxu0 0.0
    %535 = vmatprep.subr.mxu0 0.0
    %536 = vmatpush1.xpose.msra.mxu0 0.0
    %537 = vmatprep.subr.mxu0 0.0
    %538 = vmatpush1.xpose.msra.mxu0 0.0
    %539 = vmatprep.subr.mxu0 0.0
    %540 = vmatpush1.xpose.msra.mxu0 0.0
    %541 = vmatprep.subr.mxu0 0.0
    %542 = vmatpush1.xpose.msra.mxu0 0.0
    %543 = vmatprep.subr.mxu0 0.0
    %544 = vmatpush1.xpose.msra.mxu0 0.0
    %545 = vmatprep.subr.mxu0 0.0
    %546 = vmatpush1.xpose.msra.mxu0 0.0
    %547 = vmatprep.subr.mxu0 0.0
    %548 = vmatpush1.xpose.msra.mxu0 0.0
    %549 = vmatprep.subr.mxu0 0.0
    %550 = vmatpush1.xpose.msra.mxu0 0.0
    %551 = vmatprep.subr.mxu0 0.0
    %552 = vmatpush1.xpose.msra.mxu0 0.0
    %553 = vmatprep.subr.mxu0 0.0
    %554 = vmatpush1.xpose.msra.mxu0 0.0
    %555 = vmatprep.subr.mxu0 0.0
    %556 = vmatpush1.xpose.msra.mxu0 0.0
    %557 = vmatprep.subr.mxu0 0.0
    %558 = vmatpush1.xpose.msra.mxu0 0.0
    %559 = vmatprep.subr.mxu0 0.0
    %560 = vmatpush1.xpose.msra.mxu0 0.0
    %561 = vmatprep.subr.mxu0 0.0
    %562 = vmatpush1.xpose.msra.mxu0 0.0
    %563 = vmatprep.subr.mxu0 0.0
    %564 = vmatpush1.xpose.msra.mxu0 0.0
    %565 = vmatprep.subr.mxu0 0.0
    %566 = vmatpush1.xpose.msra.mxu0 0.0
    %567 = vmatprep.subr.mxu0 0.0
    %568 = vmatpush1.xpose.msra.mxu0 0.0
    %569 = vmatprep.subr.mxu0 0.0
    %570 = vmatpush1.xpose.msra.mxu0 0.0
    %571 = vmatprep.subr.mxu0 0.0
    %572 = vmatpush1.xpose.msra.mxu0 0.0
    %573 = vmatprep.subr.mxu0 0.0
    %574 = vmatpush1.xpose.msra.mxu0 0.0
    %575 = vmatprep.subr.mxu0 0.0
    %576 = vmatpush1.xpose.msra.mxu0 0.0
    %577 = vmatprep.mubr.f32.mxu0 0.0
    %578 = vmatmul.mubr.f32.gmra.mrb[0].mxu0 %v509
    %v579 = vpop.f32.mrb[0].mxu0
    %v580 = vadd.f32 0.0, %v579
    %v581 = vpop.f32.mrb[0].mxu0
    %582 = vdwg.mxu0
    %v583 = vsel %vm434, %v389, 0
    %v585 = vsel %vm434, %v403, 0
    %587 = vmatprep.subr.mxu0 0.0
    %588 = vmatpush1.xpose.msra.mxu0 %v585
    %589 = vmatprep.subr.mxu0 0.0
    %590 = vmatpush1.xpose.msra.mxu0 0.0
    %591 = vmatprep.subr.mxu0 0.0
    %592 = vmatpush1.xpose.msra.mxu0 0.0
    %593 = vmatprep.subr.mxu0 0.0
    %594 = vmatpush1.xpose.msra.mxu0 0.0
    %595 = vmatprep.subr.mxu0 0.0
    %596 = vmatpush1.xpose.msra.mxu0 0.0
    %597 = vmatprep.subr.mxu0 0.0
    %598 = vmatpush1.xpose.msra.mxu0 0.0
    %599 = vmatprep.subr.mxu0 0.0
    %600 = vmatpush1.xpose.msra.mxu0 0.0
    %601 = vmatprep.subr.mxu0 0.0
    %602 = vmatpush1.xpose.msra.mxu0 0.0
    %603 = vmatprep.subr.mxu0 0.0
    %604 = vmatpush1.xpose.msra.mxu0 0.0
    %605 = vmatprep.subr.mxu0 0.0
    %606 = vmatpush1.xpose.msra.mxu0 0.0
    %607 = vmatprep.subr.mxu0 0.0
    %608 = vmatpush1.xpose.msra.mxu0 0.0
    %609 = vmatprep.subr.mxu0 0.0
    %610 = vmatpush1.xpose.msra.mxu0 0.0
    %611 = vmatprep.subr.mxu0 0.0
    %612 = vmatpush1.xpose.msra.mxu0 0.0
    %613 = vmatprep.subr.mxu0 0.0
    %614 = vmatpush1.xpose.msra.mxu0 0.0
    %615 = vmatprep.subr.mxu0 0.0
    %616 = vmatpush1.xpose.msra.mxu0 0.0
    %617 = vmatprep.subr.mxu0 0.0
    %618 = vmatpush1.xpose.msra.mxu0 0.0
    %619 = vmatprep.subr.mxu0 0.0
    %620 = vmatpush1.xpose.msra.mxu0 0.0
    %621 = vmatprep.subr.mxu0 0.0
    %622 = vmatpush1.xpose.msra.mxu0 0.0
    %623 = vmatprep.subr.mxu0 0.0
    %624 = vmatpush1.xpose.msra.mxu0 0.0
    %625 = vmatprep.subr.mxu0 0.0
    %626 = vmatpush1.xpose.msra.mxu0 0.0
    %627 = vmatprep.subr.mxu0 0.0
    %628 = vmatpush1.xpose.msra.mxu0 0.0
    %629 = vmatprep.subr.mxu0 0.0
    %630 = vmatpush1.xpose.msra.mxu0 0.0
    %631 = vmatprep.subr.mxu0 0.0
    %632 = vmatpush1.xpose.msra.mxu0 0.0
    %633 = vmatprep.subr.mxu0 0.0
    %634 = vmatpush1.xpose.msra.mxu0 0.0
    %635 = vmatprep.subr.mxu0 0.0
    %636 = vmatpush1.xpose.msra.mxu0 0.0
    %637 = vmatprep.subr.mxu0 0.0
    %638 = vmatpush1.xpose.msra.mxu0 0.0
    %639 = vmatprep.subr.mxu0 0.0
    %640 = vmatpush1.xpose.msra.mxu0 0.0
    %641 = vmatprep.subr.mxu0 0.0
    %642 = vmatpush1.xpose.msra.mxu0 0.0
    %643 = vmatprep.subr.mxu0 0.0
    %644 = vmatpush1.xpose.msra.mxu0 0.0
    %645 = vmatprep.subr.mxu0 0.0
    %646 = vmatpush1.xpose.msra.mxu0 0.0
    %647 = vmatprep.subr.mxu0 0.0
    %648 = vmatpush1.xpose.msra.mxu0 0.0
    %649 = vmatprep.subr.mxu0 0.0
    %650 = vmatpush1.xpose.msra.mxu0 0.0
    %651 = vmatprep.mubr.f32.mxu0 0.0
    %652 = vmatmul.mubr.f32.gmra.mrb[0].mxu0 %v583
    %v653 = vpop.f32.mrb[0].mxu0
    %v654 = vadd.f32 0.0, %v653
    %v655 = vpop.f32.mrb[0].mxu0
    %656 = vdwg.mxu0
    %v657 = vsel %vm434, %v391, 0
    %v659 = vsel %vm434, %v405, 0
    %661 = vmatprep.subr.mxu0 0.0
    %662 = vmatpush1.xpose.msra.mxu0 %v659
    %663 = vmatprep.subr.mxu0 0.0
    %664 = vmatpush1.xpose.msra.mxu0 0.0
    %665 = vmatprep.subr.mxu0 0.0
    %666 = vmatpush1.xpose.msra.mxu0 0.0
    %667 = vmatprep.subr.mxu0 0.0
    %668 = vmatpush1.xpose.msra.mxu0 0.0
    %669 = vmatprep.subr.mxu0 0.0
    %670 = vmatpush1.xpose.msra.mxu0 0.0
    %671 = vmatprep.subr.mxu0 0.0
    %672 = vmatpush1.xpose.msra.mxu0 0.0
    %673 = vmatprep.subr.mxu0 0.0
    %674 = vmatpush1.xpose.msra.mxu0 0.0
    %675 = vmatprep.subr.mxu0 0.0
    %676 = vmatpush1.xpose.msra.mxu0 0.0
    %677 = vmatprep.subr.mxu0 0.0
    %678 = vmatpush1.xpose.msra.mxu0 0.0
    %679 = vmatprep.subr.mxu0 0.0
    %680 = vmatpush1.xpose.msra.mxu0 0.0
    %681 = vmatprep.subr.mxu0 0.0
    %682 = vmatpush1.xpose.msra.mxu0 0.0
    %683 = vmatprep.subr.mxu0 0.0
    %684 = vmatpush1.xpose.msra.mxu0 0.0
    %685 = vmatprep.subr.mxu0 0.0
    %686 = vmatpush1.xpose.msra.mxu0 0.0
    %687 = vmatprep.subr.mxu0 0.0
    %688 = vmatpush1.xpose.msra.mxu0 0.0
    %689 = vmatprep.subr.mxu0 0.0
    %690 = vmatpush1.xpose.msra.mxu0 0.0
    %691 = vmatprep.subr.mxu0 0.0
    %692 = vmatpush1.xpose.msra.mxu0 0.0
    %693 = vmatprep.subr.mxu0 0.0
    %694 = vmatpush1.xpose.msra.mxu0 0.0
    %695 = vmatprep.subr.mxu0 0.0
    %696 = vmatpush1.xpose.msra.mxu0 0.0
    %697 = vmatprep.subr.mxu0 0.0
    %698 = vmatpush1.xpose.msra.mxu0 0.0
    %699 = vmatprep.subr.mxu0 0.0
    %700 = vmatpush1.xpose.msra.mxu0 0.0
    %701 = vmatprep.subr.mxu0 0.0
    %702 = vmatpush1.xpose.msra.mxu0 0.0
    %703 = vmatprep.subr.mxu0 0.0
    %704 = vmatpush1.xpose.msra.mxu0 0.0
    %705 = vmatprep.subr.mxu0 0.0
    %706 = vmatpush1.xpose.msra.mxu0 0.0
    %707 = vmatprep.subr.mxu0 0.0
    %708 = vmatpush1.xpose.msra.mxu0 0.0
    %709 = vmatprep.subr.mxu0 0.0
    %710 = vmatpush1.xpose.msra.mxu0 0.0
    %711 = vmatprep.subr.mxu0 0.0
    %712 = vmatpush1.xpose.msra.mxu0 0.0
    %713 = vmatprep.subr.mxu0 0.0
    %714 = vmatpush1.xpose.msra.mxu0 0.0
    %715 = vmatprep.subr.mxu0 0.0
    %716 = vmatpush1.xpose.msra.mxu0 0.0
    %717 = vmatprep.subr.mxu0 0.0
    %718 = vmatpush1.xpose.msra.mxu0 0.0
    %719 = vmatprep.subr.mxu0 0.0
    %720 = vmatpush1.xpose.msra.mxu0 0.0
    %721 = vmatprep.subr.mxu0 0.0
    %722 = vmatpush1.xpose.msra.mxu0 0.0
    %723 = vmatprep.subr.mxu0 0.0
    %724 = vmatpush1.xpose.msra.mxu0 0.0
    %725 = vmatprep.mubr.f32.mxu0 0.0
    %726 = vmatmul.mubr.f32.gmra.mrb[0].mxu0 %v657
    %v727 = vpop.f32.mrb[0].mxu0
    %v728 = vadd.f32 0.0, %v727
    %v729 = vpop.f32.mrb[0].mxu0
    %730 = vdwg.mxu0
    %v731 = vsel %vm434, %v393, 0
    %v733 = vsel %vm434, %v407, 0
    %735 = vmatprep.subr.mxu0 0.0
    %736 = vmatpush1.xpose.msra.mxu0 %v733
    %737 = vmatprep.subr.mxu0 0.0
    %738 = vmatpush1.xpose.msra.mxu0 0.0
    %739 = vmatprep.subr.mxu0 0.0
    %740 = vmatpush1.xpose.msra.mxu0 0.0
    %741 = vmatprep.subr.mxu0 0.0
    %742 = vmatpush1.xpose.msra.mxu0 0.0
    %743 = vmatprep.subr.mxu0 0.0
    %744 = vmatpush1.xpose.msra.mxu0 0.0
    %745 = vmatprep.subr.mxu0 0.0
    %746 = vmatpush1.xpose.msra.mxu0 0.0
    %747 = vmatprep.subr.mxu0 0.0
    %748 = vmatpush1.xpose.msra.mxu0 0.0
    %749 = vmatprep.subr.mxu0 0.0
    %750 = vmatpush1.xpose.msra.mxu0 0.0
    %751 = vmatprep.subr.mxu0 0.0
    %752 = vmatpush1.xpose.msra.mxu0 0.0
    %753 = vmatprep.subr.mxu0 0.0
    %754 = vmatpush1.xpose.msra.mxu0 0.0
    %755 = vmatprep.subr.mxu0 0.0
    %756 = vmatpush1.xpose.msra.mxu0 0.0
    %757 = vmatprep.subr.mxu0 0.0
    %758 = vmatpush1.xpose.msra.mxu0 0.0
    %759 = vmatprep.subr.mxu0 0.0
    %760 = vmatpush1.xpose.msra.mxu0 0.0
    %761 = vmatprep.subr.mxu0 0.0
    %762 = vmatpush1.xpose.msra.mxu0 0.0
    %763 = vmatprep.subr.mxu0 0.0
    %764 = vmatpush1.xpose.msra.mxu0 0.0
    %765 = vmatprep.subr.mxu0 0.0
    %766 = vmatpush1.xpose.msra.mxu0 0.0
    %767 = vmatprep.subr.mxu0 0.0
    %768 = vmatpush1.xpose.msra.mxu0 0.0
    %769 = vmatprep.subr.mxu0 0.0
    %770 = vmatpush1.xpose.msra.mxu0 0.0
    %771 = vmatprep.subr.mxu0 0.0
    %772 = vmatpush1.xpose.msra.mxu0 0.0
    %773 = vmatprep.subr.mxu0 0.0
    %774 = vmatpush1.xpose.msra.mxu0 0.0
    %775 = vmatprep.subr.mxu0 0.0
    %776 = vmatpush1.xpose.msra.mxu0 0.0
    %777 = vmatprep.subr.mxu0 0.0
    %778 = vmatpush1.xpose.msra.mxu0 0.0
    %779 = vmatprep.subr.mxu0 0.0
    %780 = vmatpush1.xpose.msra.mxu0 0.0
    %781 = vmatprep.subr.mxu0 0.0
    %782 = vmatpush1.xpose.msra.mxu0 0.0
    %783 = vmatprep.subr.mxu0 0.0
    %784 = vmatpush1.xpose.msra.mxu0 0.0
    %785 = vmatprep.subr.mxu0 0.0
    %786 = vmatpush1.xpose.msra.mxu0 0.0
    %787 = vmatprep.subr.mxu0 0.0
    %788 = vmatpush1.xpose.msra.mxu0 0.0
    %789 = vmatprep.subr.mxu0 0.0
    %790 = vmatpush1.xpose.msra.mxu0 0.0
    %791 = vmatprep.subr.mxu0 0.0
    %792 = vmatpush1.xpose.msra.mxu0 0.0
    %793 = vmatprep.subr.mxu0 0.0
    %794 = vmatpush1.xpose.msra.mxu0 0.0
    %795 = vmatprep.subr.mxu0 0.0
    %796 = vmatpush1.xpose.msra.mxu0 0.0
    %797 = vmatprep.subr.mxu0 0.0
    %798 = vmatpush1.xpose.msra.mxu0 0.0
    %799 = vmatprep.mubr.f32.mxu0 0.0
    %800 = vmatmul.mubr.f32.gmra.mrb[0].mxu0 %v731
    %v801 = vpop.f32.mrb[0].mxu0
    %v802 = vadd.f32 0.0, %v801
    %v803 = vpop.f32.mrb[0].mxu0
    %804 = vdwg.mxu0
    %v805 = vsel %vm434, %v395, 0
    %v807 = vsel %vm434, %v409, 0
    %809 = vmatprep.subr.mxu0 0.0
    %810 = vmatpush1.xpose.msra.mxu0 %v807
    %811 = vmatprep.subr.mxu0 0.0
    %812 = vmatpush1.xpose.msra.mxu0 0.0
    %813 = vmatprep.subr.mxu0 0.0
    %814 = vmatpush1.xpose.msra.mxu0 0.0
    %815 = vmatprep.subr.mxu0 0.0
    %816 = vmatpush1.xpose.msra.mxu0 0.0
    %817 = vmatprep.subr.mxu0 0.0
    %818 = vmatpush1.xpose.msra.mxu0 0.0
    %819 = vmatprep.subr.mxu0 0.0
    %820 = vmatpush1.xpose.msra.mxu0 0.0
    %821 = vmatprep.subr.mxu0 0.0
    %822 = vmatpush1.xpose.msra.mxu0 0.0
    %823 = vmatprep.subr.mxu0 0.0
    %824 = vmatpush1.xpose.msra.mxu0 0.0
    %825 = vmatprep.subr.mxu0 0.0
    %826 = vmatpush1.xpose.msra.mxu0 0.0
    %827 = vmatprep.subr.mxu0 0.0
    %828 = vmatpush1.xpose.msra.mxu0 0.0
    %829 = vmatprep.subr.mxu0 0.0
    %830 = vmatpush1.xpose.msra.mxu0 0.0
    %831 = vmatprep.subr.mxu0 0.0
    %832 = vmatpush1.xpose.msra.mxu0 0.0
    %833 = vmatprep.subr.mxu0 0.0
    %834 = vmatpush1.xpose.msra.mxu0 0.0
    %835 = vmatprep.subr.mxu0 0.0
    %836 = vmatpush1.xpose.msra.mxu0 0.0
    %837 = vmatprep.subr.mxu0 0.0
    %838 = vmatpush1.xpose.msra.mxu0 0.0
    %839 = vmatprep.subr.mxu0 0.0
    %840 = vmatpush1.xpose.msra.mxu0 0.0
    %841 = vmatprep.subr.mxu0 0.0
    %842 = vmatpush1.xpose.msra.mxu0 0.0
    %843 = vmatprep.subr.mxu0 0.0
    %844 = vmatpush1.xpose.msra.mxu0 0.0
    %845 = vmatprep.subr.mxu0 0.0
    %846 = vmatpush1.xpose.msra.mxu0 0.0
    %847 = vmatprep.subr.mxu0 0.0
    %848 = vmatpush1.xpose.msra.mxu0 0.0
    %849 = vmatprep.subr.mxu0 0.0
    %850 = vmatpush1.xpose.msra.mxu0 0.0
    %851 = vmatprep.subr.mxu0 0.0
    %852 = vmatpush1.xpose.msra.mxu0 0.0
    %853 = vmatprep.subr.mxu0 0.0
    %854 = vmatpush1.xpose.msra.mxu0 0.0
    %855 = vmatprep.subr.mxu0 0.0
    %856 = vmatpush1.xpose.msra.mxu0 0.0
    %857 = vmatprep.subr.mxu0 0.0
    %858 = vmatpush1.xpose.msra.mxu0 0.0
    %859 = vmatprep.subr.mxu0 0.0
    %860 = vmatpush1.xpose.msra.mxu0 0.0
    %861 = vmatprep.subr.mxu0 0.0
    %862 = vmatpush1.xpose.msra.mxu0 0.0
    %863 = vmatprep.subr.mxu0 0.0
    %864 = vmatpush1.xpose.msra.mxu0 0.0
    %865 = vmatprep.subr.mxu0 0.0
    %866 = vmatpush1.xpose.msra.mxu0 0.0
    %867 = vmatprep.subr.mxu0 0.0
    %868 = vmatpush1.xpose.msra.mxu0 0.0
    %869 = vmatprep.subr.mxu0 0.0
    %870 = vmatpush1.xpose.msra.mxu0 0.0
    %871 = vmatprep.subr.mxu0 0.0
    %872 = vmatpush1.xpose.msra.mxu0 0.0
    %873 = vmatprep.mubr.f32.mxu0 0.0
    %874 = vmatmul.mubr.f32.gmra.mrb[0].mxu0 %v805
    %v875 = vpop.f32.mrb[0].mxu0
    %v876 = vadd.f32 0.0, %v875
    %v877 = vpop.f32.mrb[0].mxu0
    %878 = vdwg.mxu0
    %v879 = vsel %vm434, %v397, 0
    %v881 = vsel %vm434, %v411, 0
    %883 = vmatprep.subr.mxu0 0.0
    %884 = vmatpush1.xpose.msra.mxu0 %v881
    %885 = vmatprep.subr.mxu0 0.0
    %886 = vmatpush1.xpose.msra.mxu0 0.0
    %887 = vmatprep.subr.mxu0 0.0
    %888 = vmatpush1.xpose.msra.mxu0 0.0
    %889 = vmatprep.subr.mxu0 0.0
    %890 = vmatpush1.xpose.msra.mxu0 0.0
    %891 = vmatprep.subr.mxu0 0.0
    %892 = vmatpush1.xpose.msra.mxu0 0.0
    %893 = vmatprep.subr.mxu0 0.0
    %894 = vmatpush1.xpose.msra.mxu0 0.0
    %895 = vmatprep.subr.mxu0 0.0
    %896 = vmatpush1.xpose.msra.mxu0 0.0
    %897 = vmatprep.subr.mxu0 0.0
    %898 = vmatpush1.xpose.msra.mxu0 0.0
    %899 = vmatprep.subr.mxu0 0.0
    %900 = vmatpush1.xpose.msra.mxu0 0.0
    %901 = vmatprep.subr.mxu0 0.0
    %902 = vmatpush1.xpose.msra.mxu0 0.0
    %903 = vmatprep.subr.mxu0 0.0
    %904 = vmatpush1.xpose.msra.mxu0 0.0
    %905 = vmatprep.subr.mxu0 0.0
    %906 = vmatpush1.xpose.msra.mxu0 0.0
    %907 = vmatprep.subr.mxu0 0.0
    %908 = vmatpush1.xpose.msra.mxu0 0.0
    %909 = vmatprep.subr.mxu0 0.0
    %910 = vmatpush1.xpose.msra.mxu0 0.0
    %911 = vmatprep.subr.mxu0 0.0
    %912 = vmatpush1.xpose.msra.mxu0 0.0
    %913 = vmatprep.subr.mxu0 0.0
    %914 = vmatpush1.xpose.msra.mxu0 0.0
    %915 = vmatprep.subr.mxu0 0.0
    %916 = vmatpush1.xpose.msra.mxu0 0.0
    %917 = vmatprep.subr.mxu0 0.0
    %918 = vmatpush1.xpose.msra.mxu0 0.0
    %919 = vmatprep.subr.mxu0 0.0
    %920 = vmatpush1.xpose.msra.mxu0 0.0
    %921 = vmatprep.subr.mxu0 0.0
    %922 = vmatpush1.xpose.msra.mxu0 0.0
    %923 = vmatprep.subr.mxu0 0.0
    %924 = vmatpush1.xpose.msra.mxu0 0.0
    %925 = vmatprep.subr.mxu0 0.0
    %926 = vmatpush1.xpose.msra.mxu0 0.0
    %927 = vmatprep.subr.mxu0 0.0
    %928 = vmatpush1.xpose.msra.mxu0 0.0
    %929 = vmatprep.subr.mxu0 0.0
    %930 = vmatpush1.xpose.msra.mxu0 0.0
    %931 = vmatprep.subr.mxu0 0.0
    %932 = vmatpush1.xpose.msra.mxu0 0.0
    %933 = vmatprep.subr.mxu0 0.0
    %934 = vmatpush1.xpose.msra.mxu0 0.0
    %935 = vmatprep.subr.mxu0 0.0
    %936 = vmatpush1.xpose.msra.mxu0 0.0
    %937 = vmatprep.subr.mxu0 0.0
    %938 = vmatpush1.xpose.msra.mxu0 0.0
    %939 = vmatprep.subr.mxu0 0.0
    %940 = vmatpush1.xpose.msra.mxu0 0.0
    %941 = vmatprep.subr.mxu0 0.0
    %942 = vmatpush1.xpose.msra.mxu0 0.0
    %943 = vmatprep.subr.mxu0 0.0
    %944 = vmatpush1.xpose.msra.mxu0 0.0
    %945 = vmatprep.subr.mxu0 0.0
    %946 = vmatpush1.xpose.msra.mxu0 0.0
    %947 = vmatprep.mubr.f32.mxu0 0.0
    %948 = vmatmul.mubr.f32.gmra.mrb[0].mxu0 %v879
    %v949 = vpop.f32.mrb[0].mxu0
    %v950 = vadd.f32 0.0, %v949
    %v951 = vpop.f32.mrb[0].mxu0
    %952 = vdwg.mxu0
    %v953 = vsel %vm434, %v399, 0
    %v955 = vsel %vm434, %v413, 0
    %957 = vmatprep.subr.mxu0 0.0
    %958 = vmatpush1.xpose.msra.mxu0 %v955
    %959 = vmatprep.subr.mxu0 0.0
    %960 = vmatpush1.xpose.msra.mxu0 0.0
    %961 = vmatprep.subr.mxu0 0.0
    %962 = vmatpush1.xpose.msra.mxu0 0.0
    %963 = vmatprep.subr.mxu0 0.0
    %964 = vmatpush1.xpose.msra.mxu0 0.0
    %965 = vmatprep.subr.mxu0 0.0
    %966 = vmatpush1.xpose.msra.mxu0 0.0
    %967 = vmatprep.subr.mxu0 0.0
    %968 = vmatpush1.xpose.msra.mxu0 0.0
    %969 = vmatprep.subr.mxu0 0.0
    %970 = vmatpush1.xpose.msra.mxu0 0.0
    %971 = vmatprep.subr.mxu0 0.0
    %972 = vmatpush1.xpose.msra.mxu0 0.0
    %973 = vmatprep.subr.mxu0 0.0
    %974 = vmatpush1.xpose.msra.mxu0 0.0
    %975 = vmatprep.subr.mxu0 0.0
    %976 = vmatpush1.xpose.msra.mxu0 0.0
    %977 = vmatprep.subr.mxu0 0.0
    %978 = vmatpush1.xpose.msra.mxu0 0.0
    %979 = vmatprep.subr.mxu0 0.0
    %980 = vmatpush1.xpose.msra.mxu0 0.0
    %981 = vmatprep.subr.mxu0 0.0
    %982 = vmatpush1.xpose.msra.mxu0 0.0
    %983 = vmatprep.subr.mxu0 0.0
    %984 = vmatpush1.xpose.msra.mxu0 0.0
    %985 = vmatprep.subr.mxu0 0.0
    %986 = vmatpush1.xpose.msra.mxu0 0.0
    %987 = vmatprep.subr.mxu0 0.0
    %988 = vmatpush1.xpose.msra.mxu0 0.0
    %989 = vmatprep.subr.mxu0 0.0
    %990 = vmatpush1.xpose.msra.mxu0 0.0
    %991 = vmatprep.subr.mxu0 0.0
    %992 = vmatpush1.xpose.msra.mxu0 0.0
    %993 = vmatprep.subr.mxu0 0.0
    %994 = vmatpush1.xpose.msra.mxu0 0.0
    %995 = vmatprep.subr.mxu0 0.0
    %996 = vmatpush1.xpose.msra.mxu0 0.0
    %997 = vmatprep.subr.mxu0 0.0
    %998 = vmatpush1.xpose.msra.mxu0 0.0
    %999 = vmatprep.subr.mxu0 0.0
    %1000 = vmatpush1.xpose.msra.mxu0 0.0
    %1001 = vmatprep.subr.mxu0 0.0
    %1002 = vmatpush1.xpose.msra.mxu0 0.0
    %1003 = vmatprep.subr.mxu0 0.0
    %1004 = vmatpush1.xpose.msra.mxu0 0.0
    %1005 = vmatprep.subr.mxu0 0.0
    %1006 = vmatpush1.xpose.msra.mxu0 0.0
    %1007 = vmatprep.subr.mxu0 0.0
    %1008 = vmatpush1.xpose.msra.mxu0 0.0
    %1009 = vmatprep.subr.mxu0 0.0
    %1010 = vmatpush1.xpose.msra.mxu0 0.0
    %1011 = vmatprep.subr.mxu0 0.0
    %1012 = vmatpush1.xpose.msra.mxu0 0.0
    %1013 = vmatprep.subr.mxu0 0.0
    %1014 = vmatpush1.xpose.msra.mxu0 0.0
    %1015 = vmatprep.subr.mxu0 0.0
    %1016 = vmatpush1.xpose.msra.mxu0 0.0
    %1017 = vmatprep.subr.mxu0 0.0
    %1018 = vmatpush1.xpose.msra.mxu0 0.0
    %1019 = vmatprep.subr.mxu0 0.0
    %1020 = vmatpush1.xpose.msra.mxu0 0.0
    %1021 = vmatprep.mubr.f32.mxu0 0.0
    %1022 = vmatmul.mubr.f32.gmra.mrb[0].mxu0 %v953
    %v1023 = vpop.f32.mrb[0].mxu0
    %v1024 = vadd.f32 0.0, %v1023
    %v1025 = vpop.f32.mrb[0].mxu0
    %1026 = vdwg.mxu0
    %v1027 = vmul.f32 %v506, 0.35355338
    %v1028 = vmul.f32 %v580, 0.35355338
    %v1029 = vmul.f32 %v654, 0.35355338
    %v1030 = vmul.f32 %v728, 0.35355338
    %v1031 = vmul.f32 %v802, 0.35355338
    %v1032 = vmul.f32 %v876, 0.35355338
    %v1033 = vmul.f32 %v950, 0.35355338
    %v1034 = vmul.f32 %v1024, 0.35355338
    %v1035 = vsel %vm75, 1, 0
    %vm1036 = vcmp.eq.s32.totalorder %v1035, 1
    %v1037 = vsel %vm1036, -100000.0, %v1027
    %v1038 = vsel %vm1036, -100000.0, %v1028
    %v1039 = vsel %vm1036, -100000.0, %v1029
    %v1040 = vsel %vm1036, -100000.0, %v1030
    %v1041 = vsel %vm1036, -100000.0, %v1031
    %v1042 = vsel %vm1036, -100000.0, %v1032
    %v1043 = vsel %vm1036, -100000.0, %v1033
    %v1044 = vsel %vm1036, -100000.0, %v1034
    %v1045 = vsel %vm434, %v1037, -inf
    %1046 = vmax.xlane.f32.xlu0 %v1045
    %v1047 = vpop.xlane.xlu0 %1046
    %v1048 = vsel %vm434, %v1038, -inf
    %1049 = vmax.xlane.f32.xlu0 %v1048
    %v1050 = vpop.xlane.xlu0 %1049
    %v1051 = vsel %vm434, %v1039, -inf
    %1052 = vmax.xlane.f32.xlu0 %v1051
    %v1053 = vpop.xlane.xlu0 %1052
    %v1054 = vsel %vm434, %v1040, -inf
    %1055 = vmax.xlane.f32.xlu0 %v1054
    %v1056 = vpop.xlane.xlu0 %1055
    %v1057 = vsel %vm434, %v1041, -inf
    %1058 = vmax.xlane.f32.xlu0 %v1057
    %v1059 = vpop.xlane.xlu0 %1058
    %v1060 = vsel %vm434, %v1042, -inf
    %1061 = vmax.xlane.f32.xlu0 %v1060
    %v1062 = vpop.xlane.xlu0 %1061
    %v1063 = vsel %vm434, %v1043, -inf
    %1064 = vmax.xlane.f32.xlu0 %v1063
    %v1065 = vpop.xlane.xlu0 %1064
    %v1066 = vsel %vm434, %v1044, -inf
    %1067 = vmax.xlane.f32.xlu0 %v1066
    %v1068 = vpop.xlane.xlu0 %1067
    %v1069 = vsub.f32 %v1037, %v1047
    %v1070 = vsub.f32 %v1038, %v1050
    %v1071 = vsub.f32 %v1039, %v1053
    %v1072 = vsub.f32 %v1040, %v1056
    %v1073 = vsub.f32 %v1041, %v1059
    %v1074 = vsub.f32 %v1042, %v1062
    %v1075 = vsub.f32 %v1043, %v1065
    %v1076 = vsub.f32 %v1044, %v1068
    %v1077 = vmul.f32 %v1069, 1.442695
    %v1078 = vpow.pop %v1077
    %v1079 = vmul.f32 %v1070, 1.442695
    %v1080 = vpow.pop %v1079
    %v1081 = vmul.f32 %v1071, 1.442695
    %v1082 = vpow.pop %v1081
    %v1083 = vmul.f32 %v1072, 1.442695
    %v1084 = vpow.pop %v1083
    %v1085 = vmul.f32 %v1073, 1.442695
    %v1086 = vpow.pop %v1085
    %v1087 = vmul.f32 %v1074, 1.442695
    %v1088 = vpow.pop %v1087
    %v1089 = vmul.f32 %v1075, 1.442695
    %v1090 = vpow.pop %v1089
    %v1091 = vmul.f32 %v1076, 1.442695
    %v1092 = vpow.pop %v1091
    %v1093 = vsel %vm434, %v1078, 0.0
    %1094 = vadd.xlane.f32.xlu0 %v1093
    %v1095 = vpop.xlane.xlu0 %1094
    %v1096 = vsel %vm434, %v1080, 0.0
    %1097 = vadd.xlane.f32.xlu0 %v1096
    %v1098 = vpop.xlane.xlu0 %1097
    %v1099 = vsel %vm434, %v1082, 0.0
    %1100 = vadd.xlane.f32.xlu0 %v1099
    %v1101 = vpop.xlane.xlu0 %1100
    %v1102 = vsel %vm434, %v1084, 0.0
    %1103 = vadd.xlane.f32.xlu0 %v1102
    %v1104 = vpop.xlane.xlu0 %1103
    %v1105 = vsel %vm434, %v1086, 0.0
    %1106 = vadd.xlane.f32.xlu0 %v1105
    %v1107 = vpop.xlane.xlu0 %1106
    %v1108 = vsel %vm434, %v1088, 0.0
    %1109 = vadd.xlane.f32.xlu0 %v1108
    %v1110 = vpop.xlane.xlu0 %1109
    %v1111 = vsel %vm434, %v1090, 0.0
    %1112 = vadd.xlane.f32.xlu0 %v1111
    %v1113 = vpop.xlane.xlu0 %1112
    %v1114 = vsel %vm434, %v1092, 0.0
    %1115 = vadd.xlane.f32.xlu0 %v1114
    %v1116 = vpop.xlane.xlu0 %1115
    %v1117 = vrcp.pop %v1095
    %v1118 = vrcp.pop %v1098
    %v1119 = vrcp.pop %v1101
    %v1120 = vrcp.pop %v1104
    %v1121 = vrcp.pop %v1107
    %v1122 = vrcp.pop %v1110
    %v1123 = vrcp.pop %v1113
    %v1124 = vrcp.pop %v1116
    %v1125 = vmul.f32 %v1078, %v1117
    %v1126 = vmul.f32 %v1080, %v1118
    %v1127 = vmul.f32 %v1082, %v1119
    %v1128 = vmul.f32 %v1084, %v1120
    %v1129 = vmul.f32 %v1086, %v1121
    %v1130 = vmul.f32 %v1088, %v1122
    %v1131 = vmul.f32 %v1090, %v1123
    %v1132 = vmul.f32 %v1092, %v1124
    %v1134 = vsel %vm434, %v1125, 0
    %1136 = vmatprep.subr.mxu0 0.0
    %1137 = vmatpush1.msra.mxu0 %v378
    %1138 = vmatprep.subr.mxu0 0.0
    %1139 = vmatpush1.msra.mxu0 0.0
    %1140 = vmatprep.subr.mxu0 0.0
    %1141 = vmatpush1.msra.mxu0 0.0
    %1142 = vmatprep.subr.mxu0 0.0
    %1143 = vmatpush1.msra.mxu0 0.0
    %1144 = vmatprep.subr.mxu0 0.0
    %1145 = vmatpush1.msra.mxu0 0.0
    %1146 = vmatprep.subr.mxu0 0.0
    %1147 = vmatpush1.msra.mxu0 0.0
    %1148 = vmatprep.subr.mxu0 0.0
    %1149 = vmatpush1.msra.mxu0 0.0
    %1150 = vmatprep.subr.mxu0 0.0
    %1151 = vmatpush1.msra.mxu0 0.0
    %1152 = vmatprep.subr.mxu0 0.0
    %1153 = vmatpush1.msra.mxu0 0.0
    %1154 = vmatprep.subr.mxu0 0.0
    %1155 = vmatpush1.msra.mxu0 0.0
    %1156 = vmatprep.subr.mxu0 0.0
    %1157 = vmatpush1.msra.mxu0 0.0
    %1158 = vmatprep.subr.mxu0 0.0
    %1159 = vmatpush1.msra.mxu0 0.0
    %1160 = vmatprep.subr.mxu0 0.0
    %1161 = vmatpush1.msra.mxu0 0.0
    %1162 = vmatprep.subr.mxu0 0.0
    %1163 = vmatpush1.msra.mxu0 0.0
    %1164 = vmatprep.subr.mxu0 0.0
    %1165 = vmatpush1.msra.mxu0 0.0
    %1166 = vmatprep.subr.mxu0 0.0
    %1167 = vmatpush1.msra.mxu0 0.0
    %1168 = vmatprep.subr.mxu0 0.0
    %1169 = vmatpush1.msra.mxu0 0.0
    %1170 = vmatprep.subr.mxu0 0.0
    %1171 = vmatpush1.msra.mxu0 0.0
    %1172 = vmatprep.subr.mxu0 0.0
    %1173 = vmatpush1.msra.mxu0 0.0
    %1174 = vmatprep.subr.mxu0 0.0
    %1175 = vmatpush1.msra.mxu0 0.0
    %1176 = vmatprep.subr.mxu0 0.0
    %1177 = vmatpush1.msra.mxu0 0.0
    %1178 = vmatprep.subr.mxu0 0.0
    %1179 = vmatpush1.msra.mxu0 0.0
    %1180 = vmatprep.subr.mxu0 0.0
    %1181 = vmatpush1.msra.mxu0 0.0
    %1182 = vmatprep.subr.mxu0 0.0
    %1183 = vmatpush1.msra.mxu0 0.0
    %1184 = vmatprep.subr.mxu0 0.0
    %1185 = vmatpush1.msra.mxu0 0.0
    %1186 = vmatprep.subr.mxu0 0.0
    %1187 = vmatpush1.msra.mxu0 0.0
    %1188 = vmatprep.subr.mxu0 0.0
    %1189 = vmatpush1.msra.mxu0 0.0
    %1190 = vmatprep.subr.mxu0 0.0
    %1191 = vmatpush1.msra.mxu0 0.0
    %1192 = vmatprep.subr.mxu0 0.0
    %1193 = vmatpush1.msra.mxu0 0.0
    %1194 = vmatprep.subr.mxu0 0.0
    %1195 = vmatpush1.msra.mxu0 0.0
    %1196 = vmatprep.subr.mxu0 0.0
    %1197 = vmatpush1.msra.mxu0 0.0
    %1198 = vmatprep.subr.mxu0 0.0
    %1199 = vmatpush1.msra.mxu0 0.0
    %1200 = vmatprep.mubr.f32.mxu0 0.0
    %1201 = vmatmul.mubr.f32.gmra.mrb[0].mxu0 %v1134
    %v1202 = vpop.f32.mrb[0].mxu0
    %v1203 = vadd.f32 0.0, %v1202
    %v1204 = vpop.f32.mrb[0].mxu0
    %1205 = vdwg.mxu0
    %v1207 = vsel %vm434, %v1126, 0
    %1209 = vmatprep.subr.mxu0 0.0
    %1210 = vmatpush1.msra.mxu0 %v383
    %1211 = vmatprep.subr.mxu0 0.0
    %1212 = vmatpush1.msra.mxu0 0.0
    %1213 = vmatprep.subr.mxu0 0.0
    %1214 = vmatpush1.msra.mxu0 0.0
    %1215 = vmatprep.subr.mxu0 0.0
    %1216 = vmatpush1.msra.mxu0 0.0
    %1217 = vmatprep.subr.mxu0 0.0
    %1218 = vmatpush1.msra.mxu0 0.0
    %1219 = vmatprep.subr.mxu0 0.0
    %1220 = vmatpush1.msra.mxu0 0.0
    %1221 = vmatprep.subr.mxu0 0.0
    %1222 = vmatpush1.msra.mxu0 0.0
    %1223 = vmatprep.subr.mxu0 0.0
    %1224 = vmatpush1.msra.mxu0 0.0
    %1225 = vmatprep.subr.mxu0 0.0
    %1226 = vmatpush1.msra.mxu0 0.0
    %1227 = vmatprep.subr.mxu0 0.0
    %1228 = vmatpush1.msra.mxu0 0.0
    %1229 = vmatprep.subr.mxu0 0.0
    %1230 = vmatpush1.msra.mxu0 0.0
    %1231 = vmatprep.subr.mxu0 0.0
    %1232 = vmatpush1.msra.mxu0 0.0
    %1233 = vmatprep.subr.mxu0 0.0
    %1234 = vmatpush1.msra.mxu0 0.0
    %1235 = vmatprep.subr.mxu0 0.0
    %1236 = vmatpush1.msra.mxu0 0.0
    %1237 = vmatprep.subr.mxu0 0.0
    %1238 = vmatpush1.msra.mxu0 0.0
    %1239 = vmatprep.subr.mxu0 0.0
    %1240 = vmatpush1.msra.mxu0 0.0
    %1241 = vmatprep.subr.mxu0 0.0
    %1242 = vmatpush1.msra.mxu0 0.0
    %1243 = vmatprep.subr.mxu0 0.0
    %1244 = vmatpush1.msra.mxu0 0.0
    %1245 = vmatprep.subr.mxu0 0.0
    %1246 = vmatpush1.msra.mxu0 0.0
    %1247 = vmatprep.subr.mxu0 0.0
    %1248 = vmatpush1.msra.mxu0 0.0
    %1249 = vmatprep.subr.mxu0 0.0
    %1250 = vmatpush1.msra.mxu0 0.0
    %1251 = vmatprep.subr.mxu0 0.0
    %1252 = vmatpush1.msra.mxu0 0.0
    %1253 = vmatprep.subr.mxu0 0.0
    %1254 = vmatpush1.msra.mxu0 0.0
    %1255 = vmatprep.subr.mxu0 0.0
    %1256 = vmatpush1.msra.mxu0 0.0
    %1257 = vmatprep.subr.mxu0 0.0
    %1258 = vmatpush1.msra.mxu0 0.0
    %1259 = vmatprep.subr.mxu0 0.0
    %1260 = vmatpush1.msra.mxu0 0.0
    %1261 = vmatprep.subr.mxu0 0.0
    %1262 = vmatpush1.msra.mxu0 0.0
    %1263 = vmatprep.subr.mxu0 0.0
    %1264 = vmatpush1.msra.mxu0 0.0
    %1265 = vmatprep.subr.mxu0 0.0
    %1266 = vmatpush1.msra.mxu0 0.0
    %1267 = vmatprep.subr.mxu0 0.0
    %1268 = vmatpush1.msra.mxu0 0.0
    %1269 = vmatprep.subr.mxu0 0.0
    %1270 = vmatpush1.msra.mxu0 0.0
    %1271 = vmatprep.subr.mxu0 0.0
    %1272 = vmatpush1.msra.mxu0 0.0
    %1273 = vmatprep.mubr.f32.mxu0 0.0
    %1274 = vmatmul.mubr.f32.gmra.mrb[0].mxu0 %v1207
    %v1275 = vpop.f32.mrb[0].mxu0
    %v1276 = vadd.f32 0.0, %v1275
    %v1277 = vpop.f32.mrb[0].mxu0
    %1278 = vdwg.mxu0
    %v1280 = vsel %vm434, %v1127, 0
    %1282 = vmatprep.subr.mxu0 0.0
    %1283 = vmatpush1.msra.mxu0 %v417
    %1284 = vmatprep.subr.mxu0 0.0
    %1285 = vmatpush1.msra.mxu0 0.0
    %1286 = vmatprep.subr.mxu0 0.0
    %1287 = vmatpush1.msra.mxu0 0.0
    %1288 = vmatprep.subr.mxu0 0.0
    %1289 = vmatpush1.msra.mxu0 0.0
    %1290 = vmatprep.subr.mxu0 0.0
    %1291 = vmatpush1.msra.mxu0 0.0
    %1292 = vmatprep.subr.mxu0 0.0
    %1293 = vmatpush1.msra.mxu0 0.0
    %1294 = vmatprep.subr.mxu0 0.0
    %1295 = vmatpush1.msra.mxu0 0.0
    %1296 = vmatprep.subr.mxu0 0.0
    %1297 = vmatpush1.msra.mxu0 0.0
    %1298 = vmatprep.subr.mxu0 0.0
    %1299 = vmatpush1.msra.mxu0 0.0
    %1300 = vmatprep.subr.mxu0 0.0
    %1301 = vmatpush1.msra.mxu0 0.0
    %1302 = vmatprep.subr.mxu0 0.0
    %1303 = vmatpush1.msra.mxu0 0.0
    %1304 = vmatprep.subr.mxu0 0.0
    %1305 = vmatpush1.msra.mxu0 0.0
    %1306 = vmatprep.subr.mxu0 0.0
    %1307 = vmatpush1.msra.mxu0 0.0
    %1308 = vmatprep.subr.mxu0 0.0
    %1309 = vmatpush1.msra.mxu0 0.0
    %1310 = vmatprep.subr.mxu0 0.0
    %1311 = vmatpush1.msra.mxu0 0.0
    %1312 = vmatprep.subr.mxu0 0.0
    %1313 = vmatpush1.msra.mxu0 0.0
    %1314 = vmatprep.subr.mxu0 0.0
    %1315 = vmatpush1.msra.mxu0 0.0
    %1316 = vmatprep.subr.mxu0 0.0
    %1317 = vmatpush1.msra.mxu0 0.0
    %1318 = vmatprep.subr.mxu0 0.0
    %1319 = vmatpush1.msra.mxu0 0.0
    %1320 = vmatprep.subr.mxu0 0.0
    %1321 = vmatpush1.msra.mxu0 0.0
    %1322 = vmatprep.subr.mxu0 0.0
    %1323 = vmatpush1.msra.mxu0 0.0
    %1324 = vmatprep.subr.mxu0 0.0
    %1325 = vmatpush1.msra.mxu0 0.0
    %1326 = vmatprep.subr.mxu0 0.0
    %1327 = vmatpush1.msra.mxu0 0.0
    %1328 = vmatprep.subr.mxu0 0.0
    %1329 = vmatpush1.msra.mxu0 0.0
    %1330 = vmatprep.subr.mxu0 0.0
    %1331 = vmatpush1.msra.mxu0 0.0
    %1332 = vmatprep.subr.mxu0 0.0
    %1333 = vmatpush1.msra.mxu0 0.0
    %1334 = vmatprep.subr.mxu0 0.0
    %1335 = vmatpush1.msra.mxu0 0.0
    %1336 = vmatprep.subr.mxu0 0.0
    %1337 = vmatpush1.msra.mxu0 0.0
    %1338 = vmatprep.subr.mxu0 0.0
    %1339 = vmatpush1.msra.mxu0 0.0
    %1340 = vmatprep.subr.mxu0 0.0
    %1341 = vmatpush1.msra.mxu0 0.0
    %1342 = vmatprep.subr.mxu0 0.0
    %1343 = vmatpush1.msra.mxu0 0.0
    %1344 = vmatprep.subr.mxu0 0.0
    %1345 = vmatpush1.msra.mxu0 0.0
    %1346 = vmatprep.mubr.f32.mxu0 0.0
    %1347 = vmatmul.mubr.f32.gmra.mrb[0].mxu0 %v1280
    %v1348 = vpop.f32.mrb[0].mxu0
    %v1349 = vadd.f32 0.0, %v1348
    %v1350 = vpop.f32.mrb[0].mxu0
    %1351 = vdwg.mxu0
    %v1353 = vsel %vm434, %v1128, 0
    %1355 = vmatprep.subr.mxu0 0.0
    %1356 = vmatpush1.msra.mxu0 %v419
    %1357 = vmatprep.subr.mxu0 0.0
    %1358 = vmatpush1.msra.mxu0 0.0
    %1359 = vmatprep.subr.mxu0 0.0
    %1360 = vmatpush1.msra.mxu0 0.0
    %1361 = vmatprep.subr.mxu0 0.0
    %1362 = vmatpush1.msra.mxu0 0.0
    %1363 = vmatprep.subr.mxu0 0.0
    %1364 = vmatpush1.msra.mxu0 0.0
    %1365 = vmatprep.subr.mxu0 0.0
    %1366 = vmatpush1.msra.mxu0 0.0
    %1367 = vmatprep.subr.mxu0 0.0
    %1368 = vmatpush1.msra.mxu0 0.0
    %1369 = vmatprep.subr.mxu0 0.0
    %1370 = vmatpush1.msra.mxu0 0.0
    %1371 = vmatprep.subr.mxu0 0.0
    %1372 = vmatpush1.msra.mxu0 0.0
    %1373 = vmatprep.subr.mxu0 0.0
    %1374 = vmatpush1.msra.mxu0 0.0
    %1375 = vmatprep.subr.mxu0 0.0
    %1376 = vmatpush1.msra.mxu0 0.0
    %1377 = vmatprep.subr.mxu0 0.0
    %1378 = vmatpush1.msra.mxu0 0.0
    %1379 = vmatprep.subr.mxu0 0.0
    %1380 = vmatpush1.msra.mxu0 0.0
    %1381 = vmatprep.subr.mxu0 0.0
    %1382 = vmatpush1.msra.mxu0 0.0
    %1383 = vmatprep.subr.mxu0 0.0
    %1384 = vmatpush1.msra.mxu0 0.0
    %1385 = vmatprep.subr.mxu0 0.0
    %1386 = vmatpush1.msra.mxu0 0.0
    %1387 = vmatprep.subr.mxu0 0.0
    %1388 = vmatpush1.msra.mxu0 0.0
    %1389 = vmatprep.subr.mxu0 0.0
    %1390 = vmatpush1.msra.mxu0 0.0
    %1391 = vmatprep.subr.mxu0 0.0
    %1392 = vmatpush1.msra.mxu0 0.0
    %1393 = vmatprep.subr.mxu0 0.0
    %1394 = vmatpush1.msra.mxu0 0.0
    %1395 = vmatprep.subr.mxu0 0.0
    %1396 = vmatpush1.msra.mxu0 0.0
    %1397 = vmatprep.subr.mxu0 0.0
    %1398 = vmatpush1.msra.mxu0 0.0
    %1399 = vmatprep.subr.mxu0 0.0
    %1400 = vmatpush1.msra.mxu0 0.0
    %1401 = vmatprep.subr.mxu0 0.0
    %1402 = vmatpush1.msra.mxu0 0.0
    %1403 = vmatprep.subr.mxu0 0.0
    %1404 = vmatpush1.msra.mxu0 0.0
    %1405 = vmatprep.subr.mxu0 0.0
    %1406 = vmatpush1.msra.mxu0 0.0
    %1407 = vmatprep.subr.mxu0 0.0
    %1408 = vmatpush1.msra.mxu0 0.0
    %1409 = vmatprep.subr.mxu0 0.0
    %1410 = vmatpush1.msra.mxu0 0.0
    %1411 = vmatprep.subr.mxu0 0.0
    %1412 = vmatpush1.msra.mxu0 0.0
    %1413 = vmatprep.subr.mxu0 0.0
    %1414 = vmatpush1.msra.mxu0 0.0
    %1415 = vmatprep.subr.mxu0 0.0
    %1416 = vmatpush1.msra.mxu0 0.0
    %1417 = vmatprep.subr.mxu0 0.0
    %1418 = vmatpush1.msra.mxu0 0.0
    %1419 = vmatprep.mubr.f32.mxu0 0.0
    %1420 = vmatmul.mubr.f32.gmra.mrb[0].mxu0 %v1353
    %v1421 = vpop.f32.mrb[0].mxu0
    %v1422 = vadd.f32 0.0, %v1421
    %v1423 = vpop.f32.mrb[0].mxu0
    %1424 = vdwg.mxu0
    %v1426 = vsel %vm434, %v1129, 0
    %1428 = vmatprep.subr.mxu0 0.0
    %1429 = vmatpush1.msra.mxu0 %v423
    %1430 = vmatprep.subr.mxu0 0.0
    %1431 = vmatpush1.msra.mxu0 0.0
    %1432 = vmatprep.subr.mxu0 0.0
    %1433 = vmatpush1.msra.mxu0 0.0
    %1434 = vmatprep.subr.mxu0 0.0
    %1435 = vmatpush1.msra.mxu0 0.0
    %1436 = vmatprep.subr.mxu0 0.0
    %1437 = vmatpush1.msra.mxu0 0.0
    %1438 = vmatprep.subr.mxu0 0.0
    %1439 = vmatpush1.msra.mxu0 0.0
    %1440 = vmatprep.subr.mxu0 0.0
    %1441 = vmatpush1.msra.mxu0 0.0
    %1442 = vmatprep.subr.mxu0 0.0
    %1443 = vmatpush1.msra.mxu0 0.0
    %1444 = vmatprep.subr.mxu0 0.0
    %1445 = vmatpush1.msra.mxu0 0.0
    %1446 = vmatprep.subr.mxu0 0.0
    %1447 = vmatpush1.msra.mxu0 0.0
    %1448 = vmatprep.subr.mxu0 0.0
    %1449 = vmatpush1.msra.mxu0 0.0
    %1450 = vmatprep.subr.mxu0 0.0
    %1451 = vmatpush1.msra.mxu0 0.0
    %1452 = vmatprep.subr.mxu0 0.0
    %1453 = vmatpush1.msra.mxu0 0.0
    %1454 = vmatprep.subr.mxu0 0.0
    %1455 = vmatpush1.msra.mxu0 0.0
    %1456 = vmatprep.subr.mxu0 0.0
    %1457 = vmatpush1.msra.mxu0 0.0
    %1458 = vmatprep.subr.mxu0 0.0
    %1459 = vmatpush1.msra.mxu0 0.0
    %1460 = vmatprep.subr.mxu0 0.0
    %1461 = vmatpush1.msra.mxu0 0.0
    %1462 = vmatprep.subr.mxu0 0.0
    %1463 = vmatpush1.msra.mxu0 0.0
    %1464 = vmatprep.subr.mxu0 0.0
    %1465 = vmatpush1.msra.mxu0 0.0
    %1466 = vmatprep.subr.mxu0 0.0
    %1467 = vmatpush1.msra.mxu0 0.0
    %1468 = vmatprep.subr.mxu0 0.0
    %1469 = vmatpush1.msra.mxu0 0.0
    %1470 = vmatprep.subr.mxu0 0.0
    %1471 = vmatpush1.msra.mxu0 0.0
    %1472 = vmatprep.subr.mxu0 0.0
    %1473 = vmatpush1.msra.mxu0 0.0
    %1474 = vmatprep.subr.mxu0 0.0
    %1475 = vmatpush1.msra.mxu0 0.0
    %1476 = vmatprep.subr.mxu0 0.0
    %1477 = vmatpush1.msra.mxu0 0.0
    %1478 = vmatprep.subr.mxu0 0.0
    %1479 = vmatpush1.msra.mxu0 0.0
    %1480 = vmatprep.subr.mxu0 0.0
    %1481 = vmatpush1.msra.mxu0 0.0
    %1482 = vmatprep.subr.mxu0 0.0
    %1483 = vmatpush1.msra.mxu0 0.0
    %1484 = vmatprep.subr.mxu0 0.0
    %1485 = vmatpush1.msra.mxu0 0.0
    %1486 = vmatprep.subr.mxu0 0.0
    %1487 = vmatpush1.msra.mxu0 0.0
    %1488 = vmatprep.subr.mxu0 0.0
    %1489 = vmatpush1.msra.mxu0 0.0
    %1490 = vmatprep.subr.mxu0 0.0
    %1491 = vmatpush1.msra.mxu0 0.0
    %1492 = vmatprep.mubr.f32.mxu0 0.0
    %1493 = vmatmul.mubr.f32.gmra.mrb[0].mxu0 %v1426
    %v1494 = vpop.f32.mrb[0].mxu0
    %v1495 = vadd.f32 0.0, %v1494
    %v1496 = vpop.f32.mrb[0].mxu0
    %1497 = vdwg.mxu0
    %v1499 = vsel %vm434, %v1130, 0
    %1501 = vmatprep.subr.mxu0 0.0
    %1502 = vmatpush1.msra.mxu0 %v425
    %1503 = vmatprep.subr.mxu0 0.0
    %1504 = vmatpush1.msra.mxu0 0.0
    %1505 = vmatprep.subr.mxu0 0.0
    %1506 = vmatpush1.msra.mxu0 0.0
    %1507 = vmatprep.subr.mxu0 0.0
    %1508 = vmatpush1.msra.mxu0 0.0
    %1509 = vmatprep.subr.mxu0 0.0
    %1510 = vmatpush1.msra.mxu0 0.0
    %1511 = vmatprep.subr.mxu0 0.0
    %1512 = vmatpush1.msra.mxu0 0.0
    %1513 = vmatprep.subr.mxu0 0.0
    %1514 = vmatpush1.msra.mxu0 0.0
    %1515 = vmatprep.subr.mxu0 0.0
    %1516 = vmatpush1.msra.mxu0 0.0
    %1517 = vmatprep.subr.mxu0 0.0
    %1518 = vmatpush1.msra.mxu0 0.0
    %1519 = vmatprep.subr.mxu0 0.0
    %1520 = vmatpush1.msra.mxu0 0.0
    %1521 = vmatprep.subr.mxu0 0.0
    %1522 = vmatpush1.msra.mxu0 0.0
    %1523 = vmatprep.subr.mxu0 0.0
    %1524 = vmatpush1.msra.mxu0 0.0
    %1525 = vmatprep.subr.mxu0 0.0
    %1526 = vmatpush1.msra.mxu0 0.0
    %1527 = vmatprep.subr.mxu0 0.0
    %1528 = vmatpush1.msra.mxu0 0.0
    %1529 = vmatprep.subr.mxu0 0.0
    %1530 = vmatpush1.msra.mxu0 0.0
    %1531 = vmatprep.subr.mxu0 0.0
    %1532 = vmatpush1.msra.mxu0 0.0
    %1533 = vmatprep.subr.mxu0 0.0
    %1534 = vmatpush1.msra.mxu0 0.0
    %1535 = vmatprep.subr.mxu0 0.0
    %1536 = vmatpush1.msra.mxu0 0.0
    %1537 = vmatprep.subr.mxu0 0.0
    %1538 = vmatpush1.msra.mxu0 0.0
    %1539 = vmatprep.subr.mxu0 0.0
    %1540 = vmatpush1.msra.mxu0 0.0
    %1541 = vmatprep.subr.mxu0 0.0
    %1542 = vmatpush1.msra.mxu0 0.0
    %1543 = vmatprep.subr.mxu0 0.0
    %1544 = vmatpush1.msra.mxu0 0.0
    %1545 = vmatprep.subr.mxu0 0.0
    %1546 = vmatpush1.msra.mxu0 0.0
    %1547 = vmatprep.subr.mxu0 0.0
    %1548 = vmatpush1.msra.mxu0 0.0
    %1549 = vmatprep.subr.mxu0 0.0
    %1550 = vmatpush1.msra.mxu0 0.0
    %1551 = vmatprep.subr.mxu0 0.0
    %1552 = vmatpush1.msra.mxu0 0.0
    %1553 = vmatprep.subr.mxu0 0.0
    %1554 = vmatpush1.msra.mxu0 0.0
    %1555 = vmatprep.subr.mxu0 0.0
    %1556 = vmatpush1.msra.mxu0 0.0
    %1557 = vmatprep.subr.mxu0 0.0
    %1558 = vmatpush1.msra.mxu0 0.0
    %1559 = vmatprep.subr.mxu0 0.0
    %1560 = vmatpush1.msra.mxu0 0.0
    %1561 = vmatprep.subr.mxu0 0.0
    %1562 = vmatpush1.msra.mxu0 0.0
    %1563 = vmatprep.subr.mxu0 0.0
    %1564 = vmatpush1.msra.mxu0 0.0
    %1565 = vmatprep.mubr.f32.mxu0 0.0
    %1566 = vmatmul.mubr.f32.gmra.mrb[0].mxu0 %v1499
    %v1567 = vpop.f32.mrb[0].mxu0
    %v1568 = vadd.f32 0.0, %v1567
    %v1569 = vpop.f32.mrb[0].mxu0
    %1570 = vdwg.mxu0
    %v1572 = vsel %vm434, %v1131, 0
    %1574 = vmatprep.subr.mxu0 0.0
    %1575 = vmatpush1.msra.mxu0 %v429
    %1576 = vmatprep.subr.mxu0 0.0
    %1577 = vmatpush1.msra.mxu0 0.0
    %1578 = vmatprep.subr.mxu0 0.0
    %1579 = vmatpush1.msra.mxu0 0.0
    %1580 = vmatprep.subr.mxu0 0.0
    %1581 = vmatpush1.msra.mxu0 0.0
    %1582 = vmatprep.subr.mxu0 0.0
    %1583 = vmatpush1.msra.mxu0 0.0
    %1584 = vmatprep.subr.mxu0 0.0
    %1585 = vmatpush1.msra.mxu0 0.0
    %1586 = vmatprep.subr.mxu0 0.0
    %1587 = vmatpush1.msra.mxu0 0.0
    %1588 = vmatprep.subr.mxu0 0.0
    %1589 = vmatpush1.msra.mxu0 0.0
    %1590 = vmatprep.subr.mxu0 0.0
    %1591 = vmatpush1.msra.mxu0 0.0
    %1592 = vmatprep.subr.mxu0 0.0
    %1593 = vmatpush1.msra.mxu0 0.0
    %1594 = vmatprep.subr.mxu0 0.0
    %1595 = vmatpush1.msra.mxu0 0.0
    %1596 = vmatprep.subr.mxu0 0.0
    %1597 = vmatpush1.msra.mxu0 0.0
    %1598 = vmatprep.subr.mxu0 0.0
    %1599 = vmatpush1.msra.mxu0 0.0
    %1600 = vmatprep.subr.mxu0 0.0
    %1601 = vmatpush1.msra.mxu0 0.0
    %1602 = vmatprep.subr.mxu0 0.0
    %1603 = vmatpush1.msra.mxu0 0.0
    %1604 = vmatprep.subr.mxu0 0.0
    %1605 = vmatpush1.msra.mxu0 0.0
    %1606 = vmatprep.subr.mxu0 0.0
    %1607 = vmatpush1.msra.mxu0 0.0
    %1608 = vmatprep.subr.mxu0 0.0
    %1609 = vmatpush1.msra.mxu0 0.0
    %1610 = vmatprep.subr.mxu0 0.0
    %1611 = vmatpush1.msra.mxu0 0.0
    %1612 = vmatprep.subr.mxu0 0.0
    %1613 = vmatpush1.msra.mxu0 0.0
    %1614 = vmatprep.subr.mxu0 0.0
    %1615 = vmatpush1.msra.mxu0 0.0
    %1616 = vmatprep.subr.mxu0 0.0
    %1617 = vmatpush1.msra.mxu0 0.0
    %1618 = vmatprep.subr.mxu0 0.0
    %1619 = vmatpush1.msra.mxu0 0.0
    %1620 = vmatprep.subr.mxu0 0.0
    %1621 = vmatpush1.msra.mxu0 0.0
    %1622 = vmatprep.subr.mxu0 0.0
    %1623 = vmatpush1.msra.mxu0 0.0
    %1624 = vmatprep.subr.mxu0 0.0
    %1625 = vmatpush1.msra.mxu0 0.0
    %1626 = vmatprep.subr.mxu0 0.0
    %1627 = vmatpush1.msra.mxu0 0.0
    %1628 = vmatprep.subr.mxu0 0.0
    %1629 = vmatpush1.msra.mxu0 0.0
    %1630 = vmatprep.subr.mxu0 0.0
    %1631 = vmatpush1.msra.mxu0 0.0
    %1632 = vmatprep.subr.mxu0 0.0
    %1633 = vmatpush1.msra.mxu0 0.0
    %1634 = vmatprep.subr.mxu0 0.0
    %1635 = vmatpush1.msra.mxu0 0.0
    %1636 = vmatprep.subr.mxu0 0.0
    %1637 = vmatpush1.msra.mxu0 0.0
    %1638 = vmatprep.mubr.f32.mxu0 0.0
    %1639 = vmatmul.mubr.f32.gmra.mrb[0].mxu0 %v1572
    %v1640 = vpop.f32.mrb[0].mxu0
    %v1641 = vadd.f32 0.0, %v1640
    %v1642 = vpop.f32.mrb[0].mxu0
    %1643 = vdwg.mxu0
    %v1645 = vsel %vm434, %v1132, 0
    %1647 = vmatprep.subr.mxu0 0.0
    %1648 = vmatpush1.msra.mxu0 %v431
    %1649 = vmatprep.subr.mxu0 0.0
    %1650 = vmatpush1.msra.mxu0 0.0
    %1651 = vmatprep.subr.mxu0 0.0
    %1652 = vmatpush1.msra.mxu0 0.0
    %1653 = vmatprep.subr.mxu0 0.0
    %1654 = vmatpush1.msra.mxu0 0.0
    %1655 = vmatprep.subr.mxu0 0.0
    %1656 = vmatpush1.msra.mxu0 0.0
    %1657 = vmatprep.subr.mxu0 0.0
    %1658 = vmatpush1.msra.mxu0 0.0
    %1659 = vmatprep.subr.mxu0 0.0
    %1660 = vmatpush1.msra.mxu0 0.0
    %1661 = vmatprep.subr.mxu0 0.0
    %1662 = vmatpush1.msra.mxu0 0.0
    %1663 = vmatprep.subr.mxu0 0.0
    %1664 = vmatpush1.msra.mxu0 0.0
    %1665 = vmatprep.subr.mxu0 0.0
    %1666 = vmatpush1.msra.mxu0 0.0
    %1667 = vmatprep.subr.mxu0 0.0
    %1668 = vmatpush1.msra.mxu0 0.0
    %1669 = vmatprep.subr.mxu0 0.0
    %1670 = vmatpush1.msra.mxu0 0.0
    %1671 = vmatprep.subr.mxu0 0.0
    %1672 = vmatpush1.msra.mxu0 0.0
    %1673 = vmatprep.subr.mxu0 0.0
    %1674 = vmatpush1.msra.mxu0 0.0
    %1675 = vmatprep.subr.mxu0 0.0
    %1676 = vmatpush1.msra.mxu0 0.0
    %1677 = vmatprep.subr.mxu0 0.0
    %1678 = vmatpush1.msra.mxu0 0.0
    %1679 = vmatprep.subr.mxu0 0.0
    %1680 = vmatpush1.msra.mxu0 0.0
    %1681 = vmatprep.subr.mxu0 0.0
    %1682 = vmatpush1.msra.mxu0 0.0
    %1683 = vmatprep.subr.mxu0 0.0
    %1684 = vmatpush1.msra.mxu0 0.0
    %1685 = vmatprep.subr.mxu0 0.0
    %1686 = vmatpush1.msra.mxu0 0.0
    %1687 = vmatprep.subr.mxu0 0.0
    %1688 = vmatpush1.msra.mxu0 0.0
    %1689 = vmatprep.subr.mxu0 0.0
    %1690 = vmatpush1.msra.mxu0 0.0
    %1691 = vmatprep.subr.mxu0 0.0
    %1692 = vmatpush1.msra.mxu0 0.0
    %1693 = vmatprep.subr.mxu0 0.0
    %1694 = vmatpush1.msra.mxu0 0.0
    %1695 = vmatprep.subr.mxu0 0.0
    %1696 = vmatpush1.msra.mxu0 0.0
    %1697 = vmatprep.subr.mxu0 0.0
    %1698 = vmatpush1.msra.mxu0 0.0
    %1699 = vmatprep.subr.mxu0 0.0
    %1700 = vmatpush1.msra.mxu0 0.0
    %1701 = vmatprep.subr.mxu0 0.0
    %1702 = vmatpush1.msra.mxu0 0.0
    %1703 = vmatprep.subr.mxu0 0.0
    %1704 = vmatpush1.msra.mxu0 0.0
    %1705 = vmatprep.subr.mxu0 0.0
    %1706 = vmatpush1.msra.mxu0 0.0
    %1707 = vmatprep.subr.mxu0 0.0
    %1708 = vmatpush1.msra.mxu0 0.0
    %1709 = vmatprep.subr.mxu0 0.0
    %1710 = vmatpush1.msra.mxu0 0.0
    %1711 = vmatprep.mubr.f32.mxu0 0.0
    %1712 = vmatmul.mubr.f32.gmra.mrb[0].mxu0 %v1645
    %v1713 = vpop.f32.mrb[0].mxu0
    %v1714 = vadd.f32 0.0, %v1713
    %v1715 = vpop.f32.mrb[0].mxu0
    %1716 = vdwg.mxu0
    %1719 = vrot.lane.b32.xlu0 %v1349, 8
    %v1720 = vpop.permute.xlu0 %1719
    %1721 = vrot.lane.b32.xlu0 %v1422, 8
    %v1722 = vpop.permute.xlu0 %1721
    %1727 = vrot.lane.b32.xlu0 %v1495, 16
    %v1728 = vpop.permute.xlu0 %1727
    %1729 = vrot.lane.b32.xlu0 %v1568, 16
    %v1730 = vpop.permute.xlu0 %1729
    %1735 = vrot.lane.b32.xlu0 %v1641, 24
    %v1736 = vpop.permute.xlu0 %1735
    %1737 = vrot.lane.b32.xlu0 %v1714, 24
    %v1738 = vpop.permute.xlu0 %1737
    %v1741 = vsel %vm434, %v1203, %v1720
    %v1742 = vsel %vm434, %v1276, %v1722
    %vm1743 = vcmask 130048
    %v1744 = vsel %vm1743, %v1741, %v1728
    %v1745 = vsel %vm1743, %v1742, %v1730
    %vm1746 = vcmask 195584
    %v1747 = vsel %vm1746, %v1744, %v1736
    %v1748 = vsel %vm1746, %v1745, %v1738
    %v1749 = vld [vmem:[%s9] sm:$0xff]
    %v1750 = vld [vmem:[%s9 + $0x8] sm:$0xff]
    %v1751 = vld [vmem:[%s9 + $0x10] sm:$0xff]
    %v1752 = vld [vmem:[%s9 + $0x18] sm:$0xff]
    %v1753 = vld [vmem:[%s10] sm:$0x1]
    %v1755 = vlaneseq
    %v1756 = vshrl.u32 %v1755, 7
    %v1757 = vsub.s32 0, %v1756
    %v1758 = vrot.slane %v1753, %v1757
    %v1761 = vsel %vm78, %v1747, 0
    %v1764 = vsel %vm78, %v1748, 0
    %1766 = vmatprep.subr.mxu0 0.0
    %1767 = vmatpush1.msra.mxu0 %v1749
    %1768 = vmatprep.subr.mxu0 0.0
    %1769 = vmatpush1.msra.mxu0 %v1750
    %1770 = vmatprep.subr.mxu0 0.0
    %1771 = vmatpush1.msra.mxu0 %v1751
    %1772 = vmatprep.subr.mxu0 0.0
    %1773 = vmatpush1.msra.mxu0 %v1752
    %1774 = vmatprep.subr.mxu0 0.0
    %1775 = vmatpush1.msra.mxu0 0.0
    %1776 = vmatprep.subr.mxu0 0.0
    %1777 = vmatpush1.msra.mxu0 0.0
    %1778 = vmatprep.subr.mxu0 0.0
    %1779 = vmatpush1.msra.mxu0 0.0
    %1780 = vmatprep.subr.mxu0 0.0
    %1781 = vmatpush1.msra.mxu0 0.0
    %1782 = vmatprep.subr.mxu0 0.0
    %1783 = vmatpush1.msra.mxu0 0.0
    %1784 = vmatprep.subr.mxu0 0.0
    %1785 = vmatpush1.msra.mxu0 0.0
    %1786 = vmatprep.subr.mxu0 0.0
    %1787 = vmatpush1.msra.mxu0 0.0
    %1788 = vmatprep.subr.mxu0 0.0
    %1789 = vmatpush1.msra.mxu0 0.0
    %1790 = vmatprep.subr.mxu0 0.0
    %1791 = vmatpush1.msra.mxu0 0.0
    %1792 = vmatprep.subr.mxu0 0.0
    %1793 = vmatpush1.msra.mxu0 0.0
    %1794 = vmatprep.subr.mxu0 0.0
    %1795 = vmatpush1.msra.mxu0 0.0
    %1796 = vmatprep.subr.mxu0 0.0
    %1797 = vmatpush1.msra.mxu0 0.0
    %1798 = vmatprep.subr.mxu0 0.0
    %1799 = vmatpush1.msra.mxu0 0.0
    %1800 = vmatprep.subr.mxu0 0.0
    %1801 = vmatpush1.msra.mxu0 0.0
    %1802 = vmatprep.subr.mxu0 0.0
    %1803 = vmatpush1.msra.mxu0 0.0
    %1804 = vmatprep.subr.mxu0 0.0
    %1805 = vmatpush1.msra.mxu0 0.0
    %1806 = vmatprep.subr.mxu0 0.0
    %1807 = vmatpush1.msra.mxu0 0.0
    %1808 = vmatprep.subr.mxu0 0.0
    %1809 = vmatpush1.msra.mxu0 0.0
    %1810 = vmatprep.subr.mxu0 0.0
    %1811 = vmatpush1.msra.mxu0 0.0
    %1812 = vmatprep.subr.mxu0 0.0
    %1813 = vmatpush1.msra.mxu0 0.0
    %1814 = vmatprep.subr.mxu0 0.0
    %1815 = vmatpush1.msra.mxu0 0.0
    %1816 = vmatprep.subr.mxu0 0.0
    %1817 = vmatpush1.msra.mxu0 0.0
    %1818 = vmatprep.subr.mxu0 0.0
    %1819 = vmatpush1.msra.mxu0 0.0
    %1820 = vmatprep.subr.mxu0 0.0
    %1821 = vmatpush1.msra.mxu0 0.0
    %1822 = vmatprep.subr.mxu0 0.0
    %1823 = vmatpush1.msra.mxu0 0.0
    %1824 = vmatprep.subr.mxu0 0.0
    %1825 = vmatpush1.msra.mxu0 0.0
    %1826 = vmatprep.subr.mxu0 0.0
    %1827 = vmatpush1.msra.mxu0 0.0
    %1828 = vmatprep.subr.mxu0 0.0
    %1829 = vmatpush1.msra.mxu0 0.0
    %1830 = vmatprep.mubr.f32.mxu0 0.0
    %1831 = vmatmul.mubr.f32.gmra.mrb[0].mxu0 %v1761
    %v1832 = vpop.f32.mrb[0].mxu0
    %v1833 = vadd.f32 %v1758, %v1832
    %v1834 = vpop.f32.mrb[0].mxu0
    %1835 = vmatprep.mubr.f32.mxu0 0.0
    %1836 = vmatmul.mubr.f32.gmra.mrb[0].mxu0 %v1764
    %v1837 = vpop.f32.mrb[0].mxu0
    %v1838 = vadd.f32 %v1758, %v1837
    %v1839 = vpop.f32.mrb[0].mxu0
    %1840 = vdwg.mxu0
    %v1841 = vadd.f32 %v69, %v1833
    %v1842 = vadd.f32 %v70, %v1838
    %v1843 = vld [vmem:[%s11] sm:$0x1]
    %v1844 = vld [vmem:[%s12] sm:$0x1]
    %v1845 = vsel %vm78, %v1841, 0.0
    %1846 = vadd.xlane.f32.xlu0 %v1845
    %v1847 = vpop.xlane.xlu0 %1846
    %v1848 = vsel %vm78, %v1842, 0.0
    %1849 = vadd.xlane.f32.xlu0 %v1848
    %v1850 = vpop.xlane.xlu0 %1849
    %v1851 = vmul.f32 %v1847, %v85
    %v1852 = vmul.f32 %v1850, %v85
    %v1853 = vsub.f32 %v1841, %v1851
    %v1854 = vsub.f32 %v1842, %v1852
    %v1855 = vmul.f32 %v1853, %v1853
    %v1856 = vmul.f32 %v1854, %v1854
    %v1857 = vsel %vm78, %v1855, 0.0
    %1858 = vadd.xlane.f32.xlu0 %v1857
    %v1859 = vpop.xlane.xlu0 %1858
    %v1860 = vsel %vm78, %v1856, 0.0
    %1861 = vadd.xlane.f32.xlu0 %v1860
    %v1862 = vpop.xlane.xlu0 %1861
    %v1863 = vmul.f32 %v1859, %v85
    %v1864 = vmul.f32 %v1862, %v85
    %v1865 = vadd.f32 %v1863, 1e-05
    %v1866 = vadd.f32 %v1864, 1e-05
    %v1867 = vrsqrt.pop %v1865
    %v1868 = vrsqrt.pop %v1866
    %v1869 = vmul.f32 %v1853, %v1867
    %v1870 = vmul.f32 %v1854, %v1868
    %v1872 = vlaneseq
    %v1873 = vshrl.u32 %v1872, 7
    %v1874 = vsub.s32 0, %v1873
    %v1875 = vrot.slane %v1843, %v1874
    %v1877 = vmul.f32 %v1869, %v1875
    %v1878 = vmul.f32 %v1870, %v1875
    %v1880 = vlaneseq
    %v1881 = vshrl.u32 %v1880, 7
    %v1882 = vsub.s32 0, %v1881
    %v1883 = vrot.slane %v1844, %v1882
    %v1885 = vadd.f32 %v1877, %v1883
    %v1886 = vadd.f32 %v1878, %v1883
    %v1887 = vld [vmem:[%s13] sm:$0xff]
    %v1888 = vld [vmem:[%s13 + $0x8] sm:$0xff]
    %v1889 = vld [vmem:[%s13 + $0x10] sm:$0xff]
    %v1890 = vld [vmem:[%s13 + $0x18] sm:$0xff]
    %v1891 = vld [vmem:[%s14] sm:$0x1]
    %v1893 = vlaneseq
    %v1894 = vshrl.u32 %v1893, 7
    %v1895 = vsub.s32 0, %v1894
    %v1896 = vrot.slane %v1891, %v1895
    %v1899 = vsel %vm78, %v1885, 0
    %v1902 = vsel %vm78, %v1886, 0
    %1904 = vmatprep.subr.mxu0 0.0
    %1905 = vmatpush1.msra.mxu0 %v1887
    %1906 = vmatprep.subr.mxu0 0.0
    %1907 = vmatpush1.msra.mxu0 %v1888
    %1908 = vmatprep.subr.mxu0 0.0
    %1909 = vmatpush1.msra.mxu0 %v1889
    %1910 = vmatprep.subr.mxu0 0.0
    %1911 = vmatpush1.msra.mxu0 %v1890
    %1912 = vmatprep.subr.mxu0 0.0
    %1913 = vmatpush1.msra.mxu0 0.0
    %1914 = vmatprep.subr.mxu0 0.0
    %1915 = vmatpush1.msra.mxu0 0.0
    %1916 = vmatprep.subr.mxu0 0.0
    %1917 = vmatpush1.msra.mxu0 0.0
    %1918 = vmatprep.subr.mxu0 0.0
    %1919 = vmatpush1.msra.mxu0 0.0
    %1920 = vmatprep.subr.mxu0 0.0
    %1921 = vmatpush1.msra.mxu0 0.0
    %1922 = vmatprep.subr.mxu0 0.0
    %1923 = vmatpush1.msra.mxu0 0.0
    %1924 = vmatprep.subr.mxu0 0.0
    %1925 = vmatpush1.msra.mxu0 0.0
    %1926 = vmatprep.subr.mxu0 0.0
    %1927 = vmatpush1.msra.mxu0 0.0
    %1928 = vmatprep.subr.mxu0 0.0
    %1929 = vmatpush1.msra.mxu0 0.0
    %1930 = vmatprep.subr.mxu0 0.0
    %1931 = vmatpush1.msra.mxu0 0.0
    %1932 = vmatprep.subr.mxu0 0.0
    %1933 = vmatpush1.msra.mxu0 0.0
    %1934 = vmatprep.subr.mxu0 0.0
    %1935 = vmatpush1.msra.mxu0 0.0
    %1936 = vmatprep.subr.mxu0 0.0
    %1937 = vmatpush1.msra.mxu0 0.0
    %1938 = vmatprep.subr.mxu0 0.0
    %1939 = vmatpush1.msra.mxu0 0.0
    %1940 = vmatprep.subr.mxu0 0.0
    %1941 = vmatpush1.msra.mxu0 0.0
    %1942 = vmatprep.subr.mxu0 0.0
    %1943 = vmatpush1.msra.mxu0 0.0
    %1944 = vmatprep.subr.mxu0 0.0
    %1945 = vmatpush1.msra.mxu0 0.0
    %1946 = vmatprep.subr.mxu0 0.0
    %1947 = vmatpush1.msra.mxu0 0.0
    %1948 = vmatprep.subr.mxu0 0.0
    %1949 = vmatpush1.msra.mxu0 0.0
    %1950 = vmatprep.subr.mxu0 0.0
    %1951 = vmatpush1.msra.mxu0 0.0
    %1952 = vmatprep.subr.mxu0 0.0
    %1953 = vmatpush1.msra.mxu0 0.0
    %1954 = vmatprep.subr.mxu0 0.0
    %1955 = vmatpush1.msra.mxu0 0.0
    %1956 = vmatprep.subr.mxu0 0.0
    %1957 = vmatpush1.msra.mxu0 0.0
    %1958 = vmatprep.subr.mxu0 0.0
    %1959 = vmatpush1.msra.mxu0 0.0
    %1960 = vmatprep.subr.mxu0 0.0
    %1961 = vmatpush1.msra.mxu0 0.0
    %1962 = vmatprep.subr.mxu0 0.0
    %1963 = vmatpush1.msra.mxu0 0.0
    %1964 = vmatprep.subr.mxu0 0.0
    %1965 = vmatpush1.msra.mxu0 0.0
    %1966 = vmatprep.subr.mxu0 0.0
    %1967 = vmatpush1.msra.mxu0 0.0
    %1968 = vmatprep.mubr.f32.mxu0 0.0
    %1969 = vmatmul.mubr.f32.gmra.mrb[0].mxu0 %v1899
    %v1970 = vpop.f32.mrb[0].mxu0
    %v1971 = vadd.f32 %v1896, %v1970
    %v1972 = vpop.f32.mrb[0].mxu0
    %1973 = vmatprep.mubr.f32.mxu0 0.0
    %1974 = vmatmul.mubr.f32.gmra.mrb[0].mxu0 %v1902
    %v1975 = vpop.f32.mrb[0].mxu0
    %v1976 = vadd.f32 %v1896, %v1975
    %v1977 = vpop.f32.mrb[0].mxu0
    %1978 = vdwg.mxu0
    %v1979 = vmul.f32 %v1971, 0.5
    %v1980 = vmul.f32 %v1976, 0.5
    %v1981 = vmul.f32 %v1971, %v1971
    %v1982 = vmul.f32 %v1976, %v1976
    %v1983 = vmul.f32 %v1971, %v1981
    %v1984 = vmul.f32 %v1976, %v1982
    %v1985 = vmul.f32 %v1983, 0.044715
    %v1986 = vmul.f32 %v1984, 0.044715
    %v1987 = vadd.f32 %v1971, %v1985
    %v1988 = vadd.f32 %v1976, %v1986
    %v1989 = vmul.f32 %v1987, 0.7978846
    %v1990 = vmul.f32 %v1988, 0.7978846
    %v1991 = vtanh.pop %v1989
    %v1992 = vtanh.pop %v1990
    %v1993 = vadd.f32 %v1991, 1.0
    %v1994 = vadd.f32 %v1992, 1.0
    %v1995 = vmul.f32 %v1979, %v1993
    %v1996 = vmul.f32 %v1980, %v1994
    %v1997 = vld [vmem:[%s15] sm:$0xff]
    %v1998 = vld [vmem:[%s15 + $0x8] sm:$0xff]
    %v1999 = vld [vmem:[%s15 + $0x10] sm:$0xff]
    %v2000 = vld [vmem:[%s15 + $0x18] sm:$0xff]
    %v2001 = vld [vmem:[%s15 + $0x20] sm:$0xff]
    %v2002 = vld [vmem:[%s15 + $0x28] sm:$0xff]
    %v2003 = vld [vmem:[%s15 + $0x30] sm:$0xff]
    %v2004 = vld [vmem:[%s15 + $0x38] sm:$0xff]
    %v2005 = vld [vmem:[%s15 + $0x40] sm:$0xff]
    %v2006 = vld [vmem:[%s15 + $0x48] sm:$0xff]
    %v2007 = vld [vmem:[%s15 + $0x50] sm:$0xff]
    %v2008 = vld [vmem:[%s15 + $0x58] sm:$0xff]
    %v2009 = vld [vmem:[%s15 + $0x60] sm:$0xff]
    %v2010 = vld [vmem:[%s15 + $0x68] sm:$0xff]
    %v2011 = vld [vmem:[%s15 + $0x70] sm:$0xff]
    %v2012 = vld [vmem:[%s15 + $0x78] sm:$0xff]
    %v2013 = vld [vmem:[%s16] sm:$0x1]
    %v2015 = vlaneseq
    %v2016 = vshrl.u32 %v2015, 7
    %v2017 = vsub.s32 0, %v2016
    %v2018 = vrot.slane %v2013, %v2017
    %2020 = vmatprep.subr.mxu0 0.0
    %2021 = vmatpush1.msra.mxu0 %v1997
    %2022 = vmatprep.subr.mxu0 0.0
    %2023 = vmatpush1.msra.mxu0 %v1998
    %2024 = vmatprep.subr.mxu0 0.0
    %2025 = vmatpush1.msra.mxu0 %v1999
    %2026 = vmatprep.subr.mxu0 0.0
    %2027 = vmatpush1.msra.mxu0 %v2000
    %2028 = vmatprep.subr.mxu0 0.0
    %2029 = vmatpush1.msra.mxu0 %v2001
    %2030 = vmatprep.subr.mxu0 0.0
    %2031 = vmatpush1.msra.mxu0 %v2002
    %2032 = vmatprep.subr.mxu0 0.0
    %2033 = vmatpush1.msra.mxu0 %v2003
    %2034 = vmatprep.subr.mxu0 0.0
    %2035 = vmatpush1.msra.mxu0 %v2004
    %2036 = vmatprep.subr.mxu0 0.0
    %2037 = vmatpush1.msra.mxu0 %v2005
    %2038 = vmatprep.subr.mxu0 0.0
    %2039 = vmatpush1.msra.mxu0 %v2006
    %2040 = vmatprep.subr.mxu0 0.0
    %2041 = vmatpush1.msra.mxu0 %v2007
    %2042 = vmatprep.subr.mxu0 0.0
    %2043 = vmatpush1.msra.mxu0 %v2008
    %2044 = vmatprep.subr.mxu0 0.0
    %2045 = vmatpush1.msra.mxu0 %v2009
    %2046 = vmatprep.subr.mxu0 0.0
    %2047 = vmatpush1.msra.mxu0 %v2010
    %2048 = vmatprep.subr.mxu0 0.0
    %2049 = vmatpush1.msra.mxu0 %v2011
    %2050 = vmatprep.subr.mxu0 0.0
    %2051 = vmatpush1.msra.mxu0 %v2012
    %2052 = vmatprep.subr.mxu0 0.0
    %2053 = vmatpush1.msra.mxu0 0.0
    %2054 = vmatprep.subr.mxu0 0.0
    %2055 = vmatpush1.msra.mxu0 0.0
    %2056 = vmatprep.subr.mxu0 0.0
    %2057 = vmatpush1.msra.mxu0 0.0
    %2058 = vmatprep.subr.mxu0 0.0
    %2059 = vmatpush1.msra.mxu0 0.0
    %2060 = vmatprep.subr.mxu0 0.0
    %2061 = vmatpush1.msra.mxu0 0.0
    %2062 = vmatprep.subr.mxu0 0.0
    %2063 = vmatpush1.msra.mxu0 0.0
    %2064 = vmatprep.subr.mxu0 0.0
    %2065 = vmatpush1.msra.mxu0 0.0
    %2066 = vmatprep.subr.mxu0 0.0
    %2067 = vmatpush1.msra.mxu0 0.0
    %2068 = vmatprep.subr.mxu0 0.0
    %2069 = vmatpush1.msra.mxu0 0.0
    %2070 = vmatprep.subr.mxu0 0.0
    %2071 = vmatpush1.msra.mxu0 0.0
    %2072 = vmatprep.subr.mxu0 0.0
    %2073 = vmatpush1.msra.mxu0 0.0
    %2074 = vmatprep.subr.mxu0 0.0
    %2075 = vmatpush1.msra.mxu0 0.0
    %2076 = vmatprep.subr.mxu0 0.0
    %2077 = vmatpush1.msra.mxu0 0.0
    %2078 = vmatprep.subr.mxu0 0.0
    %2079 = vmatpush1.msra.mxu0 0.0
    %2080 = vmatprep.subr.mxu0 0.0
    %2081 = vmatpush1.msra.mxu0 0.0
    %2082 = vmatprep.subr.mxu0 0.0
    %2083 = vmatpush1.msra.mxu0 0.0
    %2084 = vmatprep.mubr.f32.mxu0 0.0
    %2085 = vmatmul.mubr.f32.gmra.mrb[0].mxu0 %v1995
    %v2086 = vpop.f32.mrb[0].mxu0
    %v2087 = vadd.f32 %v2018, %v2086
    %v2088 = vpop.f32.mrb[0].mxu0
    %2089 = vmatprep.mubr.f32.mxu0 0.0
    %2090 = vmatmul.mubr.f32.gmra.mrb[0].mxu0 %v1996
    %v2091 = vpop.f32.mrb[0].mxu0
    %v2092 = vadd.f32 %v2018, %v2091
    %v2093 = vpop.f32.mrb[0].mxu0
    %2094 = vdwg.mxu0
    %v2095 = vadd.f32 %v1841, %v2087
    %v2096 = vadd.f32 %v1842, %v2092
    %s2097 = scalar_lea.vmem %s1, 1
    %v2098 = vld [vmem:[%s2097] sm:$0x1]
    %s2099 = scalar_lea.vmem %s2, 1
    %v2100 = vld [vmem:[%s2099] sm:$0x1]
    %v2101 = vsel %vm78, %v2095, 0.0
    %2102 = vadd.xlane.f32.xlu0 %v2101
    %v2103 = vpop.xlane.xlu0 %2102
    %v2104 = vsel %vm78, %v2096, 0.0
    %2105 = vadd.xlane.f32.xlu0 %v2104
    %v2106 = vpop.xlane.xlu0 %2105
    %v2107 = vmul.f32 %v2103, %v85
    %v2108 = vmul.f32 %v2106, %v85
    %v2109 = vsub.f32 %v2095, %v2107
    %v2110 = vsub.f32 %v2096, %v2108
    %v2111 = vmul.f32 %v2109, %v2109
    %v2112 = vmul.f32 %v2110, %v2110
    %v2113 = vsel %vm78, %v2111, 0.0
    %2114 = vadd.xlane.f32.xlu0 %v2113
    %v2115 = vpop.xlane.xlu0 %2114
    %v2116 = vsel %vm78, %v2112, 0.0
    %2117 = vadd.xlane.f32.xlu0 %v2116
    %v2118 = vpop.xlane.xlu0 %2117
    %v2119 = vmul.f32 %v2115, %v85
    %v2120 = vmul.f32 %v2118, %v85
    %v2121 = vadd.f32 %v2119, 1e-05
    %v2122 = vadd.f32 %v2120, 1e-05
    %v2123 = vrsqrt.pop %v2121
    %v2124 = vrsqrt.pop %v2122
    %v2125 = vmul.f32 %v2109, %v2123
    %v2126 = vmul.f32 %v2110, %v2124
    %v2128 = vlaneseq
    %v2129 = vshrl.u32 %v2128, 7
    %v2130 = vsub.s32 0, %v2129
    %v2131 = vrot.slane %v2098, %v2130
    %v2133 = vmul.f32 %v2125, %v2131
    %v2134 = vmul.f32 %v2126, %v2131
    %v2136 = vlaneseq
    %v2137 = vshrl.u32 %v2136, 7
    %v2138 = vsub.s32 0, %v2137
    %v2139 = vrot.slane %v2100, %v2138
    %v2141 = vadd.f32 %v2133, %v2139
    %v2142 = vadd.f32 %v2134, %v2139
    %s2143 = scalar_lea.vmem %s3, 32
    %v2144 = vld [vmem:[%s2143] sm:$0xff]
    %v2145 = vld [vmem:[%s2143 + $0x8] sm:$0xff]
    %v2146 = vld [vmem:[%s2143 + $0x10] sm:$0xff]
    %v2147 = vld [vmem:[%s2143 + $0x18] sm:$0xff]
    %s2148 = scalar_lea.vmem %s4, 1
    %v2149 = vld [vmem:[%s2148] sm:$0x1]
    %v2151 = vlaneseq
    %v2152 = vshrl.u32 %v2151, 7
    %v2153 = vsub.s32 0, %v2152
    %v2154 = vrot.slane %v2149, %v2153
    %v2157 = vsel %vm78, %v2141, 0
    %v2160 = vsel %vm78, %v2142, 0
    %2162 = vmatprep.subr.mxu0 0.0
    %2163 = vmatpush1.msra.mxu0 %v2144
    %2164 = vmatprep.subr.mxu0 0.0
    %2165 = vmatpush1.msra.mxu0 %v2145
    %2166 = vmatprep.subr.mxu0 0.0
    %2167 = vmatpush1.msra.mxu0 %v2146
    %2168 = vmatprep.subr.mxu0 0.0
    %2169 = vmatpush1.msra.mxu0 %v2147
    %2170 = vmatprep.subr.mxu0 0.0
    %2171 = vmatpush1.msra.mxu0 0.0
    %2172 = vmatprep.subr.mxu0 0.0
    %2173 = vmatpush1.msra.mxu0 0.0
    %2174 = vmatprep.subr.mxu0 0.0
    %2175 = vmatpush1.msra.mxu0 0.0
    %2176 = vmatprep.subr.mxu0 0.0
    %2177 = vmatpush1.msra.mxu0 0.0
    %2178 = vmatprep.subr.mxu0 0.0
    %2179 = vmatpush1.msra.mxu0 0.0
    %2180 = vmatprep.subr.mxu0 0.0
    %2181 = vmatpush1.msra.mxu0 0.0
    %2182 = vmatprep.subr.mxu0 0.0
    %2183 = vmatpush1.msra.mxu0 0.0
    %2184 = vmatprep.subr.mxu0 0.0
    %2185 = vmatpush1.msra.mxu0 0.0
    %2186 = vmatprep.subr.mxu0 0.0
    %2187 = vmatpush1.msra.mxu0 0.0
    %2188 = vmatprep.subr.mxu0 0.0
    %2189 = vmatpush1.msra.mxu0 0.0
    %2190 = vmatprep.subr.mxu0 0.0
    %2191 = vmatpush1.msra.mxu0 0.0
    %2192 = vmatprep.subr.mxu0 0.0
    %2193 = vmatpush1.msra.mxu0 0.0
    %2194 = vmatprep.subr.mxu0 0.0
    %2195 = vmatpush1.msra.mxu0 0.0
    %2196 = vmatprep.subr.mxu0 0.0
    %2197 = vmatpush1.msra.mxu0 0.0
    %2198 = vmatprep.subr.mxu0 0.0
    %2199 = vmatpush1.msra.mxu0 0.0
    %2200 = vmatprep.subr.mxu0 0.0
    %2201 = vmatpush1.msra.mxu0 0.0
    %2202 = vmatprep.subr.mxu0 0.0
    %2203 = vmatpush1.msra.mxu0 0.0
    %2204 = vmatprep.subr.mxu0 0.0
    %2205 = vmatpush1.msra.mxu0 0.0
    %2206 = vmatprep.subr.mxu0 0.0
    %2207 = vmatpush1.msra.mxu0 0.0
    %2208 = vmatprep.subr.mxu0 0.0
    %2209 = vmatpush1.msra.mxu0 0.0
    %2210 = vmatprep.subr.mxu0 0.0
    %2211 = vmatpush1.msra.mxu0 0.0
    %2212 = vmatprep.subr.mxu0 0.0
    %2213 = vmatpush1.msra.mxu0 0.0
    %2214 = vmatprep.subr.mxu0 0.0
    %2215 = vmatpush1.msra.mxu0 0.0
    %2216 = vmatprep.subr.mxu0 0.0
    %2217 = vmatpush1.msra.mxu0 0.0
    %2218 = vmatprep.subr.mxu0 0.0
    %2219 = vmatpush1.msra.mxu0 0.0
    %2220 = vmatprep.subr.mxu0 0.0
    %2221 = vmatpush1.msra.mxu0 0.0
    %2222 = vmatprep.subr.mxu0 0.0
    %2223 = vmatpush1.msra.mxu0 0.0
    %2224 = vmatprep.subr.mxu0 0.0
    %2225 = vmatpush1.msra.mxu0 0.0
    %2226 = vmatprep.mubr.f32.mxu0 0.0
    %2227 = vmatmul.mubr.f32.gmra.mrb[0].mxu0 %v2157
    %v2228 = vpop.f32.mrb[0].mxu0
    %v2229 = vadd.f32 %v2154, %v2228
    %v2230 = vpop.f32.mrb[0].mxu0
    %2231 = vmatprep.mubr.f32.mxu0 0.0
    %2232 = vmatmul.mubr.f32.gmra.mrb[0].mxu0 %v2160
    %v2233 = vpop.f32.mrb[0].mxu0
    %v2234 = vadd.f32 %v2154, %v2233
    %v2235 = vpop.f32.mrb[0].mxu0
    %2236 = vdwg.mxu0
    %s2237 = scalar_lea.vmem %s5, 32
    %v2238 = vld [vmem:[%s2237] sm:$0xff]
    %v2239 = vld [vmem:[%s2237 + $0x8] sm:$0xff]
    %v2240 = vld [vmem:[%s2237 + $0x10] sm:$0xff]
    %v2241 = vld [vmem:[%s2237 + $0x18] sm:$0xff]
    %s2242 = scalar_lea.vmem %s6, 1
    %v2243 = vld [vmem:[%s2242] sm:$0x1]
    %v2245 = vlaneseq
    %v2246 = vshrl.u32 %v2245, 7
    %v2247 = vsub.s32 0, %v2246
    %v2248 = vrot.slane %v2243, %v2247
    %2250 = vmatprep.subr.mxu0 0.0
    %2251 = vmatpush1.msra.mxu0 %v2238
    %2252 = vmatprep.subr.mxu0 0.0
    %2253 = vmatpush1.msra.mxu0 %v2239
    %2254 = vmatprep.subr.mxu0 0.0
    %2255 = vmatpush1.msra.mxu0 %v2240
    %2256 = vmatprep.subr.mxu0 0.0
    %2257 = vmatpush1.msra.mxu0 %v2241
    %2258 = vmatprep.subr.mxu0 0.0
    %2259 = vmatpush1.msra.mxu0 0.0
    %2260 = vmatprep.subr.mxu0 0.0
    %2261 = vmatpush1.msra.mxu0 0.0
    %2262 = vmatprep.subr.mxu0 0.0
    %2263 = vmatpush1.msra.mxu0 0.0
    %2264 = vmatprep.subr.mxu0 0.0
    %2265 = vmatpush1.msra.mxu0 0.0
    %2266 = vmatprep.subr.mxu0 0.0
    %2267 = vmatpush1.msra.mxu0 0.0
    %2268 = vmatprep.subr.mxu0 0.0
    %2269 = vmatpush1.msra.mxu0 0.0
    %2270 = vmatprep.subr.mxu0 0.0
    %2271 = vmatpush1.msra.mxu0 0.0
    %2272 = vmatprep.subr.mxu0 0.0
    %2273 = vmatpush1.msra.mxu0 0.0
    %2274 = vmatprep.subr.mxu0 0.0
    %2275 = vmatpush1.msra.mxu0 0.0
    %2276 = vmatprep.subr.mxu0 0.0
    %2277 = vmatpush1.msra.mxu0 0.0
    %2278 = vmatprep.subr.mxu0 0.0
    %2279 = vmatpush1.msra.mxu0 0.0
    %2280 = vmatprep.subr.mxu0 0.0
    %2281 = vmatpush1.msra.mxu0 0.0
    %2282 = vmatprep.subr.mxu0 0.0
    %2283 = vmatpush1.msra.mxu0 0.0
    %2284 = vmatprep.subr.mxu0 0.0
    %2285 = vmatpush1.msra.mxu0 0.0
    %2286 = vmatprep.subr.mxu0 0.0
    %2287 = vmatpush1.msra.mxu0 0.0
    %2288 = vmatprep.subr.mxu0 0.0
    %2289 = vmatpush1.msra.mxu0 0.0
    %2290 = vmatprep.subr.mxu0 0.0
    %2291 = vmatpush1.msra.mxu0 0.0
    %2292 = vmatprep.subr.mxu0 0.0
    %2293 = vmatpush1.msra.mxu0 0.0
    %2294 = vmatprep.subr.mxu0 0.0
    %2295 = vmatpush1.msra.mxu0 0.0
    %2296 = vmatprep.subr.mxu0 0.0
    %2297 = vmatpush1.msra.mxu0 0.0
    %2298 = vmatprep.subr.mxu0 0.0
    %2299 = vmatpush1.msra.mxu0 0.0
    %2300 = vmatprep.subr.mxu0 0.0
    %2301 = vmatpush1.msra.mxu0 0.0
    %2302 = vmatprep.subr.mxu0 0.0
    %2303 = vmatpush1.msra.mxu0 0.0
    %2304 = vmatprep.subr.mxu0 0.0
    %2305 = vmatpush1.msra.mxu0 0.0
    %2306 = vmatprep.subr.mxu0 0.0
    %2307 = vmatpush1.msra.mxu0 0.0
    %2308 = vmatprep.subr.mxu0 0.0
    %2309 = vmatpush1.msra.mxu0 0.0
    %2310 = vmatprep.subr.mxu0 0.0
    %2311 = vmatpush1.msra.mxu0 0.0
    %2312 = vmatprep.subr.mxu0 0.0
    %2313 = vmatpush1.msra.mxu0 0.0
    %2314 = vmatprep.mubr.f32.mxu0 0.0
    %2315 = vmatmul.mubr.f32.gmra.mrb[0].mxu0 %v2157
    %v2316 = vpop.f32.mrb[0].mxu0
    %v2317 = vadd.f32 %v2248, %v2316
    %v2318 = vpop.f32.mrb[0].mxu0
    %2319 = vmatprep.mubr.f32.mxu0 0.0
    %2320 = vmatmul.mubr.f32.gmra.mrb[0].mxu0 %v2160
    %v2321 = vpop.f32.mrb[0].mxu0
    %v2322 = vadd.f32 %v2248, %v2321
    %v2323 = vpop.f32.mrb[0].mxu0
    %2324 = vdwg.mxu0
    %s2325 = scalar_lea.vmem %s7, 32
    %v2326 = vld [vmem:[%s2325] sm:$0xff]
    %v2327 = vld [vmem:[%s2325 + $0x8] sm:$0xff]
    %v2328 = vld [vmem:[%s2325 + $0x10] sm:$0xff]
    %v2329 = vld [vmem:[%s2325 + $0x18] sm:$0xff]
    %s2330 = scalar_lea.vmem %s8, 1
    %v2331 = vld [vmem:[%s2330] sm:$0x1]
    %v2333 = vlaneseq
    %v2334 = vshrl.u32 %v2333, 7
    %v2335 = vsub.s32 0, %v2334
    %v2336 = vrot.slane %v2331, %v2335
    %2338 = vmatprep.subr.mxu0 0.0
    %2339 = vmatpush1.msra.mxu0 %v2326
    %2340 = vmatprep.subr.mxu0 0.0
    %2341 = vmatpush1.msra.mxu0 %v2327
    %2342 = vmatprep.subr.mxu0 0.0
    %2343 = vmatpush1.msra.mxu0 %v2328
    %2344 = vmatprep.subr.mxu0 0.0
    %2345 = vmatpush1.msra.mxu0 %v2329
    %2346 = vmatprep.subr.mxu0 0.0
    %2347 = vmatpush1.msra.mxu0 0.0
    %2348 = vmatprep.subr.mxu0 0.0
    %2349 = vmatpush1.msra.mxu0 0.0
    %2350 = vmatprep.subr.mxu0 0.0
    %2351 = vmatpush1.msra.mxu0 0.0
    %2352 = vmatprep.subr.mxu0 0.0
    %2353 = vmatpush1.msra.mxu0 0.0
    %2354 = vmatprep.subr.mxu0 0.0
    %2355 = vmatpush1.msra.mxu0 0.0
    %2356 = vmatprep.subr.mxu0 0.0
    %2357 = vmatpush1.msra.mxu0 0.0
    %2358 = vmatprep.subr.mxu0 0.0
    %2359 = vmatpush1.msra.mxu0 0.0
    %2360 = vmatprep.subr.mxu0 0.0
    %2361 = vmatpush1.msra.mxu0 0.0
    %2362 = vmatprep.subr.mxu0 0.0
    %2363 = vmatpush1.msra.mxu0 0.0
    %2364 = vmatprep.subr.mxu0 0.0
    %2365 = vmatpush1.msra.mxu0 0.0
    %2366 = vmatprep.subr.mxu0 0.0
    %2367 = vmatpush1.msra.mxu0 0.0
    %2368 = vmatprep.subr.mxu0 0.0
    %2369 = vmatpush1.msra.mxu0 0.0
    %2370 = vmatprep.subr.mxu0 0.0
    %2371 = vmatpush1.msra.mxu0 0.0
    %2372 = vmatprep.subr.mxu0 0.0
    %2373 = vmatpush1.msra.mxu0 0.0
    %2374 = vmatprep.subr.mxu0 0.0
    %2375 = vmatpush1.msra.mxu0 0.0
    %2376 = vmatprep.subr.mxu0 0.0
    %2377 = vmatpush1.msra.mxu0 0.0
    %2378 = vmatprep.subr.mxu0 0.0
    %2379 = vmatpush1.msra.mxu0 0.0
    %2380 = vmatprep.subr.mxu0 0.0
    %2381 = vmatpush1.msra.mxu0 0.0
    %2382 = vmatprep.subr.mxu0 0.0
    %2383 = vmatpush1.msra.mxu0 0.0
    %2384 = vmatprep.subr.mxu0 0.0
    %2385 = vmatpush1.msra.mxu0 0.0
    %2386 = vmatprep.subr.mxu0 0.0
    %2387 = vmatpush1.msra.mxu0 0.0
    %2388 = vmatprep.subr.mxu0 0.0
    %2389 = vmatpush1.msra.mxu0 0.0
    %2390 = vmatprep.subr.mxu0 0.0
    %2391 = vmatpush1.msra.mxu0 0.0
    %2392 = vmatprep.subr.mxu0 0.0
    %2393 = vmatpush1.msra.mxu0 0.0
    %2394 = vmatprep.subr.mxu0 0.0
    %2395 = vmatpush1.msra.mxu0 0.0
    %2396 = vmatprep.subr.mxu0 0.0
    %2397 = vmatpush1.msra.mxu0 0.0
    %2398 = vmatprep.subr.mxu0 0.0
    %2399 = vmatpush1.msra.mxu0 0.0
    %2400 = vmatprep.subr.mxu0 0.0
    %2401 = vmatpush1.msra.mxu0 0.0
    %2402 = vmatprep.mubr.f32.mxu0 0.0
    %2403 = vmatmul.mubr.f32.gmra.mrb[0].mxu0 %v2157
    %v2404 = vpop.f32.mrb[0].mxu0
    %v2405 = vadd.f32 %v2336, %v2404
    %v2406 = vpop.f32.mrb[0].mxu0
    %2407 = vmatprep.mubr.f32.mxu0 0.0
    %2408 = vmatmul.mubr.f32.gmra.mrb[0].mxu0 %v2160
    %v2409 = vpop.f32.mrb[0].mxu0
    %v2410 = vadd.f32 %v2336, %v2409
    %v2411 = vpop.f32.mrb[0].mxu0
    %2412 = vdwg.mxu0
    %2415 = vrot.lane.b32.xlu0 %v2229, 120
    %v2416 = vpop.permute.xlu0 %2415
    %2417 = vrot.lane.b32.xlu0 %v2234, 120
    %v2418 = vpop.permute.xlu0 %2417
    %2419 = vrot.lane.b32.xlu0 %v2229, 112
    %v2420 = vpop.permute.xlu0 %2419
    %2421 = vrot.lane.b32.xlu0 %v2234, 112
    %v2422 = vpop.permute.xlu0 %2421
    %2423 = vrot.lane.b32.xlu0 %v2229, 104
    %v2424 = vpop.permute.xlu0 %2423
    %2425 = vrot.lane.b32.xlu0 %v2234, 104
    %v2426 = vpop.permute.xlu0 %2425
    %2429 = vrot.lane.b32.xlu0 %v2317, 120
    %v2430 = vpop.permute.xlu0 %2429
    %2431 = vrot.lane.b32.xlu0 %v2322, 120
    %v2432 = vpop.permute.xlu0 %2431
    %2433 = vrot.lane.b32.xlu0 %v2317, 112
    %v2434 = vpop.permute.xlu0 %2433
    %2435 = vrot.lane.b32.xlu0 %v2322, 112
    %v2436 = vpop.permute.xlu0 %2435
    %2437 = vrot.lane.b32.xlu0 %v2317, 104
    %v2438 = vpop.permute.xlu0 %2437
    %2439 = vrot.lane.b32.xlu0 %v2322, 104
    %v2440 = vpop.permute.xlu0 %2439
    %2443 = vrot.lane.b32.xlu0 %v2405, 120
    %v2444 = vpop.permute.xlu0 %2443
    %2445 = vrot.lane.b32.xlu0 %v2410, 120
    %v2446 = vpop.permute.xlu0 %2445
    %2449 = vrot.lane.b32.xlu0 %v2405, 112
    %v2450 = vpop.permute.xlu0 %2449
    %2451 = vrot.lane.b32.xlu0 %v2410, 112
    %v2452 = vpop.permute.xlu0 %2451
    %2455 = vrot.lane.b32.xlu0 %v2405, 104
    %v2456 = vpop.permute.xlu0 %2455
    %2457 = vrot.lane.b32.xlu0 %v2410, 104
    %v2458 = vpop.permute.xlu0 %2457
    %v2461 = vsel %vm434, %v2229, 0
    %v2463 = vsel %vm434, %v2317, 0
    %2465 = vmatprep.subr.mxu0 0.0
    %2466 = vmatpush1.xpose.msra.mxu0 %v2463
    %2467 = vmatprep.subr.mxu0 0.0
    %2468 = vmatpush1.xpose.msra.mxu0 0.0
    %2469 = vmatprep.subr.mxu0 0.0
    %2470 = vmatpush1.xpose.msra.mxu0 0.0
    %2471 = vmatprep.subr.mxu0 0.0
    %2472 = vmatpush1.xpose.msra.mxu0 0.0
    %2473 = vmatprep.subr.mxu0 0.0
    %2474 = vmatpush1.xpose.msra.mxu0 0.0
    %2475 = vmatprep.subr.mxu0 0.0
    %2476 = vmatpush1.xpose.msra.mxu0 0.0
    %2477 = vmatprep.subr.mxu0 0.0
    %2478 = vmatpush1.xpose.msra.mxu0 0.0
    %2479 = vmatprep.subr.mxu0 0.0
    %2480 = vmatpush1.xpose.msra.mxu0 0.0
    %2481 = vmatprep.subr.mxu0 0.0
    %2482 = vmatpush1.xpose.msra.mxu0 0.0
    %2483 = vmatprep.subr.mxu0 0.0
    %2484 = vmatpush1.xpose.msra.mxu0 0.0
    %2485 = vmatprep.subr.mxu0 0.0
    %2486 = vmatpush1.xpose.msra.mxu0 0.0
    %2487 = vmatprep.subr.mxu0 0.0
    %2488 = vmatpush1.xpose.msra.mxu0 0.0
    %2489 = vmatprep.subr.mxu0 0.0
    %2490 = vmatpush1.xpose.msra.mxu0 0.0
    %2491 = vmatprep.subr.mxu0 0.0
    %2492 = vmatpush1.xpose.msra.mxu0 0.0
    %2493 = vmatprep.subr.mxu0 0.0
    %2494 = vmatpush1.xpose.msra.mxu0 0.0
    %2495 = vmatprep.subr.mxu0 0.0
    %2496 = vmatpush1.xpose.msra.mxu0 0.0
    %2497 = vmatprep.subr.mxu0 0.0
    %2498 = vmatpush1.xpose.msra.mxu0 0.0
    %2499 = vmatprep.subr.mxu0 0.0
    %2500 = vmatpush1.xpose.msra.mxu0 0.0
    %2501 = vmatprep.subr.mxu0 0.0
    %2502 = vmatpush1.xpose.msra.mxu0 0.0
    %2503 = vmatprep.subr.mxu0 0.0
    %2504 = vmatpush1.xpose.msra.mxu0 0.0
    %2505 = vmatprep.subr.mxu0 0.0
    %2506 = vmatpush1.xpose.msra.mxu0 0.0
    %2507 = vmatprep.subr.mxu0 0.0
    %2508 = vmatpush1.xpose.msra.mxu0 0.0
    %2509 = vmatprep.subr.mxu0 0.0
    %2510 = vmatpush1.xpose.msra.mxu0 0.0
    %2511 = vmatprep.subr.mxu0 0.0
    %2512 = vmatpush1.xpose.msra.mxu0 0.0
    %2513 = vmatprep.subr.mxu0 0.0
    %2514 = vmatpush1.xpose.msra.mxu0 0.0
    %2515 = vmatprep.subr.mxu0 0.0
    %2516 = vmatpush1.xpose.msra.mxu0 0.0
    %2517 = vmatprep.subr.mxu0 0.0
    %2518 = vmatpush1.xpose.msra.mxu0 0.0
    %2519 = vmatprep.subr.mxu0 0.0
    %2520 = vmatpush1.xpose.msra.mxu0 0.0
    %2521 = vmatprep.subr.mxu0 0.0
    %2522 = vmatpush1.xpose.msra.mxu0 0.0
    %2523 = vmatprep.subr.mxu0 0.0
    %2524 = vmatpush1.xpose.msra.mxu0 0.0
    %2525 = vmatprep.subr.mxu0 0.0
    %2526 = vmatpush1.xpose.msra.mxu0 0.0
    %2527 = vmatprep.subr.mxu0 0.0
    %2528 = vmatpush1.xpose.msra.mxu0 0.0
    %2529 = vmatprep.mubr.f32.mxu0 0.0
    %2530 = vmatmul.mubr.f32.gmra.mrb[0].mxu0 %v2461
    %v2531 = vpop.f32.mrb[0].mxu0
    %v2532 = vadd.f32 0.0, %v2531
    %v2533 = vpop.f32.mrb[0].mxu0
    %2534 = vdwg.mxu0
    %v2535 = vsel %vm434, %v2234, 0
    %v2537 = vsel %vm434, %v2322, 0
    %2539 = vmatprep.subr.mxu0 0.0
    %2540 = vmatpush1.xpose.msra.mxu0 %v2537
    %2541 = vmatprep.subr.mxu0 0.0
    %2542 = vmatpush1.xpose.msra.mxu0 0.0
    %2543 = vmatprep.subr.mxu0 0.0
    %2544 = vmatpush1.xpose.msra.mxu0 0.0
    %2545 = vmatprep.subr.mxu0 0.0
    %2546 = vmatpush1.xpose.msra.mxu0 0.0
    %2547 = vmatprep.subr.mxu0 0.0
    %2548 = vmatpush1.xpose.msra.mxu0 0.0
    %2549 = vmatprep.subr.mxu0 0.0
    %2550 = vmatpush1.xpose.msra.mxu0 0.0
    %2551 = vmatprep.subr.mxu0 0.0
    %2552 = vmatpush1.xpose.msra.mxu0 0.0
    %2553 = vmatprep.subr.mxu0 0.0
    %2554 = vmatpush1.xpose.msra.mxu0 0.0
    %2555 = vmatprep.subr.mxu0 0.0
    %2556 = vmatpush1.xpose.msra.mxu0 0.0
    %2557 = vmatprep.subr.mxu0 0.0
    %2558 = vmatpush1.xpose.msra.mxu0 0.0
    %2559 = vmatprep.subr.mxu0 0.0
    %2560 = vmatpush1.xpose.msra.mxu0 0.0
    %2561 = vmatprep.subr.mxu0 0.0
    %2562 = vmatpush1.xpose.msra.mxu0 0.0
    %2563 = vmatprep.subr.mxu0 0.0
    %2564 = vmatpush1.xpose.msra.mxu0 0.0
    %2565 = vmatprep.subr.mxu0 0.0
    %2566 = vmatpush1.xpose.msra.mxu0 0.0
    %2567 = vmatprep.subr.mxu0 0.0
    %2568 = vmatpush1.xpose.msra.mxu0 0.0
    %2569 = vmatprep.subr.mxu0 0.0
    %2570 = vmatpush1.xpose.msra.mxu0 0.0
    %2571 = vmatprep.subr.mxu0 0.0
    %2572 = vmatpush1.xpose.msra.mxu0 0.0
    %2573 = vmatprep.subr.mxu0 0.0
    %2574 = vmatpush1.xpose.msra.mxu0 0.0
    %2575 = vmatprep.subr.mxu0 0.0
    %2576 = vmatpush1.xpose.msra.mxu0 0.0
    %2577 = vmatprep.subr.mxu0 0.0
    %2578 = vmatpush1.xpose.msra.mxu0 0.0
    %2579 = vmatprep.subr.mxu0 0.0
    %2580 = vmatpush1.xpose.msra.mxu0 0.0
    %2581 = vmatprep.subr.mxu0 0.0
    %2582 = vmatpush1.xpose.msra.mxu0 0.0
    %2583 = vmatprep.subr.mxu0 0.0
    %2584 = vmatpush1.xpose.msra.mxu0 0.0
    %2585 = vmatprep.subr.mxu0 0.0
    %2586 = vmatpush1.xpose.msra.mxu0 0.0
    %2587 = vmatprep.subr.mxu0 0.0
    %2588 = vmatpush1.xpose.msra.mxu0 0.0
    %2589 = vmatprep.subr.mxu0 0.0
    %2590 = vmatpush1.xpose.msra.mxu0 0.0
    %2591 = vmatprep.subr.mxu0 0.0
    %2592 = vmatpush1.xpose.msra.mxu0 0.0
    %2593 = vmatprep.subr.mxu0 0.0
    %2594 = vmatpush1.xpose.msra.mxu0 0.0
    %2595 = vmatprep.subr.mxu0 0.0
    %2596 = vmatpush1.xpose.msra.mxu0 0.0
    %2597 = vmatprep.subr.mxu0 0.0
    %2598 = vmatpush1.xpose.msra.mxu0 0.0
    %2599 = vmatprep.subr.mxu0 0.0
    %2600 = vmatpush1.xpose.msra.mxu0 0.0
    %2601 = vmatprep.subr.mxu0 0.0
    %2602 = vmatpush1.xpose.msra.mxu0 0.0
    %2603 = vmatprep.mubr.f32.mxu0 0.0
    %2604 = vmatmul.mubr.f32.gmra.mrb[0].mxu0 %v2535
    %v2605 = vpop.f32.mrb[0].mxu0
    %v2606 = vadd.f32 0.0, %v2605
    %v2607 = vpop.f32.mrb[0].mxu0
    %2608 = vdwg.mxu0
    %v2609 = vsel %vm434, %v2416, 0
    %v2611 = vsel %vm434, %v2430, 0
    %2613 = vmatprep.subr.mxu0 0.0
    %2614 = vmatpush1.xpose.msra.mxu0 %v2611
    %2615 = vmatprep.subr.mxu0 0.0
    %2616 = vmatpush1.xpose.msra.mxu0 0.0
    %2617 = vmatprep.subr.mxu0 0.0
    %2618 = vmatpush1.xpose.msra.mxu0 0.0
    %2619 = vmatprep.subr.mxu0 0.0
    %2620 = vmatpush1.xpose.msra.mxu0 0.0
    %2621 = vmatprep.subr.mxu0 0.0
    %2622 = vmatpush1.xpose.msra.mxu0 0.0
    %2623 = vmatprep.subr.mxu0 0.0
    %2624 = vmatpush1.xpose.msra.mxu0 0.0
    %2625 = vmatprep.subr.mxu0 0.0
    %2626 = vmatpush1.xpose.msra.mxu0 0.0
    %2627 = vmatprep.subr.mxu0 0.0
    %2628 = vmatpush1.xpose.msra.mxu0 0.0
    %2629 = vmatprep.subr.mxu0 0.0
    %2630 = vmatpush1.xpose.msra.mxu0 0.0
    %2631 = vmatprep.subr.mxu0 0.0
    %2632 = vmatpush1.xpose.msra.mxu0 0.0
    %2633 = vmatprep.subr.mxu0 0.0
    %2634 = vmatpush1.xpose.msra.mxu0 0.0
    %2635 = vmatprep.subr.mxu0 0.0
    %2636 = vmatpush1.xpose.msra.mxu0 0.0
    %2637 = vmatprep.subr.mxu0 0.0
    %2638 = vmatpush1.xpose.msra.mxu0 0.0
    %2639 = vmatprep.subr.mxu0 0.0
    %2640 = vmatpush1.xpose.msra.mxu0 0.0
    %2641 = vmatprep.subr.mxu0 0.0
    %2642 = vmatpush1.xpose.msra.mxu0 0.0
    %2643 = vmatprep.subr.mxu0 0.0
    %2644 = vmatpush1.xpose.msra.mxu0 0.0
    %2645 = vmatprep.subr.mxu0 0.0
    %2646 = vmatpush1.xpose.msra.mxu0 0.0
    %2647 = vmatprep.subr.mxu0 0.0
    %2648 = vmatpush1.xpose.msra.mxu0 0.0
    %2649 = vmatprep.subr.mxu0 0.0
    %2650 = vmatpush1.xpose.msra.mxu0 0.0
    %2651 = vmatprep.subr.mxu0 0.0
    %2652 = vmatpush1.xpose.msra.mxu0 0.0
    %2653 = vmatprep.subr.mxu0 0.0
    %2654 = vmatpush1.xpose.msra.mxu0 0.0
    %2655 = vmatprep.subr.mxu0 0.0
    %2656 = vmatpush1.xpose.msra.mxu0 0.0
    %2657 = vmatprep.subr.mxu0 0.0
    %2658 = vmatpush1.xpose.msra.mxu0 0.0
    %2659 = vmatprep.subr.mxu0 0.0
    %2660 = vmatpush1.xpose.msra.mxu0 0.0
    %2661 = vmatprep.subr.mxu0 0.0
    %2662 = vmatpush1.xpose.msra.mxu0 0.0
    %2663 = vmatprep.subr.mxu0 0.0
    %2664 = vmatpush1.xpose.msra.mxu0 0.0
    %2665 = vmatprep.subr.mxu0 0.0
    %2666 = vmatpush1.xpose.msra.mxu0 0.0
    %2667 = vmatprep.subr.mxu0 0.0
    %2668 = vmatpush1.xpose.msra.mxu0 0.0
    %2669 = vmatprep.subr.mxu0 0.0
    %2670 = vmatpush1.xpose.msra.mxu0 0.0
    %2671 = vmatprep.subr.mxu0 0.0
    %2672 = vmatpush1.xpose.msra.mxu0 0.0
    %2673 = vmatprep.subr.mxu0 0.0
    %2674 = vmatpush1.xpose.msra.mxu0 0.0
    %2675 = vmatprep.subr.mxu0 0.0
    %2676 = vmatpush1.xpose.msra.mxu0 0.0
    %2677 = vmatprep.mubr.f32.mxu0 0.0
    %2678 = vmatmul.mubr.f32.gmra.mrb[0].mxu0 %v2609
    %v2679 = vpop.f32.mrb[0].mxu0
    %v2680 = vadd.f32 0.0, %v2679
    %v2681 = vpop.f32.mrb[0].mxu0
    %2682 = vdwg.mxu0
    %v2683 = vsel %vm434, %v2418, 0
    %v2685 = vsel %vm434, %v2432, 0
    %2687 = vmatprep.subr.mxu0 0.0
    %2688 = vmatpush1.xpose.msra.mxu0 %v2685
    %2689 = vmatprep.subr.mxu0 0.0
    %2690 = vmatpush1.xpose.msra.mxu0 0.0
    %2691 = vmatprep.subr.mxu0 0.0
    %2692 = vmatpush1.xpose.msra.mxu0 0.0
    %2693 = vmatprep.subr.mxu0 0.0
    %2694 = vmatpush1.xpose.msra.mxu0 0.0
    %2695 = vmatprep.subr.mxu0 0.0
    %2696 = vmatpush1.xpose.msra.mxu0 0.0
    %2697 = vmatprep.subr.mxu0 0.0
    %2698 = vmatpush1.xpose.msra.mxu0 0.0
    %2699 = vmatprep.subr.mxu0 0.0
    %2700 = vmatpush1.xpose.msra.mxu0 0.0
    %2701 = vmatprep.subr.mxu0 0.0
    %2702 = vmatpush1.xpose.msra.mxu0 0.0
    %2703 = vmatprep.subr.mxu0 0.0
    %2704 = vmatpush1.xpose.msra.mxu0 0.0
    %2705 = vmatprep.subr.mxu0 0.0
    %2706 = vmatpush1.xpose.msra.mxu0 0.0
    %2707 = vmatprep.subr.mxu0 0.0
    %2708 = vmatpush1.xpose.msra.mxu0 0.0
    %2709 = vmatprep.subr.mxu0 0.0
    %2710 = vmatpush1.xpose.msra.mxu0 0.0
    %2711 = vmatprep.subr.mxu0 0.0
    %2712 = vmatpush1.xpose.msra.mxu0 0.0
    %2713 = vmatprep.subr.mxu0 0.0
    %2714 = vmatpush1.xpose.msra.mxu0 0.0
    %2715 = vmatprep.subr.mxu0 0.0
    %2716 = vmatpush1.xpose.msra.mxu0 0.0
    %2717 = vmatprep.subr.mxu0 0.0
    %2718 = vmatpush1.xpose.msra.mxu0 0.0
    %2719 = vmatprep.subr.mxu0 0.0
    %2720 = vmatpush1.xpose.msra.mxu0 0.0
    %2721 = vmatprep.subr.mxu0 0.0
    %2722 = vmatpush1.xpose.msra.mxu0 0.0
    %2723 = vmatprep.subr.mxu0 0.0
    %2724 = vmatpush1.xpose.msra.mxu0 0.0
    %2725 = vmatprep.subr.mxu0 0.0
    %2726 = vmatpush1.xpose.msra.mxu0 0.0
    %2727 = vmatprep.subr.mxu0 0.0
    %2728 = vmatpush1.xpose.msra.mxu0 0.0
    %2729 = vmatprep.subr.mxu0 0.0
    %2730 = vmatpush1.xpose.msra.mxu0 0.0
    %2731 = vmatprep.subr.mxu0 0.0
    %2732 = vmatpush1.xpose.msra.mxu0 0.0
    %2733 = vmatprep.subr.mxu0 0.0
    %2734 = vmatpush1.xpose.msra.mxu0 0.0
    %2735 = vmatprep.subr.mxu0 0.0
    %2736 = vmatpush1.xpose.msra.mxu0 0.0
    %2737 = vmatprep.subr.mxu0 0.0
    %2738 = vmatpush1.xpose.msra.mxu0 0.0
    %2739 = vmatprep.subr.mxu0 0.0
    %2740 = vmatpush1.xpose.msra.mxu0 0.0
    %2741 = vmatprep.subr.mxu0 0.0
    %2742 = vmatpush1.xpose.msra.mxu0 0.0
    %2743 = vmatprep.subr.mxu0 0.0
    %2744 = vmatpush1.xpose.msra.mxu0 0.0
    %2745 = vmatprep.subr.mxu0 0.0
    %2746 = vmatpush1.xpose.msra.mxu0 0.0
    %2747 = vmatprep.subr.mxu0 0.0
    %2748 = vmatpush1.xpose.msra.mxu0 0.0
    %2749 = vmatprep.subr.mxu0 0.0
    %2750 = vmatpush1.xpose.msra.mxu0 0.0
    %2751 = vmatprep.mubr.f32.mxu0 0.0
    %2752 = vmatmul.mubr.f32.gmra.mrb[0].mxu0 %v2683
    %v2753 = vpop.f32.mrb[0].mxu0
    %v2754 = vadd.f32 0.0, %v2753
    %v2755 = vpop.f32.mrb[0].mxu0
    %2756 = vdwg.mxu0
    %v2757 = vsel %vm434, %v2420, 0
    %v2759 = vsel %vm434, %v2434, 0
    %2761 = vmatprep.subr.mxu0 0.0
    %2762 = vmatpush1.xpose.msra.mxu0 %v2759
    %2763 = vmatprep.subr.mxu0 0.0
    %2764 = vmatpush1.xpose.msra.mxu0 0.0
    %2765 = vmatprep.subr.mxu0 0.0
    %2766 = vmatpush1.xpose.msra.mxu0 0.0
    %2767 = vmatprep.subr.mxu0 0.0
    %2768 = vmatpush1.xpose.msra.mxu0 0.0
    %2769 = vmatprep.subr.mxu0 0.0
    %2770 = vmatpush1.xpose.msra.mxu0 0.0
    %2771 = vmatprep.subr.mxu0 0.0
    %2772 = vmatpush1.xpose.msra.mxu0 0.0
    %2773 = vmatprep.subr.mxu0 0.0
    %2774 = vmatpush1.xpose.msra.mxu0 0.0
    %2775 = vmatprep.subr.mxu0 0.0
    %2776 = vmatpush1.xpose.msra.mxu0 0.0
    %2777 = vmatprep.subr.mxu0 0.0
    %2778 = vmatpush1.xpose.msra.mxu0 0.0
    %2779 = vmatprep.subr.mxu0 0.0
    %2780 = vmatpush1.xpose.msra.mxu0 0.0
    %2781 = vmatprep.subr.mxu0 0.0
    %2782 = vmatpush1.xpose.msra.mxu0 0.0
    %2783 = vmatprep.subr.mxu0 0.0
    %2784 = vmatpush1.xpose.msra.mxu0 0.0
    %2785 = vmatprep.subr.mxu0 0.0
    %2786 = vmatpush1.xpose.msra.mxu0 0.0
    %2787 = vmatprep.subr.mxu0 0.0
    %2788 = vmatpush1.xpose.msra.mxu0 0.0
    %2789 = vmatprep.subr.mxu0 0.0
    %2790 = vmatpush1.xpose.msra.mxu0 0.0
    %2791 = vmatprep.subr.mxu0 0.0
    %2792 = vmatpush1.xpose.msra.mxu0 0.0
    %2793 = vmatprep.subr.mxu0 0.0
    %2794 = vmatpush1.xpose.msra.mxu0 0.0
    %2795 = vmatprep.subr.mxu0 0.0
    %2796 = vmatpush1.xpose.msra.mxu0 0.0
    %2797 = vmatprep.subr.mxu0 0.0
    %2798 = vmatpush1.xpose.msra.mxu0 0.0
    %2799 = vmatprep.subr.mxu0 0.0
    %2800 = vmatpush1.xpose.msra.mxu0 0.0
    %2801 = vmatprep.subr.mxu0 0.0
    %2802 = vmatpush1.xpose.msra.mxu0 0.0
    %2803 = vmatprep.subr.mxu0 0.0
    %2804 = vmatpush1.xpose.msra.mxu0 0.0
    %2805 = vmatprep.subr.mxu0 0.0
    %2806 = vmatpush1.xpose.msra.mxu0 0.0
    %2807 = vmatprep.subr.mxu0 0.0
    %2808 = vmatpush1.xpose.msra.mxu0 0.0
    %2809 = vmatprep.subr.mxu0 0.0
    %2810 = vmatpush1.xpose.msra.mxu0 0.0
    %2811 = vmatprep.subr.mxu0 0.0
    %2812 = vmatpush1.xpose.msra.mxu0 0.0
    %2813 = vmatprep.subr.mxu0 0.0
    %2814 = vmatpush1.xpose.msra.mxu0 0.0
    %2815 = vmatprep.subr.mxu0 0.0
    %2816 = vmatpush1.xpose.msra.mxu0 0.0
    %2817 = vmatprep.subr.mxu0 0.0
    %2818 = vmatpush1.xpose.msra.mxu0 0.0
    %2819 = vmatprep.subr.mxu0 0.0
    %2820 = vmatpush1.xpose.msra.mxu0 0.0
    %2821 = vmatprep.subr.mxu0 0.0
    %2822 = vmatpush1.xpose.msra.mxu0 0.0
    %2823 = vmatprep.subr.mxu0 0.0
    %2824 = vmatpush1.xpose.msra.mxu0 0.0
    %2825 = vmatprep.mubr.f32.mxu0 0.0
    %2826 = vmatmul.mubr.f32.gmra.mrb[0].mxu0 %v2757
    %v2827 = vpop.f32.mrb[0].mxu0
    %v2828 = vadd.f32 0.0, %v2827
    %v2829 = vpop.f32.mrb[0].mxu0
    %2830 = vdwg.mxu0
    %v2831 = vsel %vm434, %v2422, 0
    %v2833 = vsel %vm434, %v2436, 0
    %2835 = vmatprep.subr.mxu0 0.0
    %2836 = vmatpush1.xpose.msra.mxu0 %v2833
    %2837 = vmatprep.subr.mxu0 0.0
    %2838 = vmatpush1.xpose.msra.mxu0 0.0
    %2839 = vmatprep.subr.mxu0 0.0
    %2840 = vmatpush1.xpose.msra.mxu0 0.0
    %2841 = vmatprep.subr.mxu0 0.0
    %2842 = vmatpush1.xpose.msra.mxu0 0.0
    %2843 = vmatprep.subr.mxu0 0.0
    %2844 = vmatpush1.xpose.msra.mxu0 0.0
    %2845 = vmatprep.subr.mxu0 0.0
    %2846 = vmatpush1.xpose.msra.mxu0 0.0
    %2847 = vmatprep.subr.mxu0 0.0
    %2848 = vmatpush1.xpose.msra.mxu0 0.0
    %2849 = vmatprep.subr.mxu0 0.0
    %2850 = vmatpush1.xpose.msra.mxu0 0.0
    %2851 = vmatprep.subr.mxu0 0.0
    %2852 = vmatpush1.xpose.msra.mxu0 0.0
    %2853 = vmatprep.subr.mxu0 0.0
    %2854 = vmatpush1.xpose.msra.mxu0 0.0
    %2855 = vmatprep.subr.mxu0 0.0
    %2856 = vmatpush1.xpose.msra.mxu0 0.0
    %2857 = vmatprep.subr.mxu0 0.0
    %2858 = vmatpush1.xpose.msra.mxu0 0.0
    %2859 = vmatprep.subr.mxu0 0.0
    %2860 = vmatpush1.xpose.msra.mxu0 0.0
    %2861 = vmatprep.subr.mxu0 0.0
    %2862 = vmatpush1.xpose.msra.mxu0 0.0
    %2863 = vmatprep.subr.mxu0 0.0
    %2864 = vmatpush1.xpose.msra.mxu0 0.0
    %2865 = vmatprep.subr.mxu0 0.0
    %2866 = vmatpush1.xpose.msra.mxu0 0.0
    %2867 = vmatprep.subr.mxu0 0.0
    %2868 = vmatpush1.xpose.msra.mxu0 0.0
    %2869 = vmatprep.subr.mxu0 0.0
    %2870 = vmatpush1.xpose.msra.mxu0 0.0
    %2871 = vmatprep.subr.mxu0 0.0
    %2872 = vmatpush1.xpose.msra.mxu0 0.0
    %2873 = vmatprep.subr.mxu0 0.0
    %2874 = vmatpush1.xpose.msra.mxu0 0.0
    %2875 = vmatprep.subr.mxu0 0.0
    %2876 = vmatpush1.xpose.msra.mxu0 0.0
    %2877 = vmatprep.subr.mxu0 0.0
    %2878 = vmatpush1.xpose.msra.mxu0 0.0
    %2879 = vmatprep.subr.mxu0 0.0
    %2880 = vmatpush1.xpose.msra.mxu0 0.0
    %2881 = vmatprep.subr.mxu0 0.0
    %2882 = vmatpush1.xpose.msra.mxu0 0.0
    %2883 = vmatprep.subr.mxu0 0.0
    %2884 = vmatpush1.xpose.msra.mxu0 0.0
    %2885 = vmatprep.subr.mxu0 0.0
    %2886 = vmatpush1.xpose.msra.mxu0 0.0
    %2887 = vmatprep.subr.mxu0 0.0
    %2888 = vmatpush1.xpose.msra.mxu0 0.0
    %2889 = vmatprep.subr.mxu0 0.0
    %2890 = vmatpush1.xpose.msra.mxu0 0.0
    %2891 = vmatprep.subr.mxu0 0.0
    %2892 = vmatpush1.xpose.msra.mxu0 0.0
    %2893 = vmatprep.subr.mxu0 0.0
    %2894 = vmatpush1.xpose.msra.mxu0 0.0
    %2895 = vmatprep.subr.mxu0 0.0
    %2896 = vmatpush1.xpose.msra.mxu0 0.0
    %2897 = vmatprep.subr.mxu0 0.0
    %2898 = vmatpush1.xpose.msra.mxu0 0.0
    %2899 = vmatprep.mubr.f32.mxu0 0.0
    %2900 = vmatmul.mubr.f32.gmra.mrb[0].mxu0 %v2831
    %v2901 = vpop.f32.mrb[0].mxu0
    %v2902 = vadd.f32 0.0, %v2901
    %v2903 = vpop.f32.mrb[0].mxu0
    %2904 = vdwg.mxu0
    %v2905 = vsel %vm434, %v2424, 0
    %v2907 = vsel %vm434, %v2438, 0
    %2909 = vmatprep.subr.mxu0 0.0
    %2910 = vmatpush1.xpose.msra.mxu0 %v2907
    %2911 = vmatprep.subr.mxu0 0.0
    %2912 = vmatpush1.xpose.msra.mxu0 0.0
    %2913 = vmatprep.subr.mxu0 0.0
    %2914 = vmatpush1.xpose.msra.mxu0 0.0
    %2915 = vmatprep.subr.mxu0 0.0
    %2916 = vmatpush1.xpose.msra.mxu0 0.0
    %2917 = vmatprep.subr.mxu0 0.0
    %2918 = vmatpush1.xpose.msra.mxu0 0.0
    %2919 = vmatprep.subr.mxu0 0.0
    %2920 = vmatpush1.xpose.msra.mxu0 0.0
    %2921 = vmatprep.subr.mxu0 0.0
    %2922 = vmatpush1.xpose.msra.mxu0 0.0
    %2923 = vmatprep.subr.mxu0 0.0
    %2924 = vmatpush1.xpose.msra.mxu0 0.0
    %2925 = vmatprep.subr.mxu0 0.0
    %2926 = vmatpush1.xpose.msra.mxu0 0.0
    %2927 = vmatprep.subr.mxu0 0.0
    %2928 = vmatpush1.xpose.msra.mxu0 0.0
    %2929 = vmatprep.subr.mxu0 0.0
    %2930 = vmatpush1.xpose.msra.mxu0 0.0
    %2931 = vmatprep.subr.mxu0 0.0
    %2932 = vmatpush1.xpose.msra.mxu0 0.0
    %2933 = vmatprep.subr.mxu0 0.0
    %2934 = vmatpush1.xpose.msra.mxu0 0.0
    %2935 = vmatprep.subr.mxu0 0.0
    %2936 = vmatpush1.xpose.msra.mxu0 0.0
    %2937 = vmatprep.subr.mxu0 0.0
    %2938 = vmatpush1.xpose.msra.mxu0 0.0
    %2939 = vmatprep.subr.mxu0 0.0
    %2940 = vmatpush1.xpose.msra.mxu0 0.0
    %2941 = vmatprep.subr.mxu0 0.0
    %2942 = vmatpush1.xpose.msra.mxu0 0.0
    %2943 = vmatprep.subr.mxu0 0.0
    %2944 = vmatpush1.xpose.msra.mxu0 0.0
    %2945 = vmatprep.subr.mxu0 0.0
    %2946 = vmatpush1.xpose.msra.mxu0 0.0
    %2947 = vmatprep.subr.mxu0 0.0
    %2948 = vmatpush1.xpose.msra.mxu0 0.0
    %2949 = vmatprep.subr.mxu0 0.0
    %2950 = vmatpush1.xpose.msra.mxu0 0.0
    %2951 = vmatprep.subr.mxu0 0.0
    %2952 = vmatpush1.xpose.msra.mxu0 0.0
    %2953 = vmatprep.subr.mxu0 0.0
    %2954 = vmatpush1.xpose.msra.mxu0 0.0
    %2955 = vmatprep.subr.mxu0 0.0
    %2956 = vmatpush1.xpose.msra.mxu0 0.0
    %2957 = vmatprep.subr.mxu0 0.0
    %2958 = vmatpush1.xpose.msra.mxu0 0.0
    %2959 = vmatprep.subr.mxu0 0.0
    %2960 = vmatpush1.xpose.msra.mxu0 0.0
    %2961 = vmatprep.subr.mxu0 0.0
    %2962 = vmatpush1.xpose.msra.mxu0 0.0
    %2963 = vmatprep.subr.mxu0 0.0
    %2964 = vmatpush1.xpose.msra.mxu0 0.0
    %2965 = vmatprep.subr.mxu0 0.0
    %2966 = vmatpush1.xpose.msra.mxu0 0.0
    %2967 = vmatprep.subr.mxu0 0.0
    %2968 = vmatpush1.xpose.msra.mxu0 0.0
    %2969 = vmatprep.subr.mxu0 0.0
    %2970 = vmatpush1.xpose.msra.mxu0 0.0
    %2971 = vmatprep.subr.mxu0 0.0
    %2972 = vmatpush1.xpose.msra.mxu0 0.0
    %2973 = vmatprep.mubr.f32.mxu0 0.0
    %2974 = vmatmul.mubr.f32.gmra.mrb[0].mxu0 %v2905
    %v2975 = vpop.f32.mrb[0].mxu0
    %v2976 = vadd.f32 0.0, %v2975
    %v2977 = vpop.f32.mrb[0].mxu0
    %2978 = vdwg.mxu0
    %v2979 = vsel %vm434, %v2426, 0
    %v2981 = vsel %vm434, %v2440, 0
    %2983 = vmatprep.subr.mxu0 0.0
    %2984 = vmatpush1.xpose.msra.mxu0 %v2981
    %2985 = vmatprep.subr.mxu0 0.0
    %2986 = vmatpush1.xpose.msra.mxu0 0.0
    %2987 = vmatprep.subr.mxu0 0.0
    %2988 = vmatpush1.xpose.msra.mxu0 0.0
    %2989 = vmatprep.subr.mxu0 0.0
    %2990 = vmatpush1.xpose.msra.mxu0 0.0
    %2991 = vmatprep.subr.mxu0 0.0
    %2992 = vmatpush1.xpose.msra.mxu0 0.0
    %2993 = vmatprep.subr.mxu0 0.0
    %2994 = vmatpush1.xpose.msra.mxu0 0.0
    %2995 = vmatprep.subr.mxu0 0.0
    %2996 = vmatpush1.xpose.msra.mxu0 0.0
    %2997 = vmatprep.subr.mxu0 0.0
    %2998 = vmatpush1.xpose.msra.mxu0 0.0
    %2999 = vmatprep.subr.mxu0 0.0
    %3000 = vmatpush1.xpose.msra.mxu0 0.0
    %3001 = vmatprep.subr.mxu0 0.0
    %3002 = vmatpush1.xpose.msra.mxu0 0.0
    %3003 = vmatprep.subr.mxu0 0.0
    %3004 = vmatpush1.xpose.msra.mxu0 0.0
    %3005 = vmatprep.subr.mxu0 0.0
    %3006 = vmatpush1.xpose.msra.mxu0 0.0
    %3007 = vmatprep.subr.mxu0 0.0
    %3008 = vmatpush1.xpose.msra.mxu0 0.0
    %3009 = vmatprep.subr.mxu0 0.0
    %3010 = vmatpush1.xpose.msra.mxu0 0.0
    %3011 = vmatprep.subr.mxu0 0.0
    %3012 = vmatpush1.xpose.msra.mxu0 0.0
    %3013 = vmatprep.subr.mxu0 0.0
    %3014 = vmatpush1.xpose.msra.mxu0 0.0
    %3015 = vmatprep.subr.mxu0 0.0
    %3016 = vmatpush1.xpose.msra.mxu0 0.0
    %3017 = vmatprep.subr.mxu0 0.0
    %3018 = vmatpush1.xpose.msra.mxu0 0.0
    %3019 = vmatprep.subr.mxu0 0.0
    %3020 = vmatpush1.xpose.msra.mxu0 0.0
    %3021 = vmatprep.subr.mxu0 0.0
    %3022 = vmatpush1.xpose.msra.mxu0 0.0
    %3023 = vmatprep.subr.mxu0 0.0
    %3024 = vmatpush1.xpose.msra.mxu0 0.0
    %3025 = vmatprep.subr.mxu0 0.0
    %3026 = vmatpush1.xpose.msra.mxu0 0.0
    %3027 = vmatprep.subr.mxu0 0.0
    %3028 = vmatpush1.xpose.msra.mxu0 0.0
    %3029 = vmatprep.subr.mxu0 0.0
    %3030 = vmatpush1.xpose.msra.mxu0 0.0
    %3031 = vmatprep.subr.mxu0 0.0
    %3032 = vmatpush1.xpose.msra.mxu0 0.0
    %3033 = vmatprep.subr.mxu0 0.0
    %3034 = vmatpush1.xpose.msra.mxu0 0.0
    %3035 = vmatprep.subr.mxu0 0.0
    %3036 = vmatpush1.xpose.msra.mxu0 0.0
    %3037 = vmatprep.subr.mxu0 0.0
    %3038 = vmatpush1.xpose.msra.mxu0 0.0
    %3039 = vmatprep.subr.mxu0 0.0
    %3040 = vmatpush1.xpose.msra.mxu0 0.0
    %3041 = vmatprep.subr.mxu0 0.0
    %3042 = vmatpush1.xpose.msra.mxu0 0.0
    %3043 = vmatprep.subr.mxu0 0.0
    %3044 = vmatpush1.xpose.msra.mxu0 0.0
    %3045 = vmatprep.subr.mxu0 0.0
    %3046 = vmatpush1.xpose.msra.mxu0 0.0
    %3047 = vmatprep.mubr.f32.mxu0 0.0
    %3048 = vmatmul.mubr.f32.gmra.mrb[0].mxu0 %v2979
    %v3049 = vpop.f32.mrb[0].mxu0
    %v3050 = vadd.f32 0.0, %v3049
    %v3051 = vpop.f32.mrb[0].mxu0
    %3052 = vdwg.mxu0
    %v3053 = vmul.f32 %v2532, 0.35355338
    %v3054 = vmul.f32 %v2606, 0.35355338
    %v3055 = vmul.f32 %v2680, 0.35355338
    %v3056 = vmul.f32 %v2754, 0.35355338
    %v3057 = vmul.f32 %v2828, 0.35355338
    %v3058 = vmul.f32 %v2902, 0.35355338
    %v3059 = vmul.f32 %v2976, 0.35355338
    %v3060 = vmul.f32 %v3050, 0.35355338
    %v3061 = vsel %vm1036, -100000.0, %v3053
    %v3062 = vsel %vm1036, -100000.0, %v3054
    %v3063 = vsel %vm1036, -100000.0, %v3055
    %v3064 = vsel %vm1036, -100000.0, %v3056
    %v3065 = vsel %vm1036, -100000.0, %v3057
    %v3066 = vsel %vm1036, -100000.0, %v3058
    %v3067 = vsel %vm1036, -100000.0, %v3059
    %v3068 = vsel %vm1036, -100000.0, %v3060
    %v3069 = vsel %vm434, %v3061, -inf
    %3070 = vmax.xlane.f32.xlu0 %v3069
    %v3071 = vpop.xlane.xlu0 %3070
    %v3072 = vsel %vm434, %v3062, -inf
    %3073 = vmax.xlane.f32.xlu0 %v3072
    %v3074 = vpop.xlane.xlu0 %3073
    %v3075 = vsel %vm434, %v3063, -inf
    %3076 = vmax.xlane.f32.xlu0 %v3075
    %v3077 = vpop.xlane.xlu0 %3076
    %v3078 = vsel %vm434, %v3064, -inf
    %3079 = vmax.xlane.f32.xlu0 %v3078
    %v3080 = vpop.xlane.xlu0 %3079
    %v3081 = vsel %vm434, %v3065, -inf
    %3082 = vmax.xlane.f32.xlu0 %v3081
    %v3083 = vpop.xlane.xlu0 %3082
    %v3084 = vsel %vm434, %v3066, -inf
    %3085 = vmax.xlane.f32.xlu0 %v3084
    %v3086 = vpop.xlane.xlu0 %3085
    %v3087 = vsel %vm434, %v3067, -inf
    %3088 = vmax.xlane.f32.xlu0 %v3087
    %v3089 = vpop.xlane.xlu0 %3088
    %v3090 = vsel %vm434, %v3068, -inf
    %3091 = vmax.xlane.f32.xlu0 %v3090
    %v3092 = vpop.xlane.xlu0 %3091
    %v3093 = vsub.f32 %v3061, %v3071
    %v3094 = vsub.f32 %v3062, %v3074
    %v3095 = vsub.f32 %v3063, %v3077
    %v3096 = vsub.f32 %v3064, %v3080
    %v3097 = vsub.f32 %v3065, %v3083
    %v3098 = vsub.f32 %v3066, %v3086
    %v3099 = vsub.f32 %v3067, %v3089
    %v3100 = vsub.f32 %v3068, %v3092
    %v3101 = vmul.f32 %v3093, 1.442695
    %v3102 = vpow.pop %v3101
    %v3103 = vmul.f32 %v3094, 1.442695
    %v3104 = vpow.pop %v3103
    %v3105 = vmul.f32 %v3095, 1.442695
    %v3106 = vpow.pop %v3105
    %v3107 = vmul.f32 %v3096, 1.442695
    %v3108 = vpow.pop %v3107
    %v3109 = vmul.f32 %v3097, 1.442695
    %v3110 = vpow.pop %v3109
    %v3111 = vmul.f32 %v3098, 1.442695
    %v3112 = vpow.pop %v3111
    %v3113 = vmul.f32 %v3099, 1.442695
    %v3114 = vpow.pop %v3113
    %v3115 = vmul.f32 %v3100, 1.442695
    %v3116 = vpow.pop %v3115
    %v3117 = vsel %vm434, %v3102, 0.0
    %3118 = vadd.xlane.f32.xlu0 %v3117
    %v3119 = vpop.xlane.xlu0 %3118
    %v3120 = vsel %vm434, %v3104, 0.0
    %3121 = vadd.xlane.f32.xlu0 %v3120
    %v3122 = vpop.xlane.xlu0 %3121
    %v3123 = vsel %vm434, %v3106, 0.0
    %3124 = vadd.xlane.f32.xlu0 %v3123
    %v3125 = vpop.xlane.xlu0 %3124
    %v3126 = vsel %vm434, %v3108, 0.0
    %3127 = vadd.xlane.f32.xlu0 %v3126
    %v3128 = vpop.xlane.xlu0 %3127
    %v3129 = vsel %vm434, %v3110, 0.0
    %3130 = vadd.xlane.f32.xlu0 %v3129
    %v3131 = vpop.xlane.xlu0 %3130
    %v3132 = vsel %vm434, %v3112, 0.0
    %3133 = vadd.xlane.f32.xlu0 %v3132
    %v3134 = vpop.xlane.xlu0 %3133
    %v3135 = vsel %vm434, %v3114, 0.0
    %3136 = vadd.xlane.f32.xlu0 %v3135
    %v3137 = vpop.xlane.xlu0 %3136
    %v3138 = vsel %vm434, %v3116, 0.0
    %3139 = vadd.xlane.f32.xlu0 %v3138
    %v3140 = vpop.xlane.xlu0 %3139
    %v3141 = vrcp.pop %v3119
    %v3142 = vrcp.pop %v3122
    %v3143 = vrcp.pop %v3125
    %v3144 = vrcp.pop %v3128
    %v3145 = vrcp.pop %v3131
    %v3146 = vrcp.pop %v3134
    %v3147 = vrcp.pop %v3137
    %v3148 = vrcp.pop %v3140
    %v3149 = vmul.f32 %v3102, %v3141
    %v3150 = vmul.f32 %v3104, %v3142
    %v3151 = vmul.f32 %v3106, %v3143
    %v3152 = vmul.f32 %v3108, %v3144
    %v3153 = vmul.f32 %v3110, %v3145
    %v3154 = vmul.f32 %v3112, %v3146
    %v3155 = vmul.f32 %v3114, %v3147
    %v3156 = vmul.f32 %v3116, %v3148
    %v3158 = vsel %vm434, %v3149, 0
    %3160 = vmatprep.subr.mxu0 0.0
    %3161 = vmatpush1.msra.mxu0 %v2405
    %3162 = vmatprep.subr.mxu0 0.0
    %3163 = vmatpush1.msra.mxu0 0.0
    %3164 = vmatprep.subr.mxu0 0.0
    %3165 = vmatpush1.msra.mxu0 0.0
    %3166 = vmatprep.subr.mxu0 0.0
    %3167 = vmatpush1.msra.mxu0 0.0
    %3168 = vmatprep.subr.mxu0 0.0
    %3169 = vmatpush1.msra.mxu0 0.0
    %3170 = vmatprep.subr.mxu0 0.0
    %3171 = vmatpush1.msra.mxu0 0.0
    %3172 = vmatprep.subr.mxu0 0.0
    %3173 = vmatpush1.msra.mxu0 0.0
    %3174 = vmatprep.subr.mxu0 0.0
    %3175 = vmatpush1.msra.mxu0 0.0
    %3176 = vmatprep.subr.mxu0 0.0
    %3177 = vmatpush1.msra.mxu0 0.0
    %3178 = vmatprep.subr.mxu0 0.0
    %3179 = vmatpush1.msra.mxu0 0.0
    %3180 = vmatprep.subr.mxu0 0.0
    %3181 = vmatpush1.msra.mxu0 0.0
    %3182 = vmatprep.subr.mxu0 0.0
    %3183 = vmatpush1.msra.mxu0 0.0
    %3184 = vmatprep.subr.mxu0 0.0
    %3185 = vmatpush1.msra.mxu0 0.0
    %3186 = vmatprep.subr.mxu0 0.0
    %3187 = vmatpush1.msra.mxu0 0.0
    %3188 = vmatprep.subr.mxu0 0.0
    %3189 = vmatpush1.msra.mxu0 0.0
    %3190 = vmatprep.subr.mxu0 0.0
    %3191 = vmatpush1.msra.mxu0 0.0
    %3192 = vmatprep.subr.mxu0 0.0
    %3193 = vmatpush1.msra.mxu0 0.0
    %3194 = vmatprep.subr.mxu0 0.0
    %3195 = vmatpush1.msra.mxu0 0.0
    %3196 = vmatprep.subr.mxu0 0.0
    %3197 = vmatpush1.msra.mxu0 0.0
    %3198 = vmatprep.subr.mxu0 0.0
    %3199 = vmatpush1.msra.mxu0 0.0
    %3200 = vmatprep.subr.mxu0 0.0
    %3201 = vmatpush1.msra.mxu0 0.0
    %3202 = vmatprep.subr.mxu0 0.0
    %3203 = vmatpush1.msra.mxu0 0.0
    %3204 = vmatprep.subr.mxu0 0.0
    %3205 = vmatpush1.msra.mxu0 0.0
    %3206 = vmatprep.subr.mxu0 0.0
    %3207 = vmatpush1.msra.mxu0 0.0
    %3208 = vmatprep.subr.mxu0 0.0
    %3209 = vmatpush1.msra.mxu0 0.0
    %3210 = vmatprep.subr.mxu0 0.0
    %3211 = vmatpush1.msra.mxu0 0.0
    %3212 = vmatprep.subr.mxu0 0.0
    %3213 = vmatpush1.msra.mxu0 0.0
    %3214 = vmatprep.subr.mxu0 0.0
    %3215 = vmatpush1.msra.mxu0 0.0
    %3216 = vmatprep.subr.mxu0 0.0
    %3217 = vmatpush1.msra.mxu0 0.0
    %3218 = vmatprep.subr.mxu0 0.0
    %3219 = vmatpush1.msra.mxu0 0.0
    %3220 = vmatprep.subr.mxu0 0.0
    %3221 = vmatpush1.msra.mxu0 0.0
    %3222 = vmatprep.subr.mxu0 0.0
    %3223 = vmatpush1.msra.mxu0 0.0
    %3224 = vmatprep.mubr.f32.mxu0 0.0
    %3225 = vmatmul.mubr.f32.gmra.mrb[0].mxu0 %v3158
    %v3226 = vpop.f32.mrb[0].mxu0
    %v3227 = vadd.f32 0.0, %v3226
    %v3228 = vpop.f32.mrb[0].mxu0
    %3229 = vdwg.mxu0
    %v3231 = vsel %vm434, %v3150, 0
    %3233 = vmatprep.subr.mxu0 0.0
    %3234 = vmatpush1.msra.mxu0 %v2410
    %3235 = vmatprep.subr.mxu0 0.0
    %3236 = vmatpush1.msra.mxu0 0.0
    %3237 = vmatprep.subr.mxu0 0.0
    %3238 = vmatpush1.msra.mxu0 0.0
    %3239 = vmatprep.subr.mxu0 0.0
    %3240 = vmatpush1.msra.mxu0 0.0
    %3241 = vmatprep.subr.mxu0 0.0
    %3242 = vmatpush1.msra.mxu0 0.0
    %3243 = vmatprep.subr.mxu0 0.0
    %3244 = vmatpush1.msra.mxu0 0.0
    %3245 = vmatprep.subr.mxu0 0.0
    %3246 = vmatpush1.msra.mxu0 0.0
    %3247 = vmatprep.subr.mxu0 0.0
    %3248 = vmatpush1.msra.mxu0 0.0
    %3249 = vmatprep.subr.mxu0 0.0
    %3250 = vmatpush1.msra.mxu0 0.0
    %3251 = vmatprep.subr.mxu0 0.0
    %3252 = vmatpush1.msra.mxu0 0.0
    %3253 = vmatprep.subr.mxu0 0.0
    %3254 = vmatpush1.msra.mxu0 0.0
    %3255 = vmatprep.subr.mxu0 0.0
    %3256 = vmatpush1.msra.mxu0 0.0
    %3257 = vmatprep.subr.mxu0 0.0
    %3258 = vmatpush1.msra.mxu0 0.0
    %3259 = vmatprep.subr.mxu0 0.0
    %3260 = vmatpush1.msra.mxu0 0.0
    %3261 = vmatprep.subr.mxu0 0.0
    %3262 = vmatpush1.msra.mxu0 0.0
    %3263 = vmatprep.subr.mxu0 0.0
    %3264 = vmatpush1.msra.mxu0 0.0
    %3265 = vmatprep.subr.mxu0 0.0
    %3266 = vmatpush1.msra.mxu0 0.0
    %3267 = vmatprep.subr.mxu0 0.0
    %3268 = vmatpush1.msra.mxu0 0.0
    %3269 = vmatprep.subr.mxu0 0.0
    %3270 = vmatpush1.msra.mxu0 0.0
    %3271 = vmatprep.subr.mxu0 0.0
    %3272 = vmatpush1.msra.mxu0 0.0
    %3273 = vmatprep.subr.mxu0 0.0
    %3274 = vmatpush1.msra.mxu0 0.0
    %3275 = vmatprep.subr.mxu0 0.0
    %3276 = vmatpush1.msra.mxu0 0.0
    %3277 = vmatprep.subr.mxu0 0.0
    %3278 = vmatpush1.msra.mxu0 0.0
    %3279 = vmatprep.subr.mxu0 0.0
    %3280 = vmatpush1.msra.mxu0 0.0
    %3281 = vmatprep.subr.mxu0 0.0
    %3282 = vmatpush1.msra.mxu0 0.0
    %3283 = vmatprep.subr.mxu0 0.0
    %3284 = vmatpush1.msra.mxu0 0.0
    %3285 = vmatprep.subr.mxu0 0.0
    %3286 = vmatpush1.msra.mxu0 0.0
    %3287 = vmatprep.subr.mxu0 0.0
    %3288 = vmatpush1.msra.mxu0 0.0
    %3289 = vmatprep.subr.mxu0 0.0
    %3290 = vmatpush1.msra.mxu0 0.0
    %3291 = vmatprep.subr.mxu0 0.0
    %3292 = vmatpush1.msra.mxu0 0.0
    %3293 = vmatprep.subr.mxu0 0.0
    %3294 = vmatpush1.msra.mxu0 0.0
    %3295 = vmatprep.subr.mxu0 0.0
    %3296 = vmatpush1.msra.mxu0 0.0
    %3297 = vmatprep.mubr.f32.mxu0 0.0
    %3298 = vmatmul.mubr.f32.gmra.mrb[0].mxu0 %v3231
    %v3299 = vpop.f32.mrb[0].mxu0
    %v3300 = vadd.f32 0.0, %v3299
    %v3301 = vpop.f32.mrb[0].mxu0
    %3302 = vdwg.mxu0
    %v3304 = vsel %vm434, %v3151, 0
    %3306 = vmatprep.subr.mxu0 0.0
    %3307 = vmatpush1.msra.mxu0 %v2444
    %3308 = vmatprep.subr.mxu0 0.0
    %3309 = vmatpush1.msra.mxu0 0.0
    %3310 = vmatprep.subr.mxu0 0.0
    %3311 = vmatpush1.msra.mxu0 0.0
    %3312 = vmatprep.subr.mxu0 0.0
    %3313 = vmatpush1.msra.mxu0 0.0
    %3314 = vmatprep.subr.mxu0 0.0
    %3315 = vmatpush1.msra.mxu0 0.0
    %3316 = vmatprep.subr.mxu0 0.0
    %3317 = vmatpush1.msra.mxu0 0.0
    %3318 = vmatprep.subr.mxu0 0.0
    %3319 = vmatpush1.msra.mxu0 0.0
    %3320 = vmatprep.subr.mxu0 0.0
    %3321 = vmatpush1.msra.mxu0 0.0
    %3322 = vmatprep.subr.mxu0 0.0
    %3323 = vmatpush1.msra.mxu0 0.0
    %3324 = vmatprep.subr.mxu0 0.0
    %3325 = vmatpush1.msra.mxu0 0.0
    %3326 = vmatprep.subr.mxu0 0.0
    %3327 = vmatpush1.msra.mxu0 0.0
    %3328 = vmatprep.subr.mxu0 0.0
    %3329 = vmatpush1.msra.mxu0 0.0
    %3330 = vmatprep.subr.mxu0 0.0
    %3331 = vmatpush1.msra.mxu0 0.0
    %3332 = vmatprep.subr.mxu0 0.0
    %3333 = vmatpush1.msra.mxu0 0.0
    %3334 = vmatprep.subr.mxu0 0.0
    %3335 = vmatpush1.msra.mxu0 0.0
    %3336 = vmatprep.subr.mxu0 0.0
    %3337 = vmatpush1.msra.mxu0 0.0
    %3338 = vmatprep.subr.mxu0 0.0
    %3339 = vmatpush1.msra.mxu0 0.0
    %3340 = vmatprep.subr.mxu0 0.0
    %3341 = vmatpush1.msra.mxu0 0.0
    %3342 = vmatprep.subr.mxu0 0.0
    %3343 = vmatpush1.msra.mxu0 0.0
    %3344 = vmatprep.subr.mxu0 0.0
    %3345 = vmatpush1.msra.mxu0 0.0
    %3346 = vmatprep.subr.mxu0 0.0
    %3347 = vmatpush1.msra.mxu0 0.0
    %3348 = vmatprep.subr.mxu0 0.0
    %3349 = vmatpush1.msra.mxu0 0.0
    %3350 = vmatprep.subr.mxu0 0.0
    %3351 = vmatpush1.msra.mxu0 0.0
    %3352 = vmatprep.subr.mxu0 0.0
    %3353 = vmatpush1.msra.mxu0 0.0
    %3354 = vmatprep.subr.mxu0 0.0
    %3355 = vmatpush1.msra.mxu0 0.0
    %3356 = vmatprep.subr.mxu0 0.0
    %3357 = vmatpush1.msra.mxu0 0.0
    %3358 = vmatprep.subr.mxu0 0.0
    %3359 = vmatpush1.msra.mxu0 0.0
    %3360 = vmatprep.subr.mxu0 0.0
    %3361 = vmatpush1.msra.mxu0 0.0
    %3362 = vmatprep.subr.mxu0 0.0
    %3363 = vmatpush1.msra.mxu0 0.0
    %3364 = vmatprep.subr.mxu0 0.0
    %3365 = vmatpush1.msra.mxu0 0.0
    %3366 = vmatprep.subr.mxu0 0.0
    %3367 = vmatpush1.msra.mxu0 0.0
    %3368 = vmatprep.subr.mxu0 0.0
    %3369 = vmatpush1.msra.mxu0 0.0
    %3370 = vmatprep.mubr.f32.mxu0 0.0
    %3371 = vmatmul.mubr.f32.gmra.mrb[0].mxu0 %v3304
    %v3372 = vpop.f32.mrb[0].mxu0
    %v3373 = vadd.f32 0.0, %v3372
    %v3374 = vpop.f32.mrb[0].mxu0
    %3375 = vdwg.mxu0
    %v3377 = vsel %vm434, %v3152, 0
    %3379 = vmatprep.subr.mxu0 0.0
    %3380 = vmatpush1.msra.mxu0 %v2446
    %3381 = vmatprep.subr.mxu0 0.0
    %3382 = vmatpush1.msra.mxu0 0.0
    %3383 = vmatprep.subr.mxu0 0.0
    %3384 = vmatpush1.msra.mxu0 0.0
    %3385 = vmatprep.subr.mxu0 0.0
    %3386 = vmatpush1.msra.mxu0 0.0
    %3387 = vmatprep.subr.mxu0 0.0
    %3388 = vmatpush1.msra.mxu0 0.0
    %3389 = vmatprep.subr.mxu0 0.0
    %3390 = vmatpush1.msra.mxu0 0.0
    %3391 = vmatprep.subr.mxu0 0.0
    %3392 = vmatpush1.msra.mxu0 0.0
    %3393 = vmatprep.subr.mxu0 0.0
    %3394 = vmatpush1.msra.mxu0 0.0
    %3395 = vmatprep.subr.mxu0 0.0
    %3396 = vmatpush1.msra.mxu0 0.0
    %3397 = vmatprep.subr.mxu0 0.0
    %3398 = vmatpush1.msra.mxu0 0.0
    %3399 = vmatprep.subr.mxu0 0.0
    %3400 = vmatpush1.msra.mxu0 0.0
    %3401 = vmatprep.subr.mxu0 0.0
    %3402 = vmatpush1.msra.mxu0 0.0
    %3403 = vmatprep.subr.mxu0 0.0
    %3404 = vmatpush1.msra.mxu0 0.0
    %3405 = vmatprep.subr.mxu0 0.0
    %3406 = vmatpush1.msra.mxu0 0.0
    %3407 = vmatprep.subr.mxu0 0.0
    %3408 = vmatpush1.msra.mxu0 0.0
    %3409 = vmatprep.subr.mxu0 0.0
    %3410 = vmatpush1.msra.mxu0 0.0
    %3411 = vmatprep.subr.mxu0 0.0
    %3412 = vmatpush1.msra.mxu0 0.0
    %3413 = vmatprep.subr.mxu0 0.0
    %3414 = vmatpush1.msra.mxu0 0.0
    %3415 = vmatprep.subr.mxu0 0.0
    %3416 = vmatpush1.msra.mxu0 0.0
    %3417 = vmatprep.subr.mxu0 0.0
    %3418 = vmatpush1.msra.mxu0 0.0
    %3419 = vmatprep.subr.mxu0 0.0
    %3420 = vmatpush1.msra.mxu0 0.0
    %3421 = vmatprep.subr.mxu0 0.0
    %3422 = vmatpush1.msra.mxu0 0.0
    %3423 = vmatprep.subr.mxu0 0.0
    %3424 = vmatpush1.msra.mxu0 0.0
    %3425 = vmatprep.subr.mxu0 0.0
    %3426 = vmatpush1.msra.mxu0 0.0
    %3427 = vmatprep.subr.mxu0 0.0
    %3428 = vmatpush1.msra.mxu0 0.0
    %3429 = vmatprep.subr.mxu0 0.0
    %3430 = vmatpush1.msra.mxu0 0.0
    %3431 = vmatprep.subr.mxu0 0.0
    %3432 = vmatpush1.msra.mxu0 0.0
    %3433 = vmatprep.subr.mxu0 0.0
    %3434 = vmatpush1.msra.mxu0 0.0
    %3435 = vmatprep.subr.mxu0 0.0
    %3436 = vmatpush1.msra.mxu0 0.0
    %3437 = vmatprep.subr.mxu0 0.0
    %3438 = vmatpush1.msra.mxu0 0.0
    %3439 = vmatprep.subr.mxu0 0.0
    %3440 = vmatpush1.msra.mxu0 0.0
    %3441 = vmatprep.subr.mxu0 0.0
    %3442 = vmatpush1.msra.mxu0 0.0
    %3443 = vmatprep.mubr.f32.mxu0 0.0
    %3444 = vmatmul.mubr.f32.gmra.mrb[0].mxu0 %v3377
    %v3445 = vpop.f32.mrb[0].mxu0
    %v3446 = vadd.f32 0.0, %v3445
    %v3447 = vpop.f32.mrb[0].mxu0
    %3448 = vdwg.mxu0
    %v3450 = vsel %vm434, %v3153, 0
    %3452 = vmatprep.subr.mxu0 0.0
    %3453 = vmatpush1.msra.mxu0 %v2450
    %3454 = vmatprep.subr.mxu0 0.0
    %3455 = vmatpush1.msra.mxu0 0.0
    %3456 = vmatprep.subr.mxu0 0.0
    %3457 = vmatpush1.msra.mxu0 0.0
    %3458 = vmatprep.subr.mxu0 0.0
    %3459 = vmatpush1.msra.mxu0 0.0
    %3460 = vmatprep.subr.mxu0 0.0
    %3461 = vmatpush1.msra.mxu0 0.0
    %3462 = vmatprep.subr.mxu0 0.0
    %3463 = vmatpush1.msra.mxu0 0.0
    %3464 = vmatprep.subr.mxu0 0.0
    %3465 = vmatpush1.msra.mxu0 0.0
    %3466 = vmatprep.subr.mxu0 0.0
    %3467 = vmatpush1.msra.mxu0 0.0
    %3468 = vmatprep.subr.mxu0 0.0
    %3469 = vmatpush1.msra.mxu0 0.0
    %3470 = vmatprep.subr.mxu0 0.0
    %3471 = vmatpush1.msra.mxu0 0.0
    %3472 = vmatprep.subr.mxu0 0.0
    %3473 = vmatpush1.msra.mxu0 0.0
    %3474 = vmatprep.subr.mxu0 0.0
    %3475 = vmatpush1.msra.mxu0 0.0
    %3476 = vmatprep.subr.mxu0 0.0
    %3477 = vmatpush1.msra.mxu0 0.0
    %3478 = vmatprep.subr.mxu0 0.0
    %3479 = vmatpush1.msra.mxu0 0.0
    %3480 = vmatprep.subr.mxu0 0.0
    %3481 = vmatpush1.msra.mxu0 0.0
    %3482 = vmatprep.subr.mxu0 0.0
    %3483 = vmatpush1.msra.mxu0 0.0
    %3484 = vmatprep.subr.mxu0 0.0
    %3485 = vmatpush1.msra.mxu0 0.0
    %3486 = vmatprep.subr.mxu0 0.0
    %3487 = vmatpush1.msra.mxu0 0.0
    %3488 = vmatprep.subr.mxu0 0.0
    %3489 = vmatpush1.msra.mxu0 0.0
    %3490 = vmatprep.subr.mxu0 0.0
    %3491 = vmatpush1.msra.mxu0 0.0
    %3492 = vmatprep.subr.mxu0 0.0
    %3493 = vmatpush1.msra.mxu0 0.0
    %3494 = vmatprep.subr.mxu0 0.0
    %3495 = vmatpush1.msra.mxu0 0.0
    %3496 = vmatprep.subr.mxu0 0.0
    %3497 = vmatpush1.msra.mxu0 0.0
    %3498 = vmatprep.subr.mxu0 0.0
    %3499 = vmatpush1.msra.mxu0 0.0
    %3500 = vmatprep.subr.mxu0 0.0
    %3501 = vmatpush1.msra.mxu0 0.0
    %3502 = vmatprep.subr.mxu0 0.0
    %3503 = vmatpush1.msra.mxu0 0.0
    %3504 = vmatprep.subr.mxu0 0.0
    %3505 = vmatpush1.msra.mxu0 0.0
    %3506 = vmatprep.subr.mxu0 0.0
    %3507 = vmatpush1.msra.mxu0 0.0
    %3508 = vmatprep.subr.mxu0 0.0
    %3509 = vmatpush1.msra.mxu0 0.0
    %3510 = vmatprep.subr.mxu0 0.0
    %3511 = vmatpush1.msra.mxu0 0.0
    %3512 = vmatprep.subr.mxu0 0.0
    %3513 = vmatpush1.msra.mxu0 0.0
    %3514 = vmatprep.subr.mxu0 0.0
    %3515 = vmatpush1.msra.mxu0 0.0
    %3516 = vmatprep.mubr.f32.mxu0 0.0
    %3517 = vmatmul.mubr.f32.gmra.mrb[0].mxu0 %v3450
    %v3518 = vpop.f32.mrb[0].mxu0
    %v3519 = vadd.f32 0.0, %v3518
    %v3520 = vpop.f32.mrb[0].mxu0
    %3521 = vdwg.mxu0
    %v3523 = vsel %vm434, %v3154, 0
    %3525 = vmatprep.subr.mxu0 0.0
    %3526 = vmatpush1.msra.mxu0 %v2452
    %3527 = vmatprep.subr.mxu0 0.0
    %3528 = vmatpush1.msra.mxu0 0.0
    %3529 = vmatprep.subr.mxu0 0.0
    %3530 = vmatpush1.msra.mxu0 0.0
    %3531 = vmatprep.subr.mxu0 0.0
    %3532 = vmatpush1.msra.mxu0 0.0
    %3533 = vmatprep.subr.mxu0 0.0
    %3534 = vmatpush1.msra.mxu0 0.0
    %3535 = vmatprep.subr.mxu0 0.0
    %3536 = vmatpush1.msra.mxu0 0.0
    %3537 = vmatprep.subr.mxu0 0.0
    %3538 = vmatpush1.msra.mxu0 0.0
    %3539 = vmatprep.subr.mxu0 0.0
    %3540 = vmatpush1.msra.mxu0 0.0
    %3541 = vmatprep.subr.mxu0 0.0
    %3542 = vmatpush1.msra.mxu0 0.0
    %3543 = vmatprep.subr.mxu0 0.0
    %3544 = vmatpush1.msra.mxu0 0.0
    %3545 = vmatprep.subr.mxu0 0.0
    %3546 = vmatpush1.msra.mxu0 0.0
    %3547 = vmatprep.subr.mxu0 0.0
    %3548 = vmatpush1.msra.mxu0 0.0
    %3549 = vmatprep.subr.mxu0 0.0
    %3550 = vmatpush1.msra.mxu0 0.0
    %3551 = vmatprep.subr.mxu0 0.0
    %3552 = vmatpush1.msra.mxu0 0.0
    %3553 = vmatprep.subr.mxu0 0.0
    %3554 = vmatpush1.msra.mxu0 0.0
    %3555 = vmatprep.subr.mxu0 0.0
    %3556 = vmatpush1.msra.mxu0 0.0
    %3557 = vmatprep.subr.mxu0 0.0
    %3558 = vmatpush1.msra.mxu0 0.0
    %3559 = vmatprep.subr.mxu0 0.0
    %3560 = vmatpush1.msra.mxu0 0.0
    %3561 = vmatprep.subr.mxu0 0.0
    %3562 = vmatpush1.msra.mxu0 0.0
    %3563 = vmatprep.subr.mxu0 0.0
    %3564 = vmatpush1.msra.mxu0 0.0
    %3565 = vmatprep.subr.mxu0 0.0
    %3566 = vmatpush1.msra.mxu0 0.0
    %3567 = vmatprep.subr.mxu0 0.0
    %3568 = vmatpush1.msra.mxu0 0.0
    %3569 = vmatprep.subr.mxu0 0.0
    %3570 = vmatpush1.msra.mxu0 0.0
    %3571 = vmatprep.subr.mxu0 0.0
    %3572 = vmatpush1.msra.mxu0 0.0
    %3573 = vmatprep.subr.mxu0 0.0
    %3574 = vmatpush1.msra.mxu0 0.0
    %3575 = vmatprep.subr.mxu0 0.0
    %3576 = vmatpush1.msra.mxu0 0.0
    %3577 = vmatprep.subr.mxu0 0.0
    %3578 = vmatpush1.msra.mxu0 0.0
    %3579 = vmatprep.subr.mxu0 0.0
    %3580 = vmatpush1.msra.mxu0 0.0
    %3581 = vmatprep.subr.mxu0 0.0
    %3582 = vmatpush1.msra.mxu0 0.0
    %3583 = vmatprep.subr.mxu0 0.0
    %3584 = vmatpush1.msra.mxu0 0.0
    %3585 = vmatprep.subr.mxu0 0.0
    %3586 = vmatpush1.msra.mxu0 0.0
    %3587 = vmatprep.subr.mxu0 0.0
    %3588 = vmatpush1.msra.mxu0 0.0
    %3589 = vmatprep.mubr.f32.mxu0 0.0
    %3590 = vmatmul.mubr.f32.gmra.mrb[0].mxu0 %v3523
    %v3591 = vpop.f32.mrb[0].mxu0
    %v3592 = vadd.f32 0.0, %v3591
    %v3593 = vpop.f32.mrb[0].mxu0
    %3594 = vdwg.mxu0
    %v3596 = vsel %vm434, %v3155, 0
    %3598 = vmatprep.subr.mxu0 0.0
    %3599 = vmatpush1.msra.mxu0 %v2456
    %3600 = vmatprep.subr.mxu0 0.0
    %3601 = vmatpush1.msra.mxu0 0.0
    %3602 = vmatprep.subr.mxu0 0.0
    %3603 = vmatpush1.msra.mxu0 0.0
    %3604 = vmatprep.subr.mxu0 0.0
    %3605 = vmatpush1.msra.mxu0 0.0
    %3606 = vmatprep.subr.mxu0 0.0
    %3607 = vmatpush1.msra.mxu0 0.0
    %3608 = vmatprep.subr.mxu0 0.0
    %3609 = vmatpush1.msra.mxu0 0.0
    %3610 = vmatprep.subr.mxu0 0.0
    %3611 = vmatpush1.msra.mxu0 0.0
    %3612 = vmatprep.subr.mxu0 0.0
    %3613 = vmatpush1.msra.mxu0 0.0
    %3614 = vmatprep.subr.mxu0 0.0
    %3615 = vmatpush1.msra.mxu0 0.0
    %3616 = vmatprep.subr.mxu0 0.0
    %3617 = vmatpush1.msra.mxu0 0.0
    %3618 = vmatprep.subr.mxu0 0.0
    %3619 = vmatpush1.msra.mxu0 0.0
    %3620 = vmatprep.subr.mxu0 0.0
    %3621 = vmatpush1.msra.mxu0 0.0
    %3622 = vmatprep.subr.mxu0 0.0
    %3623 = vmatpush1.msra.mxu0 0.0
    %3624 = vmatprep.subr.mxu0 0.0
    %3625 = vmatpush1.msra.mxu0 0.0
    %3626 = vmatprep.subr.mxu0 0.0
    %3627 = vmatpush1.msra.mxu0 0.0
    %3628 = vmatprep.subr.mxu0 0.0
    %3629 = vmatpush1.msra.mxu0 0.0
    %3630 = vmatprep.subr.mxu0 0.0
    %3631 = vmatpush1.msra.mxu0 0.0
    %3632 = vmatprep.subr.mxu0 0.0
    %3633 = vmatpush1.msra.mxu0 0.0
    %3634 = vmatprep.subr.mxu0 0.0
    %3635 = vmatpush1.msra.mxu0 0.0
    %3636 = vmatprep.subr.mxu0 0.0
    %3637 = vmatpush1.msra.mxu0 0.0
    %3638 = vmatprep.subr.mxu0 0.0
    %3639 = vmatpush1.msra.mxu0 0.0
    %3640 = vmatprep.subr.mxu0 0.0
    %3641 = vmatpush1.msra.mxu0 0.0
    %3642 = vmatprep.subr.mxu0 0.0
    %3643 = vmatpush1.msra.mxu0 0.0
    %3644 = vmatprep.subr.mxu0 0.0
    %3645 = vmatpush1.msra.mxu0 0.0
    %3646 = vmatprep.subr.mxu0 0.0
    %3647 = vmatpush1.msra.mxu0 0.0
    %3648 = vmatprep.subr.mxu0 0.0
    %3649 = vmatpush1.msra.mxu0 0.0
    %3650 = vmatprep.subr.mxu0 0.0
    %3651 = vmatpush1.msra.mxu0 0.0
    %3652 = vmatprep.subr.mxu0 0.0
    %3653 = vmatpush1.msra.mxu0 0.0
    %3654 = vmatprep.subr.mxu0 0.0
    %3655 = vmatpush1.msra.mxu0 0.0
    %3656 = vmatprep.subr.mxu0 0.0
    %3657 = vmatpush1.msra.mxu0 0.0
    %3658 = vmatprep.subr.mxu0 0.0
    %3659 = vmatpush1.msra.mxu0 0.0
    %3660 = vmatprep.subr.mxu0 0.0
    %3661 = vmatpush1.msra.mxu0 0.0
    %3662 = vmatprep.mubr.f32.mxu0 0.0
    %3663 = vmatmul.mubr.f32.gmra.mrb[0].mxu0 %v3596
    %v3664 = vpop.f32.mrb[0].mxu0
    %v3665 = vadd.f32 0.0, %v3664
    %v3666 = vpop.f32.mrb[0].mxu0
    %3667 = vdwg.mxu0
    %v3669 = vsel %vm434, %v3156, 0
    %3671 = vmatprep.subr.mxu0 0.0
    %3672 = vmatpush1.msra.mxu0 %v2458
    %3673 = vmatprep.subr.mxu0 0.0
    %3674 = vmatpush1.msra.mxu0 0.0
    %3675 = vmatprep.subr.mxu0 0.0
    %3676 = vmatpush1.msra.mxu0 0.0
    %3677 = vmatprep.subr.mxu0 0.0
    %3678 = vmatpush1.msra.mxu0 0.0
    %3679 = vmatprep.subr.mxu0 0.0
    %3680 = vmatpush1.msra.mxu0 0.0
    %3681 = vmatprep.subr.mxu0 0.0
    %3682 = vmatpush1.msra.mxu0 0.0
    %3683 = vmatprep.subr.mxu0 0.0
    %3684 = vmatpush1.msra.mxu0 0.0
    %3685 = vmatprep.subr.mxu0 0.0
    %3686 = vmatpush1.msra.mxu0 0.0
    %3687 = vmatprep.subr.mxu0 0.0
    %3688 = vmatpush1.msra.mxu0 0.0
    %3689 = vmatprep.subr.mxu0 0.0
    %3690 = vmatpush1.msra.mxu0 0.0
    %3691 = vmatprep.subr.mxu0 0.0
    %3692 = vmatpush1.msra.mxu0 0.0
    %3693 = vmatprep.subr.mxu0 0.0
    %3694 = vmatpush1.msra.mxu0 0.0
    %3695 = vmatprep.subr.mxu0 0.0
    %3696 = vmatpush1.msra.mxu0 0.0
    %3697 = vmatprep.subr.mxu0 0.0
    %3698 = vmatpush1.msra.mxu0 0.0
    %3699 = vmatprep.subr.mxu0 0.0
    %3700 = vmatpush1.msra.mxu0 0.0
    %3701 = vmatprep.subr.mxu0 0.0
    %3702 = vmatpush1.msra.mxu0 0.0
    %3703 = vmatprep.subr.mxu0 0.0
    %3704 = vmatpush1.msra.mxu0 0.0
    %3705 = vmatprep.subr.mxu0 0.0
    %3706 = vmatpush1.msra.mxu0 0.0
    %3707 = vmatprep.subr.mxu0 0.0
    %3708 = vmatpush1.msra.mxu0 0.0
    %3709 = vmatprep.subr.mxu0 0.0
    %3710 = vmatpush1.msra.mxu0 0.0
    %3711 = vmatprep.subr.mxu0 0.0
    %3712 = vmatpush1.msra.mxu0 0.0
    %3713 = vmatprep.subr.mxu0 0.0
    %3714 = vmatpush1.msra.mxu0 0.0
    %3715 = vmatprep.subr.mxu0 0.0
    %3716 = vmatpush1.msra.mxu0 0.0
    %3717 = vmatprep.subr.mxu0 0.0
    %3718 = vmatpush1.msra.mxu0 0.0
    %3719 = vmatprep.subr.mxu0 0.0
    %3720 = vmatpush1.msra.mxu0 0.0
    %3721 = vmatprep.subr.mxu0 0.0
    %3722 = vmatpush1.msra.mxu0 0.0
    %3723 = vmatprep.subr.mxu0 0.0
    %3724 = vmatpush1.msra.mxu0 0.0
    %3725 = vmatprep.subr.mxu0 0.0
    %3726 = vmatpush1.msra.mxu0 0.0
    %3727 = vmatprep.subr.mxu0 0.0
    %3728 = vmatpush1.msra.mxu0 0.0
    %3729 = vmatprep.subr.mxu0 0.0
    %3730 = vmatpush1.msra.mxu0 0.0
    %3731 = vmatprep.subr.mxu0 0.0
    %3732 = vmatpush1.msra.mxu0 0.0
    %3733 = vmatprep.subr.mxu0 0.0
    %3734 = vmatpush1.msra.mxu0 0.0
    %3735 = vmatprep.mubr.f32.mxu0 0.0
    %3736 = vmatmul.mubr.f32.gmra.mrb[0].mxu0 %v3669
    %v3737 = vpop.f32.mrb[0].mxu0
    %v3738 = vadd.f32 0.0, %v3737
    %v3739 = vpop.f32.mrb[0].mxu0
    %3740 = vdwg.mxu0
    %3743 = vrot.lane.b32.xlu0 %v3373, 8
    %v3744 = vpop.permute.xlu0 %3743
    %3745 = vrot.lane.b32.xlu0 %v3446, 8
    %v3746 = vpop.permute.xlu0 %3745
    %3751 = vrot.lane.b32.xlu0 %v3519, 16
    %v3752 = vpop.permute.xlu0 %3751
    %3753 = vrot.lane.b32.xlu0 %v3592, 16
    %v3754 = vpop.permute.xlu0 %3753
    %3759 = vrot.lane.b32.xlu0 %v3665, 24
    %v3760 = vpop.permute.xlu0 %3759
    %3761 = vrot.lane.b32.xlu0 %v3738, 24
    %v3762 = vpop.permute.xlu0 %3761
    %v3765 = vsel %vm434, %v3227, %v3744
    %v3766 = vsel %vm434, %v3300, %v3746
    %v3767 = vsel %vm1743, %v3765, %v3752
    %v3768 = vsel %vm1743, %v3766, %v3754
    %v3769 = vsel %vm1746, %v3767, %v3760
    %v3770 = vsel %vm1746, %v3768, %v3762
    %s3771 = scalar_lea.vmem %s9, 32
    %v3772 = vld [vmem:[%s3771] sm:$0xff]
    %v3773 = vld [vmem:[%s3771 + $0x8] sm:$0xff]
    %v3774 = vld [vmem:[%s3771 + $0x10] sm:$0xff]
    %v3775 = vld [vmem:[%s3771 + $0x18] sm:$0xff]
    %s3776 = scalar_lea.vmem %s10, 1
    %v3777 = vld [vmem:[%s3776] sm:$0x1]
    %v3779 = vlaneseq
    %v3780 = vshrl.u32 %v3779, 7
    %v3781 = vsub.s32 0, %v3780
    %v3782 = vrot.slane %v3777, %v3781
    %v3785 = vsel %vm78, %v3769, 0
    %v3788 = vsel %vm78, %v3770, 0
    %3790 = vmatprep.subr.mxu0 0.0
    %3791 = vmatpush1.msra.mxu0 %v3772
    %3792 = vmatprep.subr.mxu0 0.0
    %3793 = vmatpush1.msra.mxu0 %v3773
    %3794 = vmatprep.subr.mxu0 0.0
    %3795 = vmatpush1.msra.mxu0 %v3774
    %3796 = vmatprep.subr.mxu0 0.0
    %3797 = vmatpush1.msra.mxu0 %v3775
    %3798 = vmatprep.subr.mxu0 0.0
    %3799 = vmatpush1.msra.mxu0 0.0
    %3800 = vmatprep.subr.mxu0 0.0
    %3801 = vmatpush1.msra.mxu0 0.0
    %3802 = vmatprep.subr.mxu0 0.0
    %3803 = vmatpush1.msra.mxu0 0.0
    %3804 = vmatprep.subr.mxu0 0.0
    %3805 = vmatpush1.msra.mxu0 0.0
    %3806 = vmatprep.subr.mxu0 0.0
    %3807 = vmatpush1.msra.mxu0 0.0
    %3808 = vmatprep.subr.mxu0 0.0
    %3809 = vmatpush1.msra.mxu0 0.0
    %3810 = vmatprep.subr.mxu0 0.0
    %3811 = vmatpush1.msra.mxu0 0.0
    %3812 = vmatprep.subr.mxu0 0.0
    %3813 = vmatpush1.msra.mxu0 0.0
    %3814 = vmatprep.subr.mxu0 0.0
    %3815 = vmatpush1.msra.mxu0 0.0
    %3816 = vmatprep.subr.mxu0 0.0
    %3817 = vmatpush1.msra.mxu0 0.0
    %3818 = vmatprep.subr.mxu0 0.0
    %3819 = vmatpush1.msra.mxu0 0.0
    %3820 = vmatprep.subr.mxu0 0.0
    %3821 = vmatpush1.msra.mxu0 0.0
    %3822 = vmatprep.subr.mxu0 0.0
    %3823 = vmatpush1.msra.mxu0 0.0
    %3824 = vmatprep.subr.mxu0 0.0
    %3825 = vmatpush1.msra.mxu0 0.0
    %3826 = vmatprep.subr.mxu0 0.0
    %3827 = vmatpush1.msra.mxu0 0.0
    %3828 = vmatprep.subr.mxu0 0.0
    %3829 = vmatpush1.msra.mxu0 0.0
    %3830 = vmatprep.subr.mxu0 0.0
    %3831 = vmatpush1.msra.mxu0 0.0
    %3832 = vmatprep.subr.mxu0 0.0
    %3833 = vmatpush1.msra.mxu0 0.0
    %3834 = vmatprep.subr.mxu0 0.0
    %3835 = vmatpush1.msra.mxu0 0.0
    %3836 = vmatprep.subr.mxu0 0.0
    %3837 = vmatpush1.msra.mxu0 0.0
    %3838 = vmatprep.subr.mxu0 0.0
    %3839 = vmatpush1.msra.mxu0 0.0
    %3840 = vmatprep.subr.mxu0 0.0
    %3841 = vmatpush1.msra.mxu0 0.0
    %3842 = vmatprep.subr.mxu0 0.0
    %3843 = vmatpush1.msra.mxu0 0.0
    %3844 = vmatprep.subr.mxu0 0.0
    %3845 = vmatpush1.msra.mxu0 0.0
    %3846 = vmatprep.subr.mxu0 0.0
    %3847 = vmatpush1.msra.mxu0 0.0
    %3848 = vmatprep.subr.mxu0 0.0
    %3849 = vmatpush1.msra.mxu0 0.0
    %3850 = vmatprep.subr.mxu0 0.0
    %3851 = vmatpush1.msra.mxu0 0.0
    %3852 = vmatprep.subr.mxu0 0.0
    %3853 = vmatpush1.msra.mxu0 0.0
    %3854 = vmatprep.mubr.f32.mxu0 0.0
    %3855 = vmatmul.mubr.f32.gmra.mrb[0].mxu0 %v3785
    %v3856 = vpop.f32.mrb[0].mxu0
    %v3857 = vadd.f32 %v3782, %v3856
    %v3858 = vpop.f32.mrb[0].mxu0
    %3859 = vmatprep.mubr.f32.mxu0 0.0
    %3860 = vmatmul.mubr.f32.gmra.mrb[0].mxu0 %v3788
    %v3861 = vpop.f32.mrb[0].mxu0
    %v3862 = vadd.f32 %v3782, %v3861
    %v3863 = vpop.f32.mrb[0].mxu0
    %3864 = vdwg.mxu0
    %v3865 = vadd.f32 %v2095, %v3857
    %v3866 = vadd.f32 %v2096, %v3862
    %s3867 = scalar_lea.vmem %s11, 1
    %v3868 = vld [vmem:[%s3867] sm:$0x1]
    %s3869 = scalar_lea.vmem %s12, 1
    %v3870 = vld [vmem:[%s3869] sm:$0x1]
    %v3871 = vsel %vm78, %v3865, 0.0
    %3872 = vadd.xlane.f32.xlu0 %v3871
    %v3873 = vpop.xlane.xlu0 %3872
    %v3874 = vsel %vm78, %v3866, 0.0
    %3875 = vadd.xlane.f32.xlu0 %v3874
    %v3876 = vpop.xlane.xlu0 %3875
    %v3877 = vmul.f32 %v3873, %v85
    %v3878 = vmul.f32 %v3876, %v85
    %v3879 = vsub.f32 %v3865, %v3877
    %v3880 = vsub.f32 %v3866, %v3878
    %v3881 = vmul.f32 %v3879, %v3879
    %v3882 = vmul.f32 %v3880, %v3880
    %v3883 = vsel %vm78, %v3881, 0.0
    %3884 = vadd.xlane.f32.xlu0 %v3883
    %v3885 = vpop.xlane.xlu0 %3884
    %v3886 = vsel %vm78, %v3882, 0.0
    %3887 = vadd.xlane.f32.xlu0 %v3886
    %v3888 = vpop.xlane.xlu0 %3887
    %v3889 = vmul.f32 %v3885, %v85
    %v3890 = vmul.f32 %v3888, %v85
    %v3891 = vadd.f32 %v3889, 1e-05
    %v3892 = vadd.f32 %v3890, 1e-05
    %v3893 = vrsqrt.pop %v3891
    %v3894 = vrsqrt.pop %v3892
    %v3895 = vmul.f32 %v3879, %v3893
    %v3896 = vmul.f32 %v3880, %v3894
    %v3898 = vlaneseq
    %v3899 = vshrl.u32 %v3898, 7
    %v3900 = vsub.s32 0, %v3899
    %v3901 = vrot.slane %v3868, %v3900
    %v3903 = vmul.f32 %v3895, %v3901
    %v3904 = vmul.f32 %v3896, %v3901
    %v3906 = vlaneseq
    %v3907 = vshrl.u32 %v3906, 7
    %v3908 = vsub.s32 0, %v3907
    %v3909 = vrot.slane %v3870, %v3908
    %v3911 = vadd.f32 %v3903, %v3909
    %v3912 = vadd.f32 %v3904, %v3909
    %s3913 = scalar_lea.vmem %s13, 32
    %v3914 = vld [vmem:[%s3913] sm:$0xff]
    %v3915 = vld [vmem:[%s3913 + $0x8] sm:$0xff]
    %v3916 = vld [vmem:[%s3913 + $0x10] sm:$0xff]
    %v3917 = vld [vmem:[%s3913 + $0x18] sm:$0xff]
    %s3918 = scalar_lea.vmem %s14, 1
    %v3919 = vld [vmem:[%s3918] sm:$0x1]
    %v3921 = vlaneseq
    %v3922 = vshrl.u32 %v3921, 7
    %v3923 = vsub.s32 0, %v3922
    %v3924 = vrot.slane %v3919, %v3923
    %v3927 = vsel %vm78, %v3911, 0
    %v3930 = vsel %vm78, %v3912, 0
    %3932 = vmatprep.subr.mxu0 0.0
    %3933 = vmatpush1.msra.mxu0 %v3914
    %3934 = vmatprep.subr.mxu0 0.0
    %3935 = vmatpush1.msra.mxu0 %v3915
    %3936 = vmatprep.subr.mxu0 0.0
    %3937 = vmatpush1.msra.mxu0 %v3916
    %3938 = vmatprep.subr.mxu0 0.0
    %3939 = vmatpush1.msra.mxu0 %v3917
    %3940 = vmatprep.subr.mxu0 0.0
    %3941 = vmatpush1.msra.mxu0 0.0
    %3942 = vmatprep.subr.mxu0 0.0
    %3943 = vmatpush1.msra.mxu0 0.0
    %3944 = vmatprep.subr.mxu0 0.0
    %3945 = vmatpush1.msra.mxu0 0.0
    %3946 = vmatprep.subr.mxu0 0.0
    %3947 = vmatpush1.msra.mxu0 0.0
    %3948 = vmatprep.subr.mxu0 0.0
    %3949 = vmatpush1.msra.mxu0 0.0
    %3950 = vmatprep.subr.mxu0 0.0
    %3951 = vmatpush1.msra.mxu0 0.0
    %3952 = vmatprep.subr.mxu0 0.0
    %3953 = vmatpush1.msra.mxu0 0.0
    %3954 = vmatprep.subr.mxu0 0.0
    %3955 = vmatpush1.msra.mxu0 0.0
    %3956 = vmatprep.subr.mxu0 0.0
    %3957 = vmatpush1.msra.mxu0 0.0
    %3958 = vmatprep.subr.mxu0 0.0
    %3959 = vmatpush1.msra.mxu0 0.0
    %3960 = vmatprep.subr.mxu0 0.0
    %3961 = vmatpush1.msra.mxu0 0.0
    %3962 = vmatprep.subr.mxu0 0.0
    %3963 = vmatpush1.msra.mxu0 0.0
    %3964 = vmatprep.subr.mxu0 0.0
    %3965 = vmatpush1.msra.mxu0 0.0
    %3966 = vmatprep.subr.mxu0 0.0
    %3967 = vmatpush1.msra.mxu0 0.0
    %3968 = vmatprep.subr.mxu0 0.0
    %3969 = vmatpush1.msra.mxu0 0.0
    %3970 = vmatprep.subr.mxu0 0.0
    %3971 = vmatpush1.msra.mxu0 0.0
    %3972 = vmatprep.subr.mxu0 0.0
    %3973 = vmatpush1.msra.mxu0 0.0
    %3974 = vmatprep.subr.mxu0 0.0
    %3975 = vmatpush1.msra.mxu0 0.0
    %3976 = vmatprep.subr.mxu0 0.0
    %3977 = vmatpush1.msra.mxu0 0.0
    %3978 = vmatprep.subr.mxu0 0.0
    %3979 = vmatpush1.msra.mxu0 0.0
    %3980 = vmatprep.subr.mxu0 0.0
    %3981 = vmatpush1.msra.mxu0 0.0
    %3982 = vmatprep.subr.mxu0 0.0
    %3983 = vmatpush1.msra.mxu0 0.0
    %3984 = vmatprep.subr.mxu0 0.0
    %3985 = vmatpush1.msra.mxu0 0.0
    %3986 = vmatprep.subr.mxu0 0.0
    %3987 = vmatpush1.msra.mxu0 0.0
    %3988 = vmatprep.subr.mxu0 0.0
    %3989 = vmatpush1.msra.mxu0 0.0
    %3990 = vmatprep.subr.mxu0 0.0
    %3991 = vmatpush1.msra.mxu0 0.0
    %3992 = vmatprep.subr.mxu0 0.0
    %3993 = vmatpush1.msra.mxu0 0.0
    %3994 = vmatprep.subr.mxu0 0.0
    %3995 = vmatpush1.msra.mxu0 0.0
    %3996 = vmatprep.mubr.f32.mxu0 0.0
    %3997 = vmatmul.mubr.f32.gmra.mrb[0].mxu0 %v3927
    %v3998 = vpop.f32.mrb[0].mxu0
    %v3999 = vadd.f32 %v3924, %v3998
    %v4000 = vpop.f32.mrb[0].mxu0
    %4001 = vmatprep.mubr.f32.mxu0 0.0
    %4002 = vmatmul.mubr.f32.gmra.mrb[0].mxu0 %v3930
    %v4003 = vpop.f32.mrb[0].mxu0
    %v4004 = vadd.f32 %v3924, %v4003
    %v4005 = vpop.f32.mrb[0].mxu0
    %4006 = vdwg.mxu0
    %v4007 = vmul.f32 %v3999, 0.5
    %v4008 = vmul.f32 %v4004, 0.5
    %v4009 = vmul.f32 %v3999, %v3999
    %v4010 = vmul.f32 %v4004, %v4004
    %v4011 = vmul.f32 %v3999, %v4009
    %v4012 = vmul.f32 %v4004, %v4010
    %v4013 = vmul.f32 %v4011, 0.044715
    %v4014 = vmul.f32 %v4012, 0.044715
    %v4015 = vadd.f32 %v3999, %v4013
    %v4016 = vadd.f32 %v4004, %v4014
    %v4017 = vmul.f32 %v4015, 0.7978846
    %v4018 = vmul.f32 %v4016, 0.7978846
    %v4019 = vtanh.pop %v4017
    %v4020 = vtanh.pop %v4018
    %v4021 = vadd.f32 %v4019, 1.0
    %v4022 = vadd.f32 %v4020, 1.0
    %v4023 = vmul.f32 %v4007, %v4021
    %v4024 = vmul.f32 %v4008, %v4022
    %s4025 = scalar_lea.vmem %s15, 128
    %v4026 = vld [vmem:[%s4025] sm:$0xff]
    %v4027 = vld [vmem:[%s4025 + $0x8] sm:$0xff]
    %v4028 = vld [vmem:[%s4025 + $0x10] sm:$0xff]
    %v4029 = vld [vmem:[%s4025 + $0x18] sm:$0xff]
    %v4030 = vld [vmem:[%s4025 + $0x20] sm:$0xff]
    %v4031 = vld [vmem:[%s4025 + $0x28] sm:$0xff]
    %v4032 = vld [vmem:[%s4025 + $0x30] sm:$0xff]
    %v4033 = vld [vmem:[%s4025 + $0x38] sm:$0xff]
    %v4034 = vld [vmem:[%s4025 + $0x40] sm:$0xff]
    %v4035 = vld [vmem:[%s4025 + $0x48] sm:$0xff]
    %v4036 = vld [vmem:[%s4025 + $0x50] sm:$0xff]
    %v4037 = vld [vmem:[%s4025 + $0x58] sm:$0xff]
    %v4038 = vld [vmem:[%s4025 + $0x60] sm:$0xff]
    %v4039 = vld [vmem:[%s4025 + $0x68] sm:$0xff]
    %v4040 = vld [vmem:[%s4025 + $0x70] sm:$0xff]
    %v4041 = vld [vmem:[%s4025 + $0x78] sm:$0xff]
    %s4042 = scalar_lea.vmem %s16, 1
    %v4043 = vld [vmem:[%s4042] sm:$0x1]
    %v4045 = vlaneseq
    %v4046 = vshrl.u32 %v4045, 7
    %v4047 = vsub.s32 0, %v4046
    %v4048 = vrot.slane %v4043, %v4047
    %4050 = vmatprep.subr.mxu0 0.0
    %4051 = vmatpush1.msra.mxu0 %v4026
    %4052 = vmatprep.subr.mxu0 0.0
    %4053 = vmatpush1.msra.mxu0 %v4027
    %4054 = vmatprep.subr.mxu0 0.0
    %4055 = vmatpush1.msra.mxu0 %v4028
    %4056 = vmatprep.subr.mxu0 0.0
    %4057 = vmatpush1.msra.mxu0 %v4029
    %4058 = vmatprep.subr.mxu0 0.0
    %4059 = vmatpush1.msra.mxu0 %v4030
    %4060 = vmatprep.subr.mxu0 0.0
    %4061 = vmatpush1.msra.mxu0 %v4031
    %4062 = vmatprep.subr.mxu0 0.0
    %4063 = vmatpush1.msra.mxu0 %v4032
    %4064 = vmatprep.subr.mxu0 0.0
    %4065 = vmatpush1.msra.mxu0 %v4033
    %4066 = vmatprep.subr.mxu0 0.0
    %4067 = vmatpush1.msra.mxu0 %v4034
    %4068 = vmatprep.subr.mxu0 0.0
    %4069 = vmatpush1.msra.mxu0 %v4035
    %4070 = vmatprep.subr.mxu0 0.0
    %4071 = vmatpush1.msra.mxu0 %v4036
    %4072 = vmatprep.subr.mxu0 0.0
    %4073 = vmatpush1.msra.mxu0 %v4037
    %4074 = vmatprep.subr.mxu0 0.0
    %4075 = vmatpush1.msra.mxu0 %v4038
    %4076 = vmatprep.subr.mxu0 0.0
    %4077 = vmatpush1.msra.mxu0 %v4039
    %4078 = vmatprep.subr.mxu0 0.0
    %4079 = vmatpush1.msra.mxu0 %v4040
    %4080 = vmatprep.subr.mxu0 0.0
    %4081 = vmatpush1.msra.mxu0 %v4041
    %4082 = vmatprep.subr.mxu0 0.0
    %4083 = vmatpush1.msra.mxu0 0.0
    %4084 = vmatprep.subr.mxu0 0.0
    %4085 = vmatpush1.msra.mxu0 0.0
    %4086 = vmatprep.subr.mxu0 0.0
    %4087 = vmatpush1.msra.mxu0 0.0
    %4088 = vmatprep.subr.mxu0 0.0
    %4089 = vmatpush1.msra.mxu0 0.0
    %4090 = vmatprep.subr.mxu0 0.0
    %4091 = vmatpush1.msra.mxu0 0.0
    %4092 = vmatprep.subr.mxu0 0.0
    %4093 = vmatpush1.msra.mxu0 0.0
    %4094 = vmatprep.subr.mxu0 0.0
    %4095 = vmatpush1.msra.mxu0 0.0
    %4096 = vmatprep.subr.mxu0 0.0
    %4097 = vmatpush1.msra.mxu0 0.0
    %4098 = vmatprep.subr.mxu0 0.0
    %4099 = vmatpush1.msra.mxu0 0.0
    %4100 = vmatprep.subr.mxu0 0.0
    %4101 = vmatpush1.msra.mxu0 0.0
    %4102 = vmatprep.subr.mxu0 0.0
    %4103 = vmatpush1.msra.mxu0 0.0
    %4104 = vmatprep.subr.mxu0 0.0
    %4105 = vmatpush1.msra.mxu0 0.0
    %4106 = vmatprep.subr.mxu0 0.0
    %4107 = vmatpush1.msra.mxu0 0.0
    %4108 = vmatprep.subr.mxu0 0.0
    %4109 = vmatpush1.msra.mxu0 0.0
    %4110 = vmatprep.subr.mxu0 0.0
    %4111 = vmatpush1.msra.mxu0 0.0
    %4112 = vmatprep.subr.mxu0 0.0
    %4113 = vmatpush1.msra.mxu0 0.0
    %4114 = vmatprep.mubr.f32.mxu0 0.0
    %4115 = vmatmul.mubr.f32.gmra.mrb[0].mxu0 %v4023
    %v4116 = vpop.f32.mrb[0].mxu0
    %v4117 = vadd.f32 %v4048, %v4116
    %v4118 = vpop.f32.mrb[0].mxu0
    %4119 = vmatprep.mubr.f32.mxu0 0.0
    %4120 = vmatmul.mubr.f32.gmra.mrb[0].mxu0 %v4024
    %v4121 = vpop.f32.mrb[0].mxu0
    %v4122 = vadd.f32 %v4048, %v4121
    %v4123 = vpop.f32.mrb[0].mxu0
    %4124 = vdwg.mxu0
    %v4125 = vadd.f32 %v3865, %v4117
    %v4126 = vadd.f32 %v3866, %v4122
    %v4127 = vld [vmem:[%s17] sm:$0x1]
    %v4128 = vld [vmem:[%s18] sm:$0x1]
    %v4129 = vsel %vm78, %v4125, 0.0
    %4130 = vadd.xlane.f32.xlu0 %v4129
    %v4131 = vpop.xlane.xlu0 %4130
    %v4132 = vsel %vm78, %v4126, 0.0
    %4133 = vadd.xlane.f32.xlu0 %v4132
    %v4134 = vpop.xlane.xlu0 %4133
    %v4135 = vmul.f32 %v4131, %v85
    %v4136 = vmul.f32 %v4134, %v85
    %v4137 = vsub.f32 %v4125, %v4135
    %v4138 = vsub.f32 %v4126, %v4136
    %v4139 = vmul.f32 %v4137, %v4137
    %v4140 = vmul.f32 %v4138, %v4138
    %v4141 = vsel %vm78, %v4139, 0.0
    %4142 = vadd.xlane.f32.xlu0 %v4141
    %v4143 = vpop.xlane.xlu0 %4142
    %v4144 = vsel %vm78, %v4140, 0.0
    %4145 = vadd.xlane.f32.xlu0 %v4144
    %v4146 = vpop.xlane.xlu0 %4145
    %v4147 = vmul.f32 %v4143, %v85
    %v4148 = vmul.f32 %v4146, %v85
    %v4149 = vadd.f32 %v4147, 1e-05
    %v4150 = vadd.f32 %v4148, 1e-05
    %v4151 = vrsqrt.pop %v4149
    %v4152 = vrsqrt.pop %v4150
    %v4153 = vmul.f32 %v4137, %v4151
    %v4154 = vmul.f32 %v4138, %v4152
    %v4156 = vlaneseq
    %v4157 = vshrl.u32 %v4156, 7
    %v4158 = vsub.s32 0, %v4157
    %v4159 = vrot.slane %v4127, %v4158
    %v4161 = vmul.f32 %v4153, %v4159
    %v4162 = vmul.f32 %v4154, %v4159
    %v4164 = vlaneseq
    %v4165 = vshrl.u32 %v4164, 7
    %v4166 = vsub.s32 0, %v4165
    %v4167 = vrot.slane %v4128, %v4166
    %v4169 = vadd.f32 %v4161, %v4167
    %v4170 = vadd.f32 %v4162, %v4167
    %v4171 = vld [vmem:[%s19] sm:$0xff]
    %v4172 = vld [vmem:[%s19 + $0x8] sm:$0xff]
    %v4173 = vld [vmem:[%s19 + $0x10] sm:$0xff]
    %v4174 = vld [vmem:[%s19 + $0x18] sm:$0xff]
    %v4175 = vld [vmem:[%s20] sm:$0x1]
    %v4177 = vlaneseq
    %v4178 = vshrl.u32 %v4177, 7
    %v4179 = vsub.s32 0, %v4178
    %v4180 = vrot.slane %v4175, %v4179
    %v4183 = vsel %vm78, %v4169, 0
    %v4186 = vsel %vm78, %v4170, 0
    %4188 = vmatprep.subr.mxu0 0.0
    %4189 = vmatpush1.msra.mxu0 %v4171
    %4190 = vmatprep.subr.mxu0 0.0
    %4191 = vmatpush1.msra.mxu0 %v4172
    %4192 = vmatprep.subr.mxu0 0.0
    %4193 = vmatpush1.msra.mxu0 %v4173
    %4194 = vmatprep.subr.mxu0 0.0
    %4195 = vmatpush1.msra.mxu0 %v4174
    %4196 = vmatprep.subr.mxu0 0.0
    %4197 = vmatpush1.msra.mxu0 0.0
    %4198 = vmatprep.subr.mxu0 0.0
    %4199 = vmatpush1.msra.mxu0 0.0
    %4200 = vmatprep.subr.mxu0 0.0
    %4201 = vmatpush1.msra.mxu0 0.0
    %4202 = vmatprep.subr.mxu0 0.0
    %4203 = vmatpush1.msra.mxu0 0.0
    %4204 = vmatprep.subr.mxu0 0.0
    %4205 = vmatpush1.msra.mxu0 0.0
    %4206 = vmatprep.subr.mxu0 0.0
    %4207 = vmatpush1.msra.mxu0 0.0
    %4208 = vmatprep.subr.mxu0 0.0
    %4209 = vmatpush1.msra.mxu0 0.0
    %4210 = vmatprep.subr.mxu0 0.0
    %4211 = vmatpush1.msra.mxu0 0.0
    %4212 = vmatprep.subr.mxu0 0.0
    %4213 = vmatpush1.msra.mxu0 0.0
    %4214 = vmatprep.subr.mxu0 0.0
    %4215 = vmatpush1.msra.mxu0 0.0
    %4216 = vmatprep.subr.mxu0 0.0
    %4217 = vmatpush1.msra.mxu0 0.0
    %4218 = vmatprep.subr.mxu0 0.0
    %4219 = vmatpush1.msra.mxu0 0.0
    %4220 = vmatprep.subr.mxu0 0.0
    %4221 = vmatpush1.msra.mxu0 0.0
    %4222 = vmatprep.subr.mxu0 0.0
    %4223 = vmatpush1.msra.mxu0 0.0
    %4224 = vmatprep.subr.mxu0 0.0
    %4225 = vmatpush1.msra.mxu0 0.0
    %4226 = vmatprep.subr.mxu0 0.0
    %4227 = vmatpush1.msra.mxu0 0.0
    %4228 = vmatprep.subr.mxu0 0.0
    %4229 = vmatpush1.msra.mxu0 0.0
    %4230 = vmatprep.subr.mxu0 0.0
    %4231 = vmatpush1.msra.mxu0 0.0
    %4232 = vmatprep.subr.mxu0 0.0
    %4233 = vmatpush1.msra.mxu0 0.0
    %4234 = vmatprep.subr.mxu0 0.0
    %4235 = vmatpush1.msra.mxu0 0.0
    %4236 = vmatprep.subr.mxu0 0.0
    %4237 = vmatpush1.msra.mxu0 0.0
    %4238 = vmatprep.subr.mxu0 0.0
    %4239 = vmatpush1.msra.mxu0 0.0
    %4240 = vmatprep.subr.mxu0 0.0
    %4241 = vmatpush1.msra.mxu0 0.0
    %4242 = vmatprep.subr.mxu0 0.0
    %4243 = vmatpush1.msra.mxu0 0.0
    %4244 = vmatprep.subr.mxu0 0.0
    %4245 = vmatpush1.msra.mxu0 0.0
    %4246 = vmatprep.subr.mxu0 0.0
    %4247 = vmatpush1.msra.mxu0 0.0
    %4248 = vmatprep.subr.mxu0 0.0
    %4249 = vmatpush1.msra.mxu0 0.0
    %4250 = vmatprep.subr.mxu0 0.0
    %4251 = vmatpush1.msra.mxu0 0.0
    %4252 = vmatprep.mubr.f32.mxu0 0.0
    %4253 = vmatmul.mubr.f32.gmra.mrb[0].mxu0 %v4183
    %v4254 = vpop.f32.mrb[0].mxu0
    %v4255 = vadd.f32 %v4180, %v4254
    %v4256 = vpop.f32.mrb[0].mxu0
    %4257 = vmatprep.mubr.f32.mxu0 0.0
    %4258 = vmatmul.mubr.f32.gmra.mrb[0].mxu0 %v4186
    %v4259 = vpop.f32.mrb[0].mxu0
    %v4260 = vadd.f32 %v4180, %v4259
    %v4261 = vpop.f32.mrb[0].mxu0
    %4262 = vdwg.mxu0
    %4263 = vst [vmem:[#allocation2] sm:$0xff] %v4255
    %4264 = vst [vmem:[#allocation2 + $0x8] sm:$0xff] %v4260
    // Predicated region
    $region86: #{demo_transformer_forward.1} parent=1 // pred_check
      _
    $region87: #{demo_transformer_forward.1} parent=1 // pred_check_branch
      %4266 = sbr.rel (0) target = $region89
    $region88: #{demo_transformer_forward.1} parent=1 // pred_region
      %s4268 = ssub.s32 256, 256
      %4269 = vsyncadd [#allocation3], %s4268
      %s4270 = sshll.u32 [#allocation2], 4
      %s4271 = int_to_ptr.vmem [resolvable:$true] %s4270
      %4276 = dma.vmem_to_hbm [thread:$0]  %s4271, 256, %s21, [#allocation3], 128, 128, 8
    $region89: #{demo_transformer_forward.1} parent=1 // pred_fallthru
      _
    // Predicated region
    $region90: #{demo_transformer_forward.1} parent=1 // pred_check
      _
    $region91: #{demo_transformer_forward.1} parent=1 // pred_check_branch
      %4278 = sbr.rel (0) target = $region93
    $region92: #{demo_transformer_forward.1} parent=1 // pred_region
      %4279 = dma.done [#allocation3], 256
    $region93: #{demo_transformer_forward.1} parent=1 // pred_fallthru
      _
    %4280 = vsyncpa [#allocation3], 1

</llo_original>
